<compile_context>
chip_gen: v7x
topology: tpu7x:2x2x1
jax: 0.10.0
libtpu: 0.0.40
codegen_flags: <defaults>
</compile_context>

<pallas_src>
import numpy as np
import jax
import jax.numpy as jnp
from jax import lax
from jax.experimental import pallas as pl
from jax.experimental.pallas import tpu as pltpu


ACT_MAP = {'HS': 'hs', 'RE': 'relu'}
# TODO(synk): the 'PRE' (PReLU) activation path of the reference is not implemented;
# the published MobilePosNet settings (and this test config) only use HS / RE.


def _make_divisible(v, divisor, min_value=None):
    if min_value is None:
        min_value = divisor
    new_v = max(min_value, int(v + divisor / 2) // divisor * divisor)
    if new_v < 0.9 * v:
        new_v += divisor
    return new_v


class BlockConfig:
    def __init__(self, in_channels, exp_channels, out_channels, kernel_size,
                 stride, dilation, activation, use_se):
        self.in_channels = in_channels
        self.exp_channels = exp_channels
        self.out_channels = out_channels
        self.kernel_size = kernel_size
        self.stride = stride
        self.dilation = dilation
        self.activation = activation
        self.use_se = use_se


# --------------------------- in-kernel helpers ---------------------------

def _act(y, act):
    if act == 'relu':
        return jnp.maximum(y, 0.0)
    if act == 'hs':            # Hardswish: x * relu6(x + 3) / 6
        return y * jnp.clip(y + 3.0, 0.0, 6.0) * (1.0 / 6.0)
    return y


def _sigmoid(y):
    # The reference CA uses an exact sigmoid (torch .sigmoid()), not h_sigmoid.
    return 1.0 / (1.0 + jnp.exp(-y))


def _zpad2d(x, top, bottom, left, right):
    """Zero-pad a 2-D value via lane/sublane concatenation (no scratch, no memset)."""
    h, w = x.shape
    if left or right:
        cols = []
        if left:
            cols.append(jnp.zeros((h, left), x.dtype))
        cols.append(x)
        if right:
            cols.append(jnp.zeros((h, right), x.dtype))
        x = jnp.concatenate(cols, axis=1)
        w = w + left + right
    if top or bottom:
        rows = []
        if top:
            rows.append(jnp.zeros((top, w), x.dtype))
        rows.append(x)
        if bottom:
            rows.append(jnp.zeros((bottom, w), x.dtype))
        x = jnp.concatenate(rows, axis=0)
    return x


# --------------------------- fused kernel ---------------------------

def _make_fused_kernel(dims, offA, offB):
    """Whole-network kernel for one batch item.  `dims` holds static channel /
    spatial sizes, offA/offB map names -> (row_offset, rows, cols) in the packed
    weight slabs."""
    c0, c2e, c2o = dims['c0'], dims['c2e'], dims['c2o']
    c3e, c3o = dims['c3e'], dims['c3o']
    act1, act2, act3 = dims['act1'], dims['act2'], dims['act3']
    J, nco = dims['J'], dims['ncoord']
    HQ, WQ = dims['HQ'], dims['WQ']              # heatmap spatial size (8 x 8)
    LA, L2, L3 = WQ * c0, WQ * c2e, WQ * c3e     # lane-dense widths per stage

    def _take(ref, offs, name):
        o, r, c = offs[name]
        return ref[o:o + r, 0:c]

    def kernel(xcol_ref, wa_ref, wb_ref, o_ref):
        A = lambda name: _take(wa_ref, offA, name)
        B = lambda name: _take(wb_ref, offB, name)
        f32 = jnp.float32

        # ---- stem: the 9 taps merged into a single block-diagonal matmul ----
        # xcol rows = (pixel_parity, hq), lanes = (wq, tap, cin)
        xcol = xcol_ref[0]                                         # (4*HQ, WQ*27)
        x0 = _act(jnp.dot(xcol, A('w_stem'), preferred_element_type=f32)
                  + A('b_stem'), 'hs')                             # (4*HQ, LA)

        # ---- block 1: 3x3 s1 depthwise on the 4 parity-split lane-dense slabs ----
        wdw1, bdw1 = A('w_dw1'), A('b_dw1')
        pads = [_zpad2d(x0[HQ * p:HQ * (p + 1), :], 1, 1, c0, c0) for p in range(4)]
        ys = []
        for oh in range(2):
            for ow in range(2):
                acc = jnp.zeros((HQ, LA), f32)
                for kh in range(3):
                    for kw in range(3):
                        a, b = oh + kh - 1, ow + kw - 1
                        ip = (a % 2) * 2 + (b % 2)
                        r0, l0 = 1 + a // 2, (1 + b // 2) * c0
                        acc = acc + (pads[ip][r0:r0 + HQ, l0:l0 + LA]
                                     * wdw1[kh * 3 + kw:kh * 3 + kw + 1, :])
                ys.append(_act(acc + bdw1, act1))
        y1 = jnp.concatenate(ys, axis=0)                            # (4*HQ, LA)
        # project (block-diag 1x1) + residual, all lane-dense
        x1 = (jnp.dot(y1, A('w_pj1'), preferred_element_type=f32)
              + A('b_pj1') + x0)

        # ---- block 2: expand + 3x3 s2 depthwise + CoordAttention + project ----
        e2 = _act(jnp.dot(x1, B('w_ex2'), preferred_element_type=f32)
                  + B('b_ex2'), act2)                               # (4*HQ, L2)
        wdw2 = B('w_dw2')
        pads2 = [_zpad2d(e2[HQ * p:HQ * (p + 1), :], 1, 0, c2e, 0) for p in range(4)]
        acc = jnp.zeros((HQ, L2), f32)
        for kh in range(3):
            for kw in range(3):
                a, b = kh - 1, kw - 1
                ip = (a % 2) * 2 + (b % 2)
                r0, l0 = 1 + a // 2, (1 + b // 2) * c2e
                acc = acc + (pads2[ip][r0:r0 + HQ, l0:l0 + L2]
                             * wdw2[kh * 3 + kw:kh * 3 + kw + 1, :])
        d2 = _act(acc + B('b_dw2'), act2)                           # (HQ, L2)

        # CoordAttention: pools via lane-chunk slices (no layout-changing reshape).
        chunks = [d2[:, w * c2e:(w + 1) * c2e] for w in range(WQ)]
        x_h = chunks[0]
        for w in range(1, WQ):
            x_h = x_h + chunks[w]
        x_h = x_h * (1.0 / WQ)                                      # (HQ, c2e)
        x_w = jnp.concatenate(
            [jnp.mean(chunks[w], axis=0, keepdims=True) for w in range(WQ)], axis=0)
        y0 = jnp.concatenate([x_h, x_w], axis=0)                    # (HQ+WQ, c2e)
        yc = _act(jnp.dot(y0, A('w_ca1'), preferred_element_type=f32)
                  + A('b_ca1'), 'hs')                               # (HQ+WQ, mip)
        av = _sigmoid(jnp.dot(yc, A('w_ca2'), preferred_element_type=f32)
                      + A('b_ca2'))                                 # (HQ+WQ, 2*c2e)
        a_h = av[0:HQ, 0:c2e]
        a_w = av[HQ:HQ + WQ, c2e:2 * c2e]
        gate_h = jnp.concatenate([a_h] * WQ, axis=1)                # (HQ, L2)
        gate_w = jnp.concatenate([a_w[w:w + 1, :] for w in range(WQ)], axis=1)
        d2 = d2 * gate_h * gate_w

        x3 = (jnp.dot(d2, A('w_pj2'), preferred_element_type=f32)
              + A('b_pj2'))                                         # (HQ, WQ*c2o)

        # ---- block 3: expand + 3x3 s1 depthwise + project + residual ----
        e3 = _act(jnp.dot(x3, B('w_ex3'), preferred_element_type=f32)
                  + B('b_ex3'), act3)                               # (HQ, L3)
        wdw3 = B('w_dw3')
        pad3 = _zpad2d(e3, 1, 1, c3e, c3e)                          # (HQ+2, L3+2*c3e)
        acc = jnp.zeros((HQ, L3), f32)
        for kh in range(3):
            for kw in range(3):
                acc = acc + (pad3[kh:kh + HQ, kw * c3e:kw * c3e + L3]
                             * wdw3[kh * 3 + kw:kh * 3 + kw + 1, :])
        y3 = _act(acc + B('b_dw3'), act3)
        p3 = (jnp.dot(y3, A('w_pj3'), preferred_element_type=f32)
              + A('b_pj3') + x3)                                    # (HQ, WQ*c3o)

        # ---- head: joints classifier + merged coord generator (single output) ----
        wcls, bcls = A('w_cls'), A('b_cls')
        wxy, bxy = A('w_xy'), A('b_xy')        # wxy rows pre-permuted to wq-major order
        coords = jnp.zeros((J, nco), f32)
        for w in range(WQ):
            feat = p3[:, w * c3o:(w + 1) * c3o]                     # (HQ, c3o)
            jts = jnp.maximum(
                jnp.dot(feat, wcls, preferred_element_type=f32) + bcls, 0.0)
            coords = coords + lax.dot_general(
                jts, wxy[w * HQ:(w + 1) * HQ, :],
                (((0,), (0,)), ((), ())), preferred_element_type=f32)
        coords = jnp.maximum(coords + bxy, 0.0)
        o_ref[0] = coords

    return kernel


# --------------------------- host wrappers ---------------------------

def _stem_patches(x_nhwc):
    """(N, 32, 32, 3) -> (N, 32, 216) stem patches: for each stem output pixel the
    9 taps x 3 channels, rows ordered (pixel parity, hq), lanes ordered (wq, tap, cin).
    Pure layout plumbing on a ~12 KB tensor; lets the stem be one matmul."""
    n, hi, wi, ci = x_nhwc.shape
    ho, wo = hi // 2, wi // 2
    hq, wq = ho // 2, wo // 2
    xp = jnp.pad(x_nhwc, ((0, 0), (1, 1), (1, 1), (0, 0)))
    taps = [xp[:, kh:kh + hi:2, kw:kw + wi:2, :]
            for kh in range(3) for kw in range(3)]                  # 9 x (N, ho, wo, ci)
    t = jnp.stack(taps, axis=-2).reshape(n, ho, wo, 9 * ci)
    t = t.reshape(n, hq, 2, wq, 2, 9 * ci).transpose(0, 2, 4, 1, 3, 5)
    return t.reshape(n, 4 * hq, wq * 9 * ci)


def make_forward(dims, offA, offB):
    kernel = _make_fused_kernel(dims, offA, offB)
    J, n_w, n_h = dims['J'], dims['n_w'], dims['n_h']
    HQ = dims['HQ']

    def forward(wa, wb, x_nhwc):
        assert x_nhwc.shape[1] == x_nhwc.shape[2] == 4 * HQ and x_nhwc.shape[3] == 3
        n = x_nhwc.shape[0]
        xcol = _stem_patches(x_nhwc)
        coords = pl.pallas_call(
            kernel,
            out_shape=jax.ShapeDtypeStruct((n, J, n_w + n_h), jnp.float32),
            grid=(n,),
            in_specs=[
                pl.BlockSpec((1,) + xcol.shape[1:], lambda b: (b, 0, 0)),
                pl.BlockSpec(wa.shape, lambda b: (0, 0)),
                pl.BlockSpec(wb.shape, lambda b: (0, 0)),
            ],
            out_specs=pl.BlockSpec((1, J, n_w + n_h), lambda b: (b, 0, 0)),
            compiler_params=pltpu.CompilerParams(
                dimension_semantics=("parallel",)),
        )(xcol, wa, wb)
        return coords[:, :, :n_w], coords[:, :, n_w:]

    return forward


# --------------------------- parameter init & packing ---------------------------

class KeyGen:
    def __init__(self, key):
        self._key = key

    def __call__(self):
        self._key, sub = jax.random.split(self._key)
        return sub


def _kaiming(kg, shape, fan):
    return (jax.random.normal(kg(), shape, jnp.float32) / np.sqrt(fan)).astype(jnp.float32)


def _bn_fold(kg, c, eps):
    # eval-mode BatchNorm with running_mean=0, running_var=1.
    # TODO(synk): when loading trained weights, fold -running_mean*scale into the bias.
    gamma = 1.0 + 0.05 * jax.random.normal(kg(), (c,), jnp.float32)
    beta = 0.05 * jax.random.normal(kg(), (c,), jnp.float32)
    scale = gamma / jnp.sqrt(1.0 + eps)
    return scale, beta


def init_params(kg, cfgs, num_joints, heatmaps_size, output_size):
    p = {}
    c0 = cfgs[0].in_channels
    w = _kaiming(kg, (27, c0), 27)                      # rows = (tap, cin)
    s, b = _bn_fold(kg, c0, 0.01)
    p['stem_w'], p['stem_b'] = w * s[None, :], b

    p['blocks'] = []
    for cnf in cfgs:
        bp = {}
        if cnf.exp_channels != cnf.in_channels:
            w = _kaiming(kg, (cnf.in_channels, cnf.exp_channels), cnf.in_channels)
            s, b = _bn_fold(kg, cnf.exp_channels, 0.01)
            bp['we'], bp['be'] = w * s[None, :], b
        kk = cnf.kernel_size * cnf.kernel_size
        w = _kaiming(kg, (kk, cnf.exp_channels), kk)
        s, b = _bn_fold(kg, cnf.exp_channels, 0.01)
        bp['wdw'], bp['bdw'] = w * s[None, :], b
        if cnf.use_se:
            mip = _make_divisible(cnf.exp_channels // 16, 8)
            w1 = _kaiming(kg, (cnf.exp_channels, mip), cnf.exp_channels)
            b1 = 0.01 * jax.random.normal(kg(), (mip,), jnp.float32)
            s1, beta1 = _bn_fold(kg, mip, 1e-5)
            bp['wca1'], bp['bca1'] = w1 * s1[None, :], b1 * s1 + beta1
            wh = _kaiming(kg, (mip, cnf.exp_channels), mip)
            bh = 0.01 * jax.random.normal(kg(), (cnf.exp_channels,), jnp.float32)
            ww = _kaiming(kg, (mip, cnf.exp_channels), mip)
            bw = 0.01 * jax.random.normal(kg(), (cnf.exp_channels,), jnp.float32)
            bp['wca2'] = jnp.concatenate([wh, ww], axis=1)          # (mip, 2C)
            bp['bca2'] = jnp.concatenate([bh, bw])
        w = _kaiming(kg, (cnf.exp_channels, cnf.out_channels), cnf.exp_channels)
        s, b = _bn_fold(kg, cnf.out_channels, 0.01)
        bp['wpj'], bp['bpj'] = w * s[None, :], b
        p['blocks'].append(bp)

    last_c = cfgs[-1].out_channels
    p['wcls'] = _kaiming(kg, (last_c, num_joints), last_c)
    p['bcls'] = 0.01 * jax.random.normal(kg(), (num_joints,), jnp.float32)
    in_len = heatmaps_size[0] * heatmaps_size[1]
    w_w = _kaiming(kg, (in_len, output_size[0]), in_len)
    b_w = 0.01 * jax.random.normal(kg(), (output_size[0],), jnp.float32)
    w_h = _kaiming(kg, (in_len, output_size[1]), in_len)
    b_h = 0.01 * jax.random.normal(kg(), (output_size[1],), jnp.float32)
    p['wxy'] = jnp.concatenate([w_w, w_h], axis=1)                  # (in_len, n_w+n_h)
    p['bxy'] = jnp.concatenate([b_w, b_h])
    return p


def _pack_slab(entries, lane_multiple=128):
    """Pack named 2-D arrays into one (rows, width) slab: rows padded to 8, lanes
    zero-padded to a shared width (multiple of 128).  Returns (slab, offsets)."""
    width = max(int(np.asarray(a).shape[1]) for _, a in entries)
    width = -(-width // lane_multiple) * lane_multiple
    chunks, offs, n = [], {}, 0
    for name, a in entries:
        a = np.asarray(a, np.float32)
        r, c = a.shape
        rp = (-r) % 8
        buf = np.zeros((r + rp, width), np.float32)
        buf[:r, :c] = a
        offs[name] = (n, r, c)
        chunks.append(buf)
        n += r + rp
    return np.concatenate(chunks, axis=0), offs


def pack_params(params, cfgs, num_joints, heatmaps_size, output_size):
    c1, c2, c3 = cfgs
    assert all(c.kernel_size == 3 and c.dilation == 1 for c in cfgs)
    assert c1.stride == 1 and not c1.use_se and c1.exp_channels == c1.in_channels \
        and c1.in_channels == c1.out_channels
    assert c2.stride == 2 and c2.use_se and c2.exp_channels != c2.in_channels \
        and c2.in_channels == c1.out_channels
    assert c3.stride == 1 and not c3.use_se and c3.in_channels == c3.out_channels \
        and c3.in_channels == c2.out_channels and c3.exp_channels != c3.in_channels
    HQ, WQ = heatmaps_size[1], heatmaps_size[0]
    assert HQ == 8 and WQ == 8                     # lane-dense packing uses 8 wq blocks

    eye = np.eye(WQ, dtype=np.float32)
    asnp = lambda a: np.asarray(a, np.float32)
    bd = lambda w: np.kron(eye, asnp(w))           # 1x1 conv -> block-diag over wq

    def row(v):
        return asnp(v).reshape(1, -1)

    def tile(v):
        a = asnp(v)
        if a.ndim == 1:
            a = a.reshape(1, -1)
        return np.tile(a, (1, WQ))                 # per-channel -> lane-dense (wq, c)

    perm = np.arange(HQ * WQ).reshape(HQ, WQ).T.reshape(-1)   # pixel order -> wq-major
    b1, b2, b3 = params['blocks']

    entA = [
        ('w_stem', bd(params['stem_w'])), ('b_stem', tile(params['stem_b'])),
        ('w_dw1', tile(b1['wdw'])), ('b_dw1', tile(b1['bdw'])),
        ('w_pj1', bd(b1['wpj'])), ('b_pj1', tile(b1['bpj'])),
        ('w_ca1', asnp(b2['wca1'])), ('b_ca1', row(b2['bca1'])),
        ('w_ca2', asnp(b2['wca2'])), ('b_ca2', row(b2['bca2'])),
        ('w_pj2', bd(b2['wpj'])), ('b_pj2', tile(b2['bpj'])),
        ('w_pj3', bd(b3['wpj'])), ('b_pj3', tile(b3['bpj'])),
        ('w_cls', asnp(params['wcls'])), ('b_cls', row(params['bcls'])),
        ('w_xy', asnp(params['wxy'])[perm]), ('b_xy', row(params['bxy'])),
    ]
    entB = [
        ('w_ex2', bd(b2['we'])), ('b_ex2', tile(b2['be'])),
        ('w_dw2', tile(b2['wdw'])), ('b_dw2', tile(b2['bdw'])),
        ('w_ex3', bd(b3['we'])), ('b_ex3', tile(b3['be'])),
        ('w_dw3', tile(b3['wdw'])), ('b_dw3', tile(b3['bdw'])),
    ]
    wa, offA = _pack_slab(entA, 128)
    wb, offB = _pack_slab(entB, 128)

    dims = dict(c0=c1.in_channels, c2e=c2.exp_channels, c2o=c2.out_channels,
                c3e=c3.exp_channels, c3o=c3.out_channels,
                act1=ACT_MAP[c1.activation], act2=ACT_MAP[c2.activation],
                act3=ACT_MAP[c3.activation],
                J=num_joints, n_w=output_size[0], n_h=output_size[1],
                ncoord=output_size[0] + output_size[1], HQ=HQ, WQ=WQ)
    return jnp.asarray(wa), jnp.asarray(wb), offA, offB, dims


# --------------------------- main ---------------------------

if __name__ == "__main__":
    # Small MobilePosNet config: input 32x32 -> stem /2 -> 16x16 -> /2 -> 8x8
    cfgs = [
        BlockConfig(8, 8, 8, 3, 1, 1, 'RE', False),     # no expand, residual
        BlockConfig(8, 24, 16, 3, 2, 1, 'HS', True),    # expand + CA, stride 2
        BlockConfig(16, 32, 16, 3, 1, 1, 'HS', False),  # expand, residual
    ]
    num_joints = 6
    heatmaps_size = [8, 8]      # spatial size of the network output
    output_size = [16, 24]      # (x coordinate length, y coordinate length)

    kg = KeyGen(jax.random.PRNGKey(0))
    params = init_params(kg, cfgs, num_joints, heatmaps_size, output_size)
    wa, wb, offA, offB, dims = pack_params(params, cfgs, num_joints,
                                           heatmaps_size, output_size)

    fwd = jax.jit(make_forward(dims, offA, offB))

    # PyTorch-style NCHW input, transposed once to the kernel's NHWC layout.
    x_nchw = jax.random.normal(kg(), (2, 3, 32, 32), jnp.float32)
    x_nhwc = jnp.transpose(x_nchw, (0, 2, 3, 1))

    out_x, out_y = fwd(wa, wb, x_nhwc)
    jax.block_until_ready((out_x, out_y))

    assert out_x.shape == (2, num_joints, output_size[0])
    assert out_y.shape == (2, num_joints, output_size[1])
    print("KERNEL_OK")
</pallas_src>

<mosaic_0001>
module attributes {stable_mosaic.version = 11 : i64} {
  func.func @kernel(%arg0: i32, %arg1: memref<1x32x216xf32, #tpu.memory_space<vmem>>, %arg2: memref<928x128xf32, #tpu.memory_space<vmem>>, %arg3: memref<256x256xf32, #tpu.memory_space<vmem>>, %arg4: memref<1x6x40xf32, #tpu.memory_space<vmem>>) attributes {dimension_semantics = [#tpu.dimension_semantics<parallel>], iteration_bounds = array<i64: 2>, scalar_prefetch = 0 : i64, scratch_operands = 0 : i64, tpu.core_type = #tpu.core_type<tc>, window_params = [{transform_indices = @transform_0, window_bounds = array<i64: 1, 32, 216>}, {pipeline_mode = #tpu.pipeline_mode<synchronous>, transform_indices = @transform_1, window_bounds = array<i64: 928, 128>}, {pipeline_mode = #tpu.pipeline_mode<synchronous>, transform_indices = @transform_2, window_bounds = array<i64: 256, 256>}, {transform_indices = @transform_3, window_bounds = array<i64: 1, 6, 40>}]} {
    %c0 = arith.constant 0 : index
    %c0_0 = arith.constant 0 : index
    %c0_1 = arith.constant 0 : index
    %0 = vector.load %arg1[%c0, %c0_0, %c0_1] : memref<1x32x216xf32, #tpu.memory_space<vmem>>, vector<1x32x216xf32>
    %1 = vector.shape_cast %0 : vector<1x32x216xf32> to vector<32x216xf32>
    %c0_2 = arith.constant 0 : index
    %c0_3 = arith.constant 0 : index
    %2 = vector.load %arg2[%c0_2, %c0_3] : memref<928x128xf32, #tpu.memory_space<vmem>>, vector<216x64xf32>
    %cst = arith.constant dense<0.000000e+00> : vector<32x64xf32>
    %3 = tpu.matmul %1, %2, %cst {dimension_numbers = #tpu.dot_dimension_numbers<[1], [0], [0], [1], [0, 0, 1, 1], [], []>} : vector<32x216xf32>, vector<216x64xf32>, vector<32x64xf32> -> vector<32x64xf32>
    %c216 = arith.constant 216 : index
    %c0_4 = arith.constant 0 : index
    %4 = vector.load %arg2[%c216, %c0_4] : memref<928x128xf32, #tpu.memory_space<vmem>>, vector<1x64xf32>
    %5 = vector.broadcast %4 : vector<1x64xf32> to vector<32x64xf32>
    %6 = arith.addf %3, %5 : vector<32x64xf32>
    %cst_5 = arith.constant 3.000000e+00 : f32
    %7 = vector.broadcast %cst_5 : f32 to vector<32x64xf32>
    %8 = arith.addf %6, %7 : vector<32x64xf32>
    %cst_6 = arith.constant 0.000000e+00 : f32
    %cst_7 = arith.constant 6.000000e+00 : f32
    %9 = vector.broadcast %cst_6 : f32 to vector<32x64xf32>
    %10 = arith.maximumf %9, %8 : vector<32x64xf32>
    %11 = vector.broadcast %cst_7 : f32 to vector<32x64xf32>
    %12 = arith.minimumf %11, %10 : vector<32x64xf32>
    %13 = arith.mulf %6, %12 : vector<32x64xf32>
    %cst_8 = arith.constant 0.166666672 : f32
    %14 = vector.broadcast %cst_8 : f32 to vector<32x64xf32>
    %15 = arith.mulf %13, %14 : vector<32x64xf32>
    %c224 = arith.constant 224 : index
    %c0_9 = arith.constant 0 : index
    %16 = vector.load %arg2[%c224, %c0_9] : memref<928x128xf32, #tpu.memory_space<vmem>>, vector<9x64xf32>
    %c240 = arith.constant 240 : index
    %c0_10 = arith.constant 0 : index
    %17 = vector.load %arg2[%c240, %c0_10] : memref<928x128xf32, #tpu.memory_space<vmem>>, vector<1x64xf32>
    %18 = vector.extract_strided_slice %15 {offsets = [0, 0], sizes = [8, 64], strides = [1, 1]} : vector<32x64xf32> to vector<8x64xf32>
    %cst_11 = arith.constant 0.000000e+00 : f32
    %19 = vector.broadcast %cst_11 : f32 to vector<8x8xf32>
    %cst_12 = arith.constant 0.000000e+00 : f32
    %20 = vector.broadcast %cst_12 : f32 to vector<8x8xf32>
    %21 = tpu.concatenate %19, %18, %20 in 1 : vector<8x8xf32>, vector<8x64xf32>, vector<8x8xf32> -> vector<8x80xf32>
    %cst_13 = arith.constant 0.000000e+00 : f32
    %22 = vector.broadcast %cst_13 : f32 to vector<1x80xf32>
    %cst_14 = arith.constant 0.000000e+00 : f32
    %23 = vector.broadcast %cst_14 : f32 to vector<1x80xf32>
    %24 = tpu.concatenate %22, %21, %23 in 0 : vector<1x80xf32>, vector<8x80xf32>, vector<1x80xf32> -> vector<10x80xf32>
    %25 = vector.extract_strided_slice %15 {offsets = [8, 0], sizes = [8, 64], strides = [1, 1]} : vector<32x64xf32> to vector<8x64xf32>
    %cst_15 = arith.constant 0.000000e+00 : f32
    %26 = vector.broadcast %cst_15 : f32 to vector<8x8xf32>
    %cst_16 = arith.constant 0.000000e+00 : f32
    %27 = vector.broadcast %cst_16 : f32 to vector<8x8xf32>
    %28 = tpu.concatenate %26, %25, %27 in 1 : vector<8x8xf32>, vector<8x64xf32>, vector<8x8xf32> -> vector<8x80xf32>
    %cst_17 = arith.constant 0.000000e+00 : f32
    %29 = vector.broadcast %cst_17 : f32 to vector<1x80xf32>
    %cst_18 = arith.constant 0.000000e+00 : f32
    %30 = vector.broadcast %cst_18 : f32 to vector<1x80xf32>
    %31 = tpu.concatenate %29, %28, %30 in 0 : vector<1x80xf32>, vector<8x80xf32>, vector<1x80xf32> -> vector<10x80xf32>
    %32 = vector.extract_strided_slice %15 {offsets = [16, 0], sizes = [8, 64], strides = [1, 1]} : vector<32x64xf32> to vector<8x64xf32>
    %cst_19 = arith.constant 0.000000e+00 : f32
    %33 = vector.broadcast %cst_19 : f32 to vector<8x8xf32>
    %cst_20 = arith.constant 0.000000e+00 : f32
    %34 = vector.broadcast %cst_20 : f32 to vector<8x8xf32>
    %35 = tpu.concatenate %33, %32, %34 in 1 : vector<8x8xf32>, vector<8x64xf32>, vector<8x8xf32> -> vector<8x80xf32>
    %cst_21 = arith.constant 0.000000e+00 : f32
    %36 = vector.broadcast %cst_21 : f32 to vector<1x80xf32>
    %cst_22 = arith.constant 0.000000e+00 : f32
    %37 = vector.broadcast %cst_22 : f32 to vector<1x80xf32>
    %38 = tpu.concatenate %36, %35, %37 in 0 : vector<1x80xf32>, vector<8x80xf32>, vector<1x80xf32> -> vector<10x80xf32>
    %39 = vector.extract_strided_slice %15 {offsets = [24, 0], sizes = [8, 64], strides = [1, 1]} : vector<32x64xf32> to vector<8x64xf32>
    %cst_23 = arith.constant 0.000000e+00 : f32
    %40 = vector.broadcast %cst_23 : f32 to vector<8x8xf32>
    %cst_24 = arith.constant 0.000000e+00 : f32
    %41 = vector.broadcast %cst_24 : f32 to vector<8x8xf32>
    %42 = tpu.concatenate %40, %39, %41 in 1 : vector<8x8xf32>, vector<8x64xf32>, vector<8x8xf32> -> vector<8x80xf32>
    %cst_25 = arith.constant 0.000000e+00 : f32
    %43 = vector.broadcast %cst_25 : f32 to vector<1x80xf32>
    %cst_26 = arith.constant 0.000000e+00 : f32
    %44 = vector.broadcast %cst_26 : f32 to vector<1x80xf32>
    %45 = tpu.concatenate %43, %42, %44 in 0 : vector<1x80xf32>, vector<8x80xf32>, vector<1x80xf32> -> vector<10x80xf32>
    %cst_27 = arith.constant 0.000000e+00 : f32
    %46 = vector.broadcast %cst_27 : f32 to vector<8x64xf32>
    %47 = vector.extract_strided_slice %45 {offsets = [0, 0], sizes = [8, 64], strides = [1, 1]} : vector<10x80xf32> to vector<8x64xf32>
    %48 = vector.extract_strided_slice %16 {offsets = [0, 0], sizes = [1, 64], strides = [1, 1]} : vector<9x64xf32> to vector<1x64xf32>
    %49 = vector.broadcast %48 : vector<1x64xf32> to vector<8x64xf32>
    %50 = arith.mulf %47, %49 : vector<8x64xf32>
    %51 = arith.addf %46, %50 : vector<8x64xf32>
    %52 = vector.extract_strided_slice %38 {offsets = [0, 8], sizes = [8, 64], strides = [1, 1]} : vector<10x80xf32> to vector<8x64xf32>
    %53 = vector.extract_strided_slice %16 {offsets = [1, 0], sizes = [1, 64], strides = [1, 1]} : vector<9x64xf32> to vector<1x64xf32>
    %54 = vector.broadcast %53 : vector<1x64xf32> to vector<8x64xf32>
    %55 = arith.mulf %52, %54 : vector<8x64xf32>
    %56 = arith.addf %51, %55 : vector<8x64xf32>
    %57 = vector.extract_strided_slice %45 {offsets = [0, 8], sizes = [8, 64], strides = [1, 1]} : vector<10x80xf32> to vector<8x64xf32>
    %58 = vector.extract_strided_slice %16 {offsets = [2, 0], sizes = [1, 64], strides = [1, 1]} : vector<9x64xf32> to vector<1x64xf32>
    %59 = vector.broadcast %58 : vector<1x64xf32> to vector<8x64xf32>
    %60 = arith.mulf %57, %59 : vector<8x64xf32>
    %61 = arith.addf %56, %60 : vector<8x64xf32>
    %62 = vector.extract_strided_slice %31 {offsets = [1, 0], sizes = [8, 64], strides = [1, 1]} : vector<10x80xf32> to vector<8x64xf32>
    %63 = vector.extract_strided_slice %16 {offsets = [3, 0], sizes = [1, 64], strides = [1, 1]} : vector<9x64xf32> to vector<1x64xf32>
    %64 = vector.broadcast %63 : vector<1x64xf32> to vector<8x64xf32>
    %65 = arith.mulf %62, %64 : vector<8x64xf32>
    %66 = arith.addf %61, %65 : vector<8x64xf32>
    %67 = vector.extract_strided_slice %24 {offsets = [1, 8], sizes = [8, 64], strides = [1, 1]} : vector<10x80xf32> to vector<8x64xf32>
    %68 = vector.extract_strided_slice %16 {offsets = [4, 0], sizes = [1, 64], strides = [1, 1]} : vector<9x64xf32> to vector<1x64xf32>
    %69 = vector.broadcast %68 : vector<1x64xf32> to vector<8x64xf32>
    %70 = arith.mulf %67, %69 : vector<8x64xf32>
    %71 = arith.addf %66, %70 : vector<8x64xf32>
    %72 = vector.extract_strided_slice %31 {offsets = [1, 8], sizes = [8, 64], strides = [1, 1]} : vector<10x80xf32> to vector<8x64xf32>
    %73 = vector.extract_strided_slice %16 {offsets = [5, 0], sizes = [1, 64], strides = [1, 1]} : vector<9x64xf32> to vector<1x64xf32>
    %74 = vector.broadcast %73 : vector<1x64xf32> to vector<8x64xf32>
    %75 = arith.mulf %72, %74 : vector<8x64xf32>
    %76 = arith.addf %71, %75 : vector<8x64xf32>
    %77 = vector.extract_strided_slice %45 {offsets = [1, 0], sizes = [8, 64], strides = [1, 1]} : vector<10x80xf32> to vector<8x64xf32>
    %78 = vector.extract_strided_slice %16 {offsets = [6, 0], sizes = [1, 64], strides = [1, 1]} : vector<9x64xf32> to vector<1x64xf32>
    %79 = vector.broadcast %78 : vector<1x64xf32> to vector<8x64xf32>
    %80 = arith.mulf %77, %79 : vector<8x64xf32>
    %81 = arith.addf %76, %80 : vector<8x64xf32>
    %82 = vector.extract_strided_slice %38 {offsets = [1, 8], sizes = [8, 64], strides = [1, 1]} : vector<10x80xf32> to vector<8x64xf32>
    %83 = vector.extract_strided_slice %16 {offsets = [7, 0], sizes = [1, 64], strides = [1, 1]} : vector<9x64xf32> to vector<1x64xf32>
    %84 = vector.broadcast %83 : vector<1x64xf32> to vector<8x64xf32>
    %85 = arith.mulf %82, %84 : vector<8x64xf32>
    %86 = arith.addf %81, %85 : vector<8x64xf32>
    %87 = vector.extract_strided_slice %45 {offsets = [1, 8], sizes = [8, 64], strides = [1, 1]} : vector<10x80xf32> to vector<8x64xf32>
    %88 = vector.extract_strided_slice %16 {offsets = [8, 0], sizes = [1, 64], strides = [1, 1]} : vector<9x64xf32> to vector<1x64xf32>
    %89 = vector.broadcast %88 : vector<1x64xf32> to vector<8x64xf32>
    %90 = arith.mulf %87, %89 : vector<8x64xf32>
    %91 = arith.addf %86, %90 : vector<8x64xf32>
    %92 = vector.broadcast %17 : vector<1x64xf32> to vector<8x64xf32>
    %93 = arith.addf %91, %92 : vector<8x64xf32>
    %cst_28 = arith.constant 0.000000e+00 : f32
    %94 = vector.broadcast %cst_28 : f32 to vector<8x64xf32>
    %95 = arith.maximumf %93, %94 : vector<8x64xf32>
    %cst_29 = arith.constant 0.000000e+00 : f32
    %96 = vector.broadcast %cst_29 : f32 to vector<8x64xf32>
    %97 = vector.extract_strided_slice %38 {offsets = [0, 8], sizes = [8, 64], strides = [1, 1]} : vector<10x80xf32> to vector<8x64xf32>
    %98 = vector.extract_strided_slice %16 {offsets = [0, 0], sizes = [1, 64], strides = [1, 1]} : vector<9x64xf32> to vector<1x64xf32>
    %99 = vector.broadcast %98 : vector<1x64xf32> to vector<8x64xf32>
    %100 = arith.mulf %97, %99 : vector<8x64xf32>
    %101 = arith.addf %96, %100 : vector<8x64xf32>
    %102 = vector.extract_strided_slice %45 {offsets = [0, 8], sizes = [8, 64], strides = [1, 1]} : vector<10x80xf32> to vector<8x64xf32>
    %103 = vector.extract_strided_slice %16 {offsets = [1, 0], sizes = [1, 64], strides = [1, 1]} : vector<9x64xf32> to vector<1x64xf32>
    %104 = vector.broadcast %103 : vector<1x64xf32> to vector<8x64xf32>
    %105 = arith.mulf %102, %104 : vector<8x64xf32>
    %106 = arith.addf %101, %105 : vector<8x64xf32>
    %107 = vector.extract_strided_slice %38 {offsets = [0, 16], sizes = [8, 64], strides = [1, 1]} : vector<10x80xf32> to vector<8x64xf32>
    %108 = vector.extract_strided_slice %16 {offsets = [2, 0], sizes = [1, 64], strides = [1, 1]} : vector<9x64xf32> to vector<1x64xf32>
    %109 = vector.broadcast %108 : vector<1x64xf32> to vector<8x64xf32>
    %110 = arith.mulf %107, %109 : vector<8x64xf32>
    %111 = arith.addf %106, %110 : vector<8x64xf32>
    %112 = vector.extract_strided_slice %24 {offsets = [1, 8], sizes = [8, 64], strides = [1, 1]} : vector<10x80xf32> to vector<8x64xf32>
    %113 = vector.extract_strided_slice %16 {offsets = [3, 0], sizes = [1, 64], strides = [1, 1]} : vector<9x64xf32> to vector<1x64xf32>
    %114 = vector.broadcast %113 : vector<1x64xf32> to vector<8x64xf32>
    %115 = arith.mulf %112, %114 : vector<8x64xf32>
    %116 = arith.addf %111, %115 : vector<8x64xf32>
    %117 = vector.extract_strided_slice %31 {offsets = [1, 8], sizes = [8, 64], strides = [1, 1]} : vector<10x80xf32> to vector<8x64xf32>
    %118 = vector.extract_strided_slice %16 {offsets = [4, 0], sizes = [1, 64], strides = [1, 1]} : vector<9x64xf32> to vector<1x64xf32>
    %119 = vector.broadcast %118 : vector<1x64xf32> to vector<8x64xf32>
    %120 = arith.mulf %117, %119 : vector<8x64xf32>
    %121 = arith.addf %116, %120 : vector<8x64xf32>
    %122 = vector.extract_strided_slice %24 {offsets = [1, 16], sizes = [8, 64], strides = [1, 1]} : vector<10x80xf32> to vector<8x64xf32>
    %123 = vector.extract_strided_slice %16 {offsets = [5, 0], sizes = [1, 64], strides = [1, 1]} : vector<9x64xf32> to vector<1x64xf32>
    %124 = vector.broadcast %123 : vector<1x64xf32> to vector<8x64xf32>
    %125 = arith.mulf %122, %124 : vector<8x64xf32>
    %126 = arith.addf %121, %125 : vector<8x64xf32>
    %127 = vector.extract_strided_slice %38 {offsets = [1, 8], sizes = [8, 64], strides = [1, 1]} : vector<10x80xf32> to vector<8x64xf32>
    %128 = vector.extract_strided_slice %16 {offsets = [6, 0], sizes = [1, 64], strides = [1, 1]} : vector<9x64xf32> to vector<1x64xf32>
    %129 = vector.broadcast %128 : vector<1x64xf32> to vector<8x64xf32>
    %130 = arith.mulf %127, %129 : vector<8x64xf32>
    %131 = arith.addf %126, %130 : vector<8x64xf32>
    %132 = vector.extract_strided_slice %45 {offsets = [1, 8], sizes = [8, 64], strides = [1, 1]} : vector<10x80xf32> to vector<8x64xf32>
    %133 = vector.extract_strided_slice %16 {offsets = [7, 0], sizes = [1, 64], strides = [1, 1]} : vector<9x64xf32> to vector<1x64xf32>
    %134 = vector.broadcast %133 : vector<1x64xf32> to vector<8x64xf32>
    %135 = arith.mulf %132, %134 : vector<8x64xf32>
    %136 = arith.addf %131, %135 : vector<8x64xf32>
    %137 = vector.extract_strided_slice %38 {offsets = [1, 16], sizes = [8, 64], strides = [1, 1]} : vector<10x80xf32> to vector<8x64xf32>
    %138 = vector.extract_strided_slice %16 {offsets = [8, 0], sizes = [1, 64], strides = [1, 1]} : vector<9x64xf32> to vector<1x64xf32>
    %139 = vector.broadcast %138 : vector<1x64xf32> to vector<8x64xf32>
    %140 = arith.mulf %137, %139 : vector<8x64xf32>
    %141 = arith.addf %136, %140 : vector<8x64xf32>
    %142 = vector.broadcast %17 : vector<1x64xf32> to vector<8x64xf32>
    %143 = arith.addf %141, %142 : vector<8x64xf32>
    %cst_30 = arith.constant 0.000000e+00 : f32
    %144 = vector.broadcast %cst_30 : f32 to vector<8x64xf32>
    %145 = arith.maximumf %143, %144 : vector<8x64xf32>
    %cst_31 = arith.constant 0.000000e+00 : f32
    %146 = vector.broadcast %cst_31 : f32 to vector<8x64xf32>
    %147 = vector.extract_strided_slice %31 {offsets = [1, 0], sizes = [8, 64], strides = [1, 1]} : vector<10x80xf32> to vector<8x64xf32>
    %148 = vector.extract_strided_slice %16 {offsets = [0, 0], sizes = [1, 64], strides = [1, 1]} : vector<9x64xf32> to vector<1x64xf32>
    %149 = vector.broadcast %148 : vector<1x64xf32> to vector<8x64xf32>
    %150 = arith.mulf %147, %149 : vector<8x64xf32>
    %151 = arith.addf %146, %150 : vector<8x64xf32>
    %152 = vector.extract_strided_slice %24 {offsets = [1, 8], sizes = [8, 64], strides = [1, 1]} : vector<10x80xf32> to vector<8x64xf32>
    %153 = vector.extract_strided_slice %16 {offsets = [1, 0], sizes = [1, 64], strides = [1, 1]} : vector<9x64xf32> to vector<1x64xf32>
    %154 = vector.broadcast %153 : vector<1x64xf32> to vector<8x64xf32>
    %155 = arith.mulf %152, %154 : vector<8x64xf32>
    %156 = arith.addf %151, %155 : vector<8x64xf32>
    %157 = vector.extract_strided_slice %31 {offsets = [1, 8], sizes = [8, 64], strides = [1, 1]} : vector<10x80xf32> to vector<8x64xf32>
    %158 = vector.extract_strided_slice %16 {offsets = [2, 0], sizes = [1, 64], strides = [1, 1]} : vector<9x64xf32> to vector<1x64xf32>
    %159 = vector.broadcast %158 : vector<1x64xf32> to vector<8x64xf32>
    %160 = arith.mulf %157, %159 : vector<8x64xf32>
    %161 = arith.addf %156, %160 : vector<8x64xf32>
    %162 = vector.extract_strided_slice %45 {offsets = [1, 0], sizes = [8, 64], strides = [1, 1]} : vector<10x80xf32> to vector<8x64xf32>
    %163 = vector.extract_strided_slice %16 {offsets = [3, 0], sizes = [1, 64], strides = [1, 1]} : vector<9x64xf32> to vector<1x64xf32>
    %164 = vector.broadcast %163 : vector<1x64xf32> to vector<8x64xf32>
    %165 = arith.mulf %162, %164 : vector<8x64xf32>
    %166 = arith.addf %161, %165 : vector<8x64xf32>
    %167 = vector.extract_strided_slice %38 {offsets = [1, 8], sizes = [8, 64], strides = [1, 1]} : vector<10x80xf32> to vector<8x64xf32>
    %168 = vector.extract_strided_slice %16 {offsets = [4, 0], sizes = [1, 64], strides = [1, 1]} : vector<9x64xf32> to vector<1x64xf32>
    %169 = vector.broadcast %168 : vector<1x64xf32> to vector<8x64xf32>
    %170 = arith.mulf %167, %169 : vector<8x64xf32>
    %171 = arith.addf %166, %170 : vector<8x64xf32>
    %172 = vector.extract_strided_slice %45 {offsets = [1, 8], sizes = [8, 64], strides = [1, 1]} : vector<10x80xf32> to vector<8x64xf32>
    %173 = vector.extract_strided_slice %16 {offsets = [5, 0], sizes = [1, 64], strides = [1, 1]} : vector<9x64xf32> to vector<1x64xf32>
    %174 = vector.broadcast %173 : vector<1x64xf32> to vector<8x64xf32>
    %175 = arith.mulf %172, %174 : vector<8x64xf32>
    %176 = arith.addf %171, %175 : vector<8x64xf32>
    %177 = vector.extract_strided_slice %31 {offsets = [2, 0], sizes = [8, 64], strides = [1, 1]} : vector<10x80xf32> to vector<8x64xf32>
    %178 = vector.extract_strided_slice %16 {offsets = [6, 0], sizes = [1, 64], strides = [1, 1]} : vector<9x64xf32> to vector<1x64xf32>
    %179 = vector.broadcast %178 : vector<1x64xf32> to vector<8x64xf32>
    %180 = arith.mulf %177, %179 : vector<8x64xf32>
    %181 = arith.addf %176, %180 : vector<8x64xf32>
    %182 = vector.extract_strided_slice %24 {offsets = [2, 8], sizes = [8, 64], strides = [1, 1]} : vector<10x80xf32> to vector<8x64xf32>
    %183 = vector.extract_strided_slice %16 {offsets = [7, 0], sizes = [1, 64], strides = [1, 1]} : vector<9x64xf32> to vector<1x64xf32>
    %184 = vector.broadcast %183 : vector<1x64xf32> to vector<8x64xf32>
    %185 = arith.mulf %182, %184 : vector<8x64xf32>
    %186 = arith.addf %181, %185 : vector<8x64xf32>
    %187 = vector.extract_strided_slice %31 {offsets = [2, 8], sizes = [8, 64], strides = [1, 1]} : vector<10x80xf32> to vector<8x64xf32>
    %188 = vector.extract_strided_slice %16 {offsets = [8, 0], sizes = [1, 64], strides = [1, 1]} : vector<9x64xf32> to vector<1x64xf32>
    %189 = vector.broadcast %188 : vector<1x64xf32> to vector<8x64xf32>
    %190 = arith.mulf %187, %189 : vector<8x64xf32>
    %191 = arith.addf %186, %190 : vector<8x64xf32>
    %192 = vector.broadcast %17 : vector<1x64xf32> to vector<8x64xf32>
    %193 = arith.addf %191, %192 : vector<8x64xf32>
    %cst_32 = arith.constant 0.000000e+00 : f32
    %194 = vector.broadcast %cst_32 : f32 to vector<8x64xf32>
    %195 = arith.maximumf %193, %194 : vector<8x64xf32>
    %cst_33 = arith.constant 0.000000e+00 : f32
    %196 = vector.broadcast %cst_33 : f32 to vector<8x64xf32>
    %197 = vector.extract_strided_slice %24 {offsets = [1, 8], sizes = [8, 64], strides = [1, 1]} : vector<10x80xf32> to vector<8x64xf32>
    %198 = vector.extract_strided_slice %16 {offsets = [0, 0], sizes = [1, 64], strides = [1, 1]} : vector<9x64xf32> to vector<1x64xf32>
    %199 = vector.broadcast %198 : vector<1x64xf32> to vector<8x64xf32>
    %200 = arith.mulf %197, %199 : vector<8x64xf32>
    %201 = arith.addf %196, %200 : vector<8x64xf32>
    %202 = vector.extract_strided_slice %31 {offsets = [1, 8], sizes = [8, 64], strides = [1, 1]} : vector<10x80xf32> to vector<8x64xf32>
    %203 = vector.extract_strided_slice %16 {offsets = [1, 0], sizes = [1, 64], strides = [1, 1]} : vector<9x64xf32> to vector<1x64xf32>
    %204 = vector.broadcast %203 : vector<1x64xf32> to vector<8x64xf32>
    %205 = arith.mulf %202, %204 : vector<8x64xf32>
    %206 = arith.addf %201, %205 : vector<8x64xf32>
    %207 = vector.extract_strided_slice %24 {offsets = [1, 16], sizes = [8, 64], strides = [1, 1]} : vector<10x80xf32> to vector<8x64xf32>
    %208 = vector.extract_strided_slice %16 {offsets = [2, 0], sizes = [1, 64], strides = [1, 1]} : vector<9x64xf32> to vector<1x64xf32>
    %209 = vector.broadcast %208 : vector<1x64xf32> to vector<8x64xf32>
    %210 = arith.mulf %207, %209 : vector<8x64xf32>
    %211 = arith.addf %206, %210 : vector<8x64xf32>
    %212 = vector.extract_strided_slice %38 {offsets = [1, 8], sizes = [8, 64], strides = [1, 1]} : vector<10x80xf32> to vector<8x64xf32>
    %213 = vector.extract_strided_slice %16 {offsets = [3, 0], sizes = [1, 64], strides = [1, 1]} : vector<9x64xf32> to vector<1x64xf32>
    %214 = vector.broadcast %213 : vector<1x64xf32> to vector<8x64xf32>
    %215 = arith.mulf %212, %214 : vector<8x64xf32>
    %216 = arith.addf %211, %215 : vector<8x64xf32>
    %217 = vector.extract_strided_slice %45 {offsets = [1, 8], sizes = [8, 64], strides = [1, 1]} : vector<10x80xf32> to vector<8x64xf32>
    %218 = vector.extract_strided_slice %16 {offsets = [4, 0], sizes = [1, 64], strides = [1, 1]} : vector<9x64xf32> to vector<1x64xf32>
    %219 = vector.broadcast %218 : vector<1x64xf32> to vector<8x64xf32>
    %220 = arith.mulf %217, %219 : vector<8x64xf32>
    %221 = arith.addf %216, %220 : vector<8x64xf32>
    %222 = vector.extract_strided_slice %38 {offsets = [1, 16], sizes = [8, 64], strides = [1, 1]} : vector<10x80xf32> to vector<8x64xf32>
    %223 = vector.extract_strided_slice %16 {offsets = [5, 0], sizes = [1, 64], strides = [1, 1]} : vector<9x64xf32> to vector<1x64xf32>
    %224 = vector.broadcast %223 : vector<1x64xf32> to vector<8x64xf32>
    %225 = arith.mulf %222, %224 : vector<8x64xf32>
    %226 = arith.addf %221, %225 : vector<8x64xf32>
    %227 = vector.extract_strided_slice %24 {offsets = [2, 8], sizes = [8, 64], strides = [1, 1]} : vector<10x80xf32> to vector<8x64xf32>
    %228 = vector.extract_strided_slice %16 {offsets = [6, 0], sizes = [1, 64], strides = [1, 1]} : vector<9x64xf32> to vector<1x64xf32>
    %229 = vector.broadcast %228 : vector<1x64xf32> to vector<8x64xf32>
    %230 = arith.mulf %227, %229 : vector<8x64xf32>
    %231 = arith.addf %226, %230 : vector<8x64xf32>
    %232 = vector.extract_strided_slice %31 {offsets = [2, 8], sizes = [8, 64], strides = [1, 1]} : vector<10x80xf32> to vector<8x64xf32>
    %233 = vector.extract_strided_slice %16 {offsets = [7, 0], sizes = [1, 64], strides = [1, 1]} : vector<9x64xf32> to vector<1x64xf32>
    %234 = vector.broadcast %233 : vector<1x64xf32> to vector<8x64xf32>
    %235 = arith.mulf %232, %234 : vector<8x64xf32>
    %236 = arith.addf %231, %235 : vector<8x64xf32>
    %237 = vector.extract_strided_slice %24 {offsets = [2, 16], sizes = [8, 64], strides = [1, 1]} : vector<10x80xf32> to vector<8x64xf32>
    %238 = vector.extract_strided_slice %16 {offsets = [8, 0], sizes = [1, 64], strides = [1, 1]} : vector<9x64xf32> to vector<1x64xf32>
    %239 = vector.broadcast %238 : vector<1x64xf32> to vector<8x64xf32>
    %240 = arith.mulf %237, %239 : vector<8x64xf32>
    %241 = arith.addf %236, %240 : vector<8x64xf32>
    %242 = vector.broadcast %17 : vector<1x64xf32> to vector<8x64xf32>
    %243 = arith.addf %241, %242 : vector<8x64xf32>
    %cst_34 = arith.constant 0.000000e+00 : f32
    %244 = vector.broadcast %cst_34 : f32 to vector<8x64xf32>
    %245 = arith.maximumf %243, %244 : vector<8x64xf32>
    %246 = tpu.concatenate %95, %145, %195, %245 in 0 : vector<8x64xf32>, vector<8x64xf32>, vector<8x64xf32>, vector<8x64xf32> -> vector<32x64xf32>
    %c248 = arith.constant 248 : index
    %c0_35 = arith.constant 0 : index
    %247 = vector.load %arg2[%c248, %c0_35] : memref<928x128xf32, #tpu.memory_space<vmem>>, vector<64x64xf32>
    %cst_36 = arith.constant dense<0.000000e+00> : vector<32x64xf32>
    %248 = tpu.matmul %246, %247, %cst_36 {dimension_numbers = #tpu.dot_dimension_numbers<[1], [0], [0], [1], [0, 0, 1, 1], [], []>} : vector<32x64xf32>, vector<64x64xf32>, vector<32x64xf32> -> vector<32x64xf32>
    %c312 = arith.constant 312 : index
    %c0_37 = arith.constant 0 : index
    %249 = vector.load %arg2[%c312, %c0_37] : memref<928x128xf32, #tpu.memory_space<vmem>>, vector<1x64xf32>
    %250 = vector.broadcast %249 : vector<1x64xf32> to vector<32x64xf32>
    %251 = arith.addf %248, %250 : vector<32x64xf32>
    %252 = arith.addf %251, %15 : vector<32x64xf32>
    %c0_38 = arith.constant 0 : index
    %c0_39 = arith.constant 0 : index
    %253 = vector.load %arg3[%c0_38, %c0_39] : memref<256x256xf32, #tpu.memory_space<vmem>>, vector<64x192xf32>
    %cst_40 = arith.constant dense<0.000000e+00> : vector<32x192xf32>
    %254 = tpu.matmul %252, %253, %cst_40 {dimension_numbers = #tpu.dot_dimension_numbers<[1], [0], [0], [1], [0, 0, 1, 1], [], []>} : vector<32x64xf32>, vector<64x192xf32>, vector<32x192xf32> -> vector<32x192xf32>
    %c64 = arith.constant 64 : index
    %c0_41 = arith.constant 0 : index
    %255 = vector.load %arg3[%c64, %c0_41] : memref<256x256xf32, #tpu.memory_space<vmem>>, vector<1x192xf32>
    %256 = vector.broadcast %255 : vector<1x192xf32> to vector<32x192xf32>
    %257 = arith.addf %254, %256 : vector<32x192xf32>
    %cst_42 = arith.constant 3.000000e+00 : f32
    %258 = vector.broadcast %cst_42 : f32 to vector<32x192xf32>
    %259 = arith.addf %257, %258 : vector<32x192xf32>
    %cst_43 = arith.constant 0.000000e+00 : f32
    %cst_44 = arith.constant 6.000000e+00 : f32
    %260 = vector.broadcast %cst_43 : f32 to vector<32x192xf32>
    %261 = arith.maximumf %260, %259 : vector<32x192xf32>
    %262 = vector.broadcast %cst_44 : f32 to vector<32x192xf32>
    %263 = arith.minimumf %262, %261 : vector<32x192xf32>
    %264 = arith.mulf %257, %263 : vector<32x192xf32>
    %cst_45 = arith.constant 0.166666672 : f32
    %265 = vector.broadcast %cst_45 : f32 to vector<32x192xf32>
    %266 = arith.mulf %264, %265 : vector<32x192xf32>
    %c72 = arith.constant 72 : index
    %c0_46 = arith.constant 0 : index
    %267 = vector.load %arg3[%c72, %c0_46] : memref<256x256xf32, #tpu.memory_space<vmem>>, vector<9x192xf32>
    %268 = vector.extract_strided_slice %266 {offsets = [0, 0], sizes = [8, 192], strides = [1, 1]} : vector<32x192xf32> to vector<8x192xf32>
    %cst_47 = arith.constant 0.000000e+00 : f32
    %269 = vector.broadcast %cst_47 : f32 to vector<8x24xf32>
    %270 = tpu.concatenate %269, %268 in 1 : vector<8x24xf32>, vector<8x192xf32> -> vector<8x216xf32>
    %cst_48 = arith.constant 0.000000e+00 : f32
    %271 = vector.broadcast %cst_48 : f32 to vector<1x216xf32>
    %272 = tpu.concatenate %271, %270 in 0 : vector<1x216xf32>, vector<8x216xf32> -> vector<9x216xf32>
    %273 = vector.extract_strided_slice %266 {offsets = [8, 0], sizes = [8, 192], strides = [1, 1]} : vector<32x192xf32> to vector<8x192xf32>
    %cst_49 = arith.constant 0.000000e+00 : f32
    %274 = vector.broadcast %cst_49 : f32 to vector<8x24xf32>
    %275 = tpu.concatenate %274, %273 in 1 : vector<8x24xf32>, vector<8x192xf32> -> vector<8x216xf32>
    %cst_50 = arith.constant 0.000000e+00 : f32
    %276 = vector.broadcast %cst_50 : f32 to vector<1x216xf32>
    %277 = tpu.concatenate %276, %275 in 0 : vector<1x216xf32>, vector<8x216xf32> -> vector<9x216xf32>
    %278 = vector.extract_strided_slice %266 {offsets = [16, 0], sizes = [8, 192], strides = [1, 1]} : vector<32x192xf32> to vector<8x192xf32>
    %cst_51 = arith.constant 0.000000e+00 : f32
    %279 = vector.broadcast %cst_51 : f32 to vector<8x24xf32>
    %280 = tpu.concatenate %279, %278 in 1 : vector<8x24xf32>, vector<8x192xf32> -> vector<8x216xf32>
    %cst_52 = arith.constant 0.000000e+00 : f32
    %281 = vector.broadcast %cst_52 : f32 to vector<1x216xf32>
    %282 = tpu.concatenate %281, %280 in 0 : vector<1x216xf32>, vector<8x216xf32> -> vector<9x216xf32>
    %283 = vector.extract_strided_slice %266 {offsets = [24, 0], sizes = [8, 192], strides = [1, 1]} : vector<32x192xf32> to vector<8x192xf32>
    %cst_53 = arith.constant 0.000000e+00 : f32
    %284 = vector.broadcast %cst_53 : f32 to vector<8x24xf32>
    %285 = tpu.concatenate %284, %283 in 1 : vector<8x24xf32>, vector<8x192xf32> -> vector<8x216xf32>
    %cst_54 = arith.constant 0.000000e+00 : f32
    %286 = vector.broadcast %cst_54 : f32 to vector<1x216xf32>
    %287 = tpu.concatenate %286, %285 in 0 : vector<1x216xf32>, vector<8x216xf32> -> vector<9x216xf32>
    %cst_55 = arith.constant 0.000000e+00 : f32
    %288 = vector.broadcast %cst_55 : f32 to vector<8x192xf32>
    %289 = vector.extract_strided_slice %287 {offsets = [0, 0], sizes = [8, 192], strides = [1, 1]} : vector<9x216xf32> to vector<8x192xf32>
    %290 = vector.extract_strided_slice %267 {offsets = [0, 0], sizes = [1, 192], strides = [1, 1]} : vector<9x192xf32> to vector<1x192xf32>
    %291 = vector.broadcast %290 : vector<1x192xf32> to vector<8x192xf32>
    %292 = arith.mulf %289, %291 : vector<8x192xf32>
    %293 = arith.addf %288, %292 : vector<8x192xf32>
    %294 = vector.extract_strided_slice %282 {offsets = [0, 24], sizes = [8, 192], strides = [1, 1]} : vector<9x216xf32> to vector<8x192xf32>
    %295 = vector.extract_strided_slice %267 {offsets = [1, 0], sizes = [1, 192], strides = [1, 1]} : vector<9x192xf32> to vector<1x192xf32>
    %296 = vector.broadcast %295 : vector<1x192xf32> to vector<8x192xf32>
    %297 = arith.mulf %294, %296 : vector<8x192xf32>
    %298 = arith.addf %293, %297 : vector<8x192xf32>
    %299 = vector.extract_strided_slice %287 {offsets = [0, 24], sizes = [8, 192], strides = [1, 1]} : vector<9x216xf32> to vector<8x192xf32>
    %300 = vector.extract_strided_slice %267 {offsets = [2, 0], sizes = [1, 192], strides = [1, 1]} : vector<9x192xf32> to vector<1x192xf32>
    %301 = vector.broadcast %300 : vector<1x192xf32> to vector<8x192xf32>
    %302 = arith.mulf %299, %301 : vector<8x192xf32>
    %303 = arith.addf %298, %302 : vector<8x192xf32>
    %304 = vector.extract_strided_slice %277 {offsets = [1, 0], sizes = [8, 192], strides = [1, 1]} : vector<9x216xf32> to vector<8x192xf32>
    %305 = vector.extract_strided_slice %267 {offsets = [3, 0], sizes = [1, 192], strides = [1, 1]} : vector<9x192xf32> to vector<1x192xf32>
    %306 = vector.broadcast %305 : vector<1x192xf32> to vector<8x192xf32>
    %307 = arith.mulf %304, %306 : vector<8x192xf32>
    %308 = arith.addf %303, %307 : vector<8x192xf32>
    %309 = vector.extract_strided_slice %272 {offsets = [1, 24], sizes = [8, 192], strides = [1, 1]} : vector<9x216xf32> to vector<8x192xf32>
    %310 = vector.extract_strided_slice %267 {offsets = [4, 0], sizes = [1, 192], strides = [1, 1]} : vector<9x192xf32> to vector<1x192xf32>
    %311 = vector.broadcast %310 : vector<1x192xf32> to vector<8x192xf32>
    %312 = arith.mulf %309, %311 : vector<8x192xf32>
    %313 = arith.addf %308, %312 : vector<8x192xf32>
    %314 = vector.extract_strided_slice %277 {offsets = [1, 24], sizes = [8, 192], strides = [1, 1]} : vector<9x216xf32> to vector<8x192xf32>
    %315 = vector.extract_strided_slice %267 {offsets = [5, 0], sizes = [1, 192], strides = [1, 1]} : vector<9x192xf32> to vector<1x192xf32>
    %316 = vector.broadcast %315 : vector<1x192xf32> to vector<8x192xf32>
    %317 = arith.mulf %314, %316 : vector<8x192xf32>
    %318 = arith.addf %313, %317 : vector<8x192xf32>
    %319 = vector.extract_strided_slice %287 {offsets = [1, 0], sizes = [8, 192], strides = [1, 1]} : vector<9x216xf32> to vector<8x192xf32>
    %320 = vector.extract_strided_slice %267 {offsets = [6, 0], sizes = [1, 192], strides = [1, 1]} : vector<9x192xf32> to vector<1x192xf32>
    %321 = vector.broadcast %320 : vector<1x192xf32> to vector<8x192xf32>
    %322 = arith.mulf %319, %321 : vector<8x192xf32>
    %323 = arith.addf %318, %322 : vector<8x192xf32>
    %324 = vector.extract_strided_slice %282 {offsets = [1, 24], sizes = [8, 192], strides = [1, 1]} : vector<9x216xf32> to vector<8x192xf32>
    %325 = vector.extract_strided_slice %267 {offsets = [7, 0], sizes = [1, 192], strides = [1, 1]} : vector<9x192xf32> to vector<1x192xf32>
    %326 = vector.broadcast %325 : vector<1x192xf32> to vector<8x192xf32>
    %327 = arith.mulf %324, %326 : vector<8x192xf32>
    %328 = arith.addf %323, %327 : vector<8x192xf32>
    %329 = vector.extract_strided_slice %287 {offsets = [1, 24], sizes = [8, 192], strides = [1, 1]} : vector<9x216xf32> to vector<8x192xf32>
    %330 = vector.extract_strided_slice %267 {offsets = [8, 0], sizes = [1, 192], strides = [1, 1]} : vector<9x192xf32> to vector<1x192xf32>
    %331 = vector.broadcast %330 : vector<1x192xf32> to vector<8x192xf32>
    %332 = arith.mulf %329, %331 : vector<8x192xf32>
    %333 = arith.addf %328, %332 : vector<8x192xf32>
    %c88 = arith.constant 88 : index
    %c0_56 = arith.constant 0 : index
    %334 = vector.load %arg3[%c88, %c0_56] : memref<256x256xf32, #tpu.memory_space<vmem>>, vector<1x192xf32>
    %335 = vector.broadcast %334 : vector<1x192xf32> to vector<8x192xf32>
    %336 = arith.addf %333, %335 : vector<8x192xf32>
    %cst_57 = arith.constant 3.000000e+00 : f32
    %337 = vector.broadcast %cst_57 : f32 to vector<8x192xf32>
    %338 = arith.addf %336, %337 : vector<8x192xf32>
    %cst_58 = arith.constant 0.000000e+00 : f32
    %cst_59 = arith.constant 6.000000e+00 : f32
    %339 = vector.broadcast %cst_58 : f32 to vector<8x192xf32>
    %340 = arith.maximumf %339, %338 : vector<8x192xf32>
    %341 = vector.broadcast %cst_59 : f32 to vector<8x192xf32>
    %342 = arith.minimumf %341, %340 : vector<8x192xf32>
    %343 = arith.mulf %336, %342 : vector<8x192xf32>
    %cst_60 = arith.constant 0.166666672 : f32
    %344 = vector.broadcast %cst_60 : f32 to vector<8x192xf32>
    %345 = arith.mulf %343, %344 : vector<8x192xf32>
    %346 = vector.extract_strided_slice %345 {offsets = [0, 0], sizes = [8, 24], strides = [1, 1]} : vector<8x192xf32> to vector<8x24xf32>
    %347 = vector.extract_strided_slice %345 {offsets = [0, 24], sizes = [8, 24], strides = [1, 1]} : vector<8x192xf32> to vector<8x24xf32>
    %348 = vector.extract_strided_slice %345 {offsets = [0, 48], sizes = [8, 24], strides = [1, 1]} : vector<8x192xf32> to vector<8x24xf32>
    %349 = vector.extract_strided_slice %345 {offsets = [0, 72], sizes = [8, 24], strides = [1, 1]} : vector<8x192xf32> to vector<8x24xf32>
    %350 = vector.extract_strided_slice %345 {offsets = [0, 96], sizes = [8, 24], strides = [1, 1]} : vector<8x192xf32> to vector<8x24xf32>
    %351 = vector.extract_strided_slice %345 {offsets = [0, 120], sizes = [8, 24], strides = [1, 1]} : vector<8x192xf32> to vector<8x24xf32>
    %352 = vector.extract_strided_slice %345 {offsets = [0, 144], sizes = [8, 24], strides = [1, 1]} : vector<8x192xf32> to vector<8x24xf32>
    %353 = vector.extract_strided_slice %345 {offsets = [0, 168], sizes = [8, 24], strides = [1, 1]} : vector<8x192xf32> to vector<8x24xf32>
    %354 = arith.addf %346, %347 : vector<8x24xf32>
    %355 = arith.addf %354, %348 : vector<8x24xf32>
    %356 = arith.addf %355, %349 : vector<8x24xf32>
    %357 = arith.addf %356, %350 : vector<8x24xf32>
    %358 = arith.addf %357, %351 : vector<8x24xf32>
    %359 = arith.addf %358, %352 : vector<8x24xf32>
    %360 = arith.addf %359, %353 : vector<8x24xf32>
    %cst_61 = arith.constant 1.250000e-01 : f32
    %361 = vector.broadcast %cst_61 : f32 to vector<8x24xf32>
    %362 = arith.mulf %360, %361 : vector<8x24xf32>
    %cst_62 = arith.constant dense<0.000000e+00> : vector<24xf32>
    %363 = vector.multi_reduction <add>, %346, %cst_62 [0] : vector<8x24xf32> to vector<24xf32>
    %364 = vector.shape_cast %363 : vector<24xf32> to vector<1x24xf32>
    %cst_63 = arith.constant 8.000000e+00 : f32
    %365 = vector.broadcast %cst_63 : f32 to vector<1x24xf32>
    %366 = arith.divf %364, %365 : vector<1x24xf32>
    %cst_64 = arith.constant dense<0.000000e+00> : vector<24xf32>
    %367 = vector.multi_reduction <add>, %347, %cst_64 [0] : vector<8x24xf32> to vector<24xf32>
    %368 = vector.shape_cast %367 : vector<24xf32> to vector<1x24xf32>
    %cst_65 = arith.constant 8.000000e+00 : f32
    %369 = vector.broadcast %cst_65 : f32 to vector<1x24xf32>
    %370 = arith.divf %368, %369 : vector<1x24xf32>
    %cst_66 = arith.constant dense<0.000000e+00> : vector<24xf32>
    %371 = vector.multi_reduction <add>, %348, %cst_66 [0] : vector<8x24xf32> to vector<24xf32>
    %372 = vector.shape_cast %371 : vector<24xf32> to vector<1x24xf32>
    %cst_67 = arith.constant 8.000000e+00 : f32
    %373 = vector.broadcast %cst_67 : f32 to vector<1x24xf32>
    %374 = arith.divf %372, %373 : vector<1x24xf32>
    %cst_68 = arith.constant dense<0.000000e+00> : vector<24xf32>
    %375 = vector.multi_reduction <add>, %349, %cst_68 [0] : vector<8x24xf32> to vector<24xf32>
    %376 = vector.shape_cast %375 : vector<24xf32> to vector<1x24xf32>
    %cst_69 = arith.constant 8.000000e+00 : f32
    %377 = vector.broadcast %cst_69 : f32 to vector<1x24xf32>
    %378 = arith.divf %376, %377 : vector<1x24xf32>
    %cst_70 = arith.constant dense<0.000000e+00> : vector<24xf32>
    %379 = vector.multi_reduction <add>, %350, %cst_70 [0] : vector<8x24xf32> to vector<24xf32>
    %380 = vector.shape_cast %379 : vector<24xf32> to vector<1x24xf32>
    %cst_71 = arith.constant 8.000000e+00 : f32
    %381 = vector.broadcast %cst_71 : f32 to vector<1x24xf32>
    %382 = arith.divf %380, %381 : vector<1x24xf32>
    %cst_72 = arith.constant dense<0.000000e+00> : vector<24xf32>
    %383 = vector.multi_reduction <add>, %351, %cst_72 [0] : vector<8x24xf32> to vector<24xf32>
    %384 = vector.shape_cast %383 : vector<24xf32> to vector<1x24xf32>
    %cst_73 = arith.constant 8.000000e+00 : f32
    %385 = vector.broadcast %cst_73 : f32 to vector<1x24xf32>
    %386 = arith.divf %384, %385 : vector<1x24xf32>
    %cst_74 = arith.constant dense<0.000000e+00> : vector<24xf32>
    %387 = vector.multi_reduction <add>, %352, %cst_74 [0] : vector<8x24xf32> to vector<24xf32>
    %388 = vector.shape_cast %387 : vector<24xf32> to vector<1x24xf32>
    %cst_75 = arith.constant 8.000000e+00 : f32
    %389 = vector.broadcast %cst_75 : f32 to vector<1x24xf32>
    %390 = arith.divf %388, %389 : vector<1x24xf32>
    %cst_76 = arith.constant dense<0.000000e+00> : vector<24xf32>
    %391 = vector.multi_reduction <add>, %353, %cst_76 [0] : vector<8x24xf32> to vector<24xf32>
    %392 = vector.shape_cast %391 : vector<24xf32> to vector<1x24xf32>
    %cst_77 = arith.constant 8.000000e+00 : f32
    %393 = vector.broadcast %cst_77 : f32 to vector<1x24xf32>
    %394 = arith.divf %392, %393 : vector<1x24xf32>
    %395 = tpu.concatenate %366, %370, %374, %378, %382, %386, %390, %394 in 0 : vector<1x24xf32>, vector<1x24xf32>, vector<1x24xf32>, vector<1x24xf32>, vector<1x24xf32>, vector<1x24xf32>, vector<1x24xf32>, vector<1x24xf32> -> vector<8x24xf32>
    %396 = tpu.concatenate %362, %395 in 0 : vector<8x24xf32>, vector<8x24xf32> -> vector<16x24xf32>
    %c320 = arith.constant 320 : index
    %c0_78 = arith.constant 0 : index
    %397 = vector.load %arg2[%c320, %c0_78] : memref<928x128xf32, #tpu.memory_space<vmem>>, vector<24x8xf32>
    %cst_79 = arith.constant dense<0.000000e+00> : vector<16x8xf32>
    %398 = tpu.matmul %396, %397, %cst_79 {dimension_numbers = #tpu.dot_dimension_numbers<[1], [0], [0], [1], [0, 0, 1, 1], [], []>} : vector<16x24xf32>, vector<24x8xf32>, vector<16x8xf32> -> vector<16x8xf32>
    %c344 = arith.constant 344 : index
    %c0_80 = arith.constant 0 : index
    %399 = vector.load %arg2[%c344, %c0_80] : memref<928x128xf32, #tpu.memory_space<vmem>>, vector<1x8xf32>
    %400 = vector.broadcast %399 : vector<1x8xf32> to vector<16x8xf32>
    %401 = arith.addf %398, %400 : vector<16x8xf32>
    %cst_81 = arith.constant 3.000000e+00 : f32
    %402 = vector.broadcast %cst_81 : f32 to vector<16x8xf32>
    %403 = arith.addf %401, %402 : vector<16x8xf32>
    %cst_82 = arith.constant 0.000000e+00 : f32
    %cst_83 = arith.constant 6.000000e+00 : f32
    %404 = vector.broadcast %cst_82 : f32 to vector<16x8xf32>
    %405 = arith.maximumf %404, %403 : vector<16x8xf32>
    %406 = vector.broadcast %cst_83 : f32 to vector<16x8xf32>
    %407 = arith.minimumf %406, %405 : vector<16x8xf32>
    %408 = arith.mulf %401, %407 : vector<16x8xf32>
    %cst_84 = arith.constant 0.166666672 : f32
    %409 = vector.broadcast %cst_84 : f32 to vector<16x8xf32>
    %410 = arith.mulf %408, %409 : vector<16x8xf32>
    %c352 = arith.constant 352 : index
    %c0_85 = arith.constant 0 : index
    %411 = vector.load %arg2[%c352, %c0_85] : memref<928x128xf32, #tpu.memory_space<vmem>>, vector<8x48xf32>
    %cst_86 = arith.constant dense<0.000000e+00> : vector<16x48xf32>
    %412 = tpu.matmul %410, %411, %cst_86 {dimension_numbers = #tpu.dot_dimension_numbers<[1], [0], [0], [1], [0, 0, 1, 1], [], []>} : vector<16x8xf32>, vector<8x48xf32>, vector<16x48xf32> -> vector<16x48xf32>
    %c360 = arith.constant 360 : index
    %c0_87 = arith.constant 0 : index
    %413 = vector.load %arg2[%c360, %c0_87] : memref<928x128xf32, #tpu.memory_space<vmem>>, vector<1x48xf32>
    %414 = vector.broadcast %413 : vector<1x48xf32> to vector<16x48xf32>
    %415 = arith.addf %412, %414 : vector<16x48xf32>
    %cst_88 = arith.constant 0.000000e+00 : f32
    %416 = vector.broadcast %cst_88 : f32 to vector<16x48xf32>
    %417 = arith.subf %416, %415 : vector<16x48xf32>
    %418 = math.exp %417 : vector<16x48xf32>
    %cst_89 = arith.constant 1.000000e+00 : f32
    %419 = vector.broadcast %cst_89 : f32 to vector<16x48xf32>
    %420 = arith.addf %419, %418 : vector<16x48xf32>
    %cst_90 = arith.constant 1.000000e+00 : f32
    %421 = vector.broadcast %cst_90 : f32 to vector<16x48xf32>
    %422 = arith.divf %421, %420 : vector<16x48xf32>
    %423 = vector.extract_strided_slice %422 {offsets = [0, 0], sizes = [8, 24], strides = [1, 1]} : vector<16x48xf32> to vector<8x24xf32>
    %424 = vector.extract_strided_slice %422 {offsets = [8, 24], sizes = [8, 24], strides = [1, 1]} : vector<16x48xf32> to vector<8x24xf32>
    %425 = tpu.concatenate %423, %423, %423, %423, %423, %423, %423, %423 in 1 : vector<8x24xf32>, vector<8x24xf32>, vector<8x24xf32>, vector<8x24xf32>, vector<8x24xf32>, vector<8x24xf32>, vector<8x24xf32>, vector<8x24xf32> -> vector<8x192xf32>
    %426 = vector.extract_strided_slice %424 {offsets = [0, 0], sizes = [1, 24], strides = [1, 1]} : vector<8x24xf32> to vector<1x24xf32>
    %427 = vector.extract_strided_slice %424 {offsets = [1, 0], sizes = [1, 24], strides = [1, 1]} : vector<8x24xf32> to vector<1x24xf32>
    %428 = vector.extract_strided_slice %424 {offsets = [2, 0], sizes = [1, 24], strides = [1, 1]} : vector<8x24xf32> to vector<1x24xf32>
    %429 = vector.extract_strided_slice %424 {offsets = [3, 0], sizes = [1, 24], strides = [1, 1]} : vector<8x24xf32> to vector<1x24xf32>
    %430 = vector.extract_strided_slice %424 {offsets = [4, 0], sizes = [1, 24], strides = [1, 1]} : vector<8x24xf32> to vector<1x24xf32>
    %431 = vector.extract_strided_slice %424 {offsets = [5, 0], sizes = [1, 24], strides = [1, 1]} : vector<8x24xf32> to vector<1x24xf32>
    %432 = vector.extract_strided_slice %424 {offsets = [6, 0], sizes = [1, 24], strides = [1, 1]} : vector<8x24xf32> to vector<1x24xf32>
    %433 = vector.extract_strided_slice %424 {offsets = [7, 0], sizes = [1, 24], strides = [1, 1]} : vector<8x24xf32> to vector<1x24xf32>
    %434 = tpu.concatenate %426, %427, %428, %429, %430, %431, %432, %433 in 1 : vector<1x24xf32>, vector<1x24xf32>, vector<1x24xf32>, vector<1x24xf32>, vector<1x24xf32>, vector<1x24xf32>, vector<1x24xf32>, vector<1x24xf32> -> vector<1x192xf32>
    %435 = arith.mulf %345, %425 : vector<8x192xf32>
    %436 = vector.broadcast %434 : vector<1x192xf32> to vector<8x192xf32>
    %437 = arith.mulf %435, %436 : vector<8x192xf32>
    %c368 = arith.constant 368 : index
    %c0_91 = arith.constant 0 : index
    %438 = vector.load %arg2[%c368, %c0_91] : memref<928x128xf32, #tpu.memory_space<vmem>>, vector<192x128xf32>
    %cst_92 = arith.constant dense<0.000000e+00> : vector<8x128xf32>
    %439 = tpu.matmul %437, %438, %cst_92 {dimension_numbers = #tpu.dot_dimension_numbers<[1], [0], [0], [1], [0, 0, 1, 1], [], []>} : vector<8x192xf32>, vector<192x128xf32>, vector<8x128xf32> -> vector<8x128xf32>
    %c560 = arith.constant 560 : index
    %c0_93 = arith.constant 0 : index
    %440 = vector.load %arg2[%c560, %c0_93] : memref<928x128xf32, #tpu.memory_space<vmem>>, vector<1x128xf32>
    %441 = vector.broadcast %440 : vector<1x128xf32> to vector<8x128xf32>
    %442 = arith.addf %439, %441 : vector<8x128xf32>
    %c96 = arith.constant 96 : index
    %c0_94 = arith.constant 0 : index
    %443 = vector.load %arg3[%c96, %c0_94] : memref<256x256xf32, #tpu.memory_space<vmem>>, vector<128x256xf32>
    %cst_95 = arith.constant dense<0.000000e+00> : vector<8x256xf32>
    %444 = tpu.matmul %442, %443, %cst_95 {dimension_numbers = #tpu.dot_dimension_numbers<[1], [0], [0], [1], [0, 0, 1, 1], [], []>} : vector<8x128xf32>, vector<128x256xf32>, vector<8x256xf32> -> vector<8x256xf32>
    %c224_96 = arith.constant 224 : index
    %c0_97 = arith.constant 0 : index
    %445 = vector.load %arg3[%c224_96, %c0_97] : memref<256x256xf32, #tpu.memory_space<vmem>>, vector<1x256xf32>
    %446 = vector.broadcast %445 : vector<1x256xf32> to vector<8x256xf32>
    %447 = arith.addf %444, %446 : vector<8x256xf32>
    %cst_98 = arith.constant 3.000000e+00 : f32
    %448 = vector.broadcast %cst_98 : f32 to vector<8x256xf32>
    %449 = arith.addf %447, %448 : vector<8x256xf32>
    %cst_99 = arith.constant 0.000000e+00 : f32
    %cst_100 = arith.constant 6.000000e+00 : f32
    %450 = vector.broadcast %cst_99 : f32 to vector<8x256xf32>
    %451 = arith.maximumf %450, %449 : vector<8x256xf32>
    %452 = vector.broadcast %cst_100 : f32 to vector<8x256xf32>
    %453 = arith.minimumf %452, %451 : vector<8x256xf32>
    %454 = arith.mulf %447, %453 : vector<8x256xf32>
    %cst_101 = arith.constant 0.166666672 : f32
    %455 = vector.broadcast %cst_101 : f32 to vector<8x256xf32>
    %456 = arith.mulf %454, %455 : vector<8x256xf32>
    %c232 = arith.constant 232 : index
    %c0_102 = arith.constant 0 : index
    %457 = vector.load %arg3[%c232, %c0_102] : memref<256x256xf32, #tpu.memory_space<vmem>>, vector<9x256xf32>
    %cst_103 = arith.constant 0.000000e+00 : f32
    %458 = vector.broadcast %cst_103 : f32 to vector<8x32xf32>
    %cst_104 = arith.constant 0.000000e+00 : f32
    %459 = vector.broadcast %cst_104 : f32 to vector<8x32xf32>
    %460 = tpu.concatenate %458, %456, %459 in 1 : vector<8x32xf32>, vector<8x256xf32>, vector<8x32xf32> -> vector<8x320xf32>
    %cst_105 = arith.constant 0.000000e+00 : f32
    %461 = vector.broadcast %cst_105 : f32 to vector<1x320xf32>
    %cst_106 = arith.constant 0.000000e+00 : f32
    %462 = vector.broadcast %cst_106 : f32 to vector<1x320xf32>
    %463 = tpu.concatenate %461, %460, %462 in 0 : vector<1x320xf32>, vector<8x320xf32>, vector<1x320xf32> -> vector<10x320xf32>
    %cst_107 = arith.constant 0.000000e+00 : f32
    %464 = vector.broadcast %cst_107 : f32 to vector<8x256xf32>
    %465 = vector.extract_strided_slice %463 {offsets = [0, 0], sizes = [8, 256], strides = [1, 1]} : vector<10x320xf32> to vector<8x256xf32>
    %466 = vector.extract_strided_slice %457 {offsets = [0, 0], sizes = [1, 256], strides = [1, 1]} : vector<9x256xf32> to vector<1x256xf32>
    %467 = vector.broadcast %466 : vector<1x256xf32> to vector<8x256xf32>
    %468 = arith.mulf %465, %467 : vector<8x256xf32>
    %469 = arith.addf %464, %468 : vector<8x256xf32>
    %470 = vector.extract_strided_slice %463 {offsets = [0, 32], sizes = [8, 256], strides = [1, 1]} : vector<10x320xf32> to vector<8x256xf32>
    %471 = vector.extract_strided_slice %457 {offsets = [1, 0], sizes = [1, 256], strides = [1, 1]} : vector<9x256xf32> to vector<1x256xf32>
    %472 = vector.broadcast %471 : vector<1x256xf32> to vector<8x256xf32>
    %473 = arith.mulf %470, %472 : vector<8x256xf32>
    %474 = arith.addf %469, %473 : vector<8x256xf32>
    %475 = vector.extract_strided_slice %463 {offsets = [0, 64], sizes = [8, 256], strides = [1, 1]} : vector<10x320xf32> to vector<8x256xf32>
    %476 = vector.extract_strided_slice %457 {offsets = [2, 0], sizes = [1, 256], strides = [1, 1]} : vector<9x256xf32> to vector<1x256xf32>
    %477 = vector.broadcast %476 : vector<1x256xf32> to vector<8x256xf32>
    %478 = arith.mulf %475, %477 : vector<8x256xf32>
    %479 = arith.addf %474, %478 : vector<8x256xf32>
    %480 = vector.extract_strided_slice %463 {offsets = [1, 0], sizes = [8, 256], strides = [1, 1]} : vector<10x320xf32> to vector<8x256xf32>
    %481 = vector.extract_strided_slice %457 {offsets = [3, 0], sizes = [1, 256], strides = [1, 1]} : vector<9x256xf32> to vector<1x256xf32>
    %482 = vector.broadcast %481 : vector<1x256xf32> to vector<8x256xf32>
    %483 = arith.mulf %480, %482 : vector<8x256xf32>
    %484 = arith.addf %479, %483 : vector<8x256xf32>
    %485 = vector.extract_strided_slice %463 {offsets = [1, 32], sizes = [8, 256], strides = [1, 1]} : vector<10x320xf32> to vector<8x256xf32>
    %486 = vector.extract_strided_slice %457 {offsets = [4, 0], sizes = [1, 256], strides = [1, 1]} : vector<9x256xf32> to vector<1x256xf32>
    %487 = vector.broadcast %486 : vector<1x256xf32> to vector<8x256xf32>
    %488 = arith.mulf %485, %487 : vector<8x256xf32>
    %489 = arith.addf %484, %488 : vector<8x256xf32>
    %490 = vector.extract_strided_slice %463 {offsets = [1, 64], sizes = [8, 256], strides = [1, 1]} : vector<10x320xf32> to vector<8x256xf32>
    %491 = vector.extract_strided_slice %457 {offsets = [5, 0], sizes = [1, 256], strides = [1, 1]} : vector<9x256xf32> to vector<1x256xf32>
    %492 = vector.broadcast %491 : vector<1x256xf32> to vector<8x256xf32>
    %493 = arith.mulf %490, %492 : vector<8x256xf32>
    %494 = arith.addf %489, %493 : vector<8x256xf32>
    %495 = vector.extract_strided_slice %463 {offsets = [2, 0], sizes = [8, 256], strides = [1, 1]} : vector<10x320xf32> to vector<8x256xf32>
    %496 = vector.extract_strided_slice %457 {offsets = [6, 0], sizes = [1, 256], strides = [1, 1]} : vector<9x256xf32> to vector<1x256xf32>
    %497 = vector.broadcast %496 : vector<1x256xf32> to vector<8x256xf32>
    %498 = arith.mulf %495, %497 : vector<8x256xf32>
    %499 = arith.addf %494, %498 : vector<8x256xf32>
    %500 = vector.extract_strided_slice %463 {offsets = [2, 32], sizes = [8, 256], strides = [1, 1]} : vector<10x320xf32> to vector<8x256xf32>
    %501 = vector.extract_strided_slice %457 {offsets = [7, 0], sizes = [1, 256], strides = [1, 1]} : vector<9x256xf32> to vector<1x256xf32>
    %502 = vector.broadcast %501 : vector<1x256xf32> to vector<8x256xf32>
    %503 = arith.mulf %500, %502 : vector<8x256xf32>
    %504 = arith.addf %499, %503 : vector<8x256xf32>
    %505 = vector.extract_strided_slice %463 {offsets = [2, 64], sizes = [8, 256], strides = [1, 1]} : vector<10x320xf32> to vector<8x256xf32>
    %506 = vector.extract_strided_slice %457 {offsets = [8, 0], sizes = [1, 256], strides = [1, 1]} : vector<9x256xf32> to vector<1x256xf32>
    %507 = vector.broadcast %506 : vector<1x256xf32> to vector<8x256xf32>
    %508 = arith.mulf %505, %507 : vector<8x256xf32>
    %509 = arith.addf %504, %508 : vector<8x256xf32>
    %c248_108 = arith.constant 248 : index
    %c0_109 = arith.constant 0 : index
    %510 = vector.load %arg3[%c248_108, %c0_109] : memref<256x256xf32, #tpu.memory_space<vmem>>, vector<1x256xf32>
    %511 = vector.broadcast %510 : vector<1x256xf32> to vector<8x256xf32>
    %512 = arith.addf %509, %511 : vector<8x256xf32>
    %cst_110 = arith.constant 3.000000e+00 : f32
    %513 = vector.broadcast %cst_110 : f32 to vector<8x256xf32>
    %514 = arith.addf %512, %513 : vector<8x256xf32>
    %cst_111 = arith.constant 0.000000e+00 : f32
    %cst_112 = arith.constant 6.000000e+00 : f32
    %515 = vector.broadcast %cst_111 : f32 to vector<8x256xf32>
    %516 = arith.maximumf %515, %514 : vector<8x256xf32>
    %517 = vector.broadcast %cst_112 : f32 to vector<8x256xf32>
    %518 = arith.minimumf %517, %516 : vector<8x256xf32>
    %519 = arith.mulf %512, %518 : vector<8x256xf32>
    %cst_113 = arith.constant 0.166666672 : f32
    %520 = vector.broadcast %cst_113 : f32 to vector<8x256xf32>
    %521 = arith.mulf %519, %520 : vector<8x256xf32>
    %c568 = arith.constant 568 : index
    %c0_114 = arith.constant 0 : index
    %522 = vector.load %arg2[%c568, %c0_114] : memref<928x128xf32, #tpu.memory_space<vmem>>, vector<256x128xf32>
    %cst_115 = arith.constant dense<0.000000e+00> : vector<8x128xf32>
    %523 = tpu.matmul %521, %522, %cst_115 {dimension_numbers = #tpu.dot_dimension_numbers<[1], [0], [0], [1], [0, 0, 1, 1], [], []>} : vector<8x256xf32>, vector<256x128xf32>, vector<8x128xf32> -> vector<8x128xf32>
    %c824 = arith.constant 824 : index
    %c0_116 = arith.constant 0 : index
    %524 = vector.load %arg2[%c824, %c0_116] : memref<928x128xf32, #tpu.memory_space<vmem>>, vector<1x128xf32>
    %525 = vector.broadcast %524 : vector<1x128xf32> to vector<8x128xf32>
    %526 = arith.addf %523, %525 : vector<8x128xf32>
    %527 = arith.addf %526, %442 : vector<8x128xf32>
    %c832 = arith.constant 832 : index
    %c0_117 = arith.constant 0 : index
    %528 = vector.load %arg2[%c832, %c0_117] : memref<928x128xf32, #tpu.memory_space<vmem>>, vector<16x6xf32>
    %c848 = arith.constant 848 : index
    %c0_118 = arith.constant 0 : index
    %529 = vector.load %arg2[%c848, %c0_118] : memref<928x128xf32, #tpu.memory_space<vmem>>, vector<1x6xf32>
    %c856 = arith.constant 856 : index
    %c0_119 = arith.constant 0 : index
    %530 = vector.load %arg2[%c856, %c0_119] : memref<928x128xf32, #tpu.memory_space<vmem>>, vector<64x40xf32>
    %c920 = arith.constant 920 : index
    %c0_120 = arith.constant 0 : index
    %531 = vector.load %arg2[%c920, %c0_120] : memref<928x128xf32, #tpu.memory_space<vmem>>, vector<1x40xf32>
    %cst_121 = arith.constant 0.000000e+00 : f32
    %532 = vector.broadcast %cst_121 : f32 to vector<6x40xf32>
    %533 = vector.extract_strided_slice %527 {offsets = [0, 0], sizes = [8, 16], strides = [1, 1]} : vector<8x128xf32> to vector<8x16xf32>
    %cst_122 = arith.constant dense<0.000000e+00> : vector<8x6xf32>
    %534 = tpu.matmul %533, %528, %cst_122 {dimension_numbers = #tpu.dot_dimension_numbers<[1], [0], [0], [1], [0, 0, 1, 1], [], []>} : vector<8x16xf32>, vector<16x6xf32>, vector<8x6xf32> -> vector<8x6xf32>
    %535 = vector.broadcast %529 : vector<1x6xf32> to vector<8x6xf32>
    %536 = arith.addf %534, %535 : vector<8x6xf32>
    %cst_123 = arith.constant 0.000000e+00 : f32
    %537 = vector.broadcast %cst_123 : f32 to vector<8x6xf32>
    %538 = arith.maximumf %536, %537 : vector<8x6xf32>
    %539 = vector.extract_strided_slice %530 {offsets = [0, 0], sizes = [8, 40], strides = [1, 1]} : vector<64x40xf32> to vector<8x40xf32>
    %cst_124 = arith.constant dense<0.000000e+00> : vector<6x40xf32>
    %540 = tpu.matmul %538, %539, %cst_124 {dimension_numbers = #tpu.dot_dimension_numbers<[0], [0], [1], [1], [0, 1, 1, 1], [], []>} : vector<8x6xf32>, vector<8x40xf32>, vector<6x40xf32> -> vector<6x40xf32>
    %541 = arith.addf %532, %540 : vector<6x40xf32>
    %542 = vector.extract_strided_slice %527 {offsets = [0, 16], sizes = [8, 16], strides = [1, 1]} : vector<8x128xf32> to vector<8x16xf32>
    %cst_125 = arith.constant dense<0.000000e+00> : vector<8x6xf32>
    %543 = tpu.matmul %542, %528, %cst_125 {dimension_numbers = #tpu.dot_dimension_numbers<[1], [0], [0], [1], [0, 0, 1, 1], [], []>} : vector<8x16xf32>, vector<16x6xf32>, vector<8x6xf32> -> vector<8x6xf32>
    %544 = vector.broadcast %529 : vector<1x6xf32> to vector<8x6xf32>
    %545 = arith.addf %543, %544 : vector<8x6xf32>
    %cst_126 = arith.constant 0.000000e+00 : f32
    %546 = vector.broadcast %cst_126 : f32 to vector<8x6xf32>
    %547 = arith.maximumf %545, %546 : vector<8x6xf32>
    %548 = vector.extract_strided_slice %530 {offsets = [8, 0], sizes = [8, 40], strides = [1, 1]} : vector<64x40xf32> to vector<8x40xf32>
    %cst_127 = arith.constant dense<0.000000e+00> : vector<6x40xf32>
    %549 = tpu.matmul %547, %548, %cst_127 {dimension_numbers = #tpu.dot_dimension_numbers<[0], [0], [1], [1], [0, 1, 1, 1], [], []>} : vector<8x6xf32>, vector<8x40xf32>, vector<6x40xf32> -> vector<6x40xf32>
    %550 = arith.addf %541, %549 : vector<6x40xf32>
    %551 = vector.extract_strided_slice %527 {offsets = [0, 32], sizes = [8, 16], strides = [1, 1]} : vector<8x128xf32> to vector<8x16xf32>
    %cst_128 = arith.constant dense<0.000000e+00> : vector<8x6xf32>
    %552 = tpu.matmul %551, %528, %cst_128 {dimension_numbers = #tpu.dot_dimension_numbers<[1], [0], [0], [1], [0, 0, 1, 1], [], []>} : vector<8x16xf32>, vector<16x6xf32>, vector<8x6xf32> -> vector<8x6xf32>
    %553 = vector.broadcast %529 : vector<1x6xf32> to vector<8x6xf32>
    %554 = arith.addf %552, %553 : vector<8x6xf32>
    %cst_129 = arith.constant 0.000000e+00 : f32
    %555 = vector.broadcast %cst_129 : f32 to vector<8x6xf32>
    %556 = arith.maximumf %554, %555 : vector<8x6xf32>
    %557 = vector.extract_strided_slice %530 {offsets = [16, 0], sizes = [8, 40], strides = [1, 1]} : vector<64x40xf32> to vector<8x40xf32>
    %cst_130 = arith.constant dense<0.000000e+00> : vector<6x40xf32>
    %558 = tpu.matmul %556, %557, %cst_130 {dimension_numbers = #tpu.dot_dimension_numbers<[0], [0], [1], [1], [0, 1, 1, 1], [], []>} : vector<8x6xf32>, vector<8x40xf32>, vector<6x40xf32> -> vector<6x40xf32>
    %559 = arith.addf %550, %558 : vector<6x40xf32>
    %560 = vector.extract_strided_slice %527 {offsets = [0, 48], sizes = [8, 16], strides = [1, 1]} : vector<8x128xf32> to vector<8x16xf32>
    %cst_131 = arith.constant dense<0.000000e+00> : vector<8x6xf32>
    %561 = tpu.matmul %560, %528, %cst_131 {dimension_numbers = #tpu.dot_dimension_numbers<[1], [0], [0], [1], [0, 0, 1, 1], [], []>} : vector<8x16xf32>, vector<16x6xf32>, vector<8x6xf32> -> vector<8x6xf32>
    %562 = vector.broadcast %529 : vector<1x6xf32> to vector<8x6xf32>
    %563 = arith.addf %561, %562 : vector<8x6xf32>
    %cst_132 = arith.constant 0.000000e+00 : f32
    %564 = vector.broadcast %cst_132 : f32 to vector<8x6xf32>
    %565 = arith.maximumf %563, %564 : vector<8x6xf32>
    %566 = vector.extract_strided_slice %530 {offsets = [24, 0], sizes = [8, 40], strides = [1, 1]} : vector<64x40xf32> to vector<8x40xf32>
    %cst_133 = arith.constant dense<0.000000e+00> : vector<6x40xf32>
    %567 = tpu.matmul %565, %566, %cst_133 {dimension_numbers = #tpu.dot_dimension_numbers<[0], [0], [1], [1], [0, 1, 1, 1], [], []>} : vector<8x6xf32>, vector<8x40xf32>, vector<6x40xf32> -> vector<6x40xf32>
    %568 = arith.addf %559, %567 : vector<6x40xf32>
    %569 = vector.extract_strided_slice %527 {offsets = [0, 64], sizes = [8, 16], strides = [1, 1]} : vector<8x128xf32> to vector<8x16xf32>
    %cst_134 = arith.constant dense<0.000000e+00> : vector<8x6xf32>
    %570 = tpu.matmul %569, %528, %cst_134 {dimension_numbers = #tpu.dot_dimension_numbers<[1], [0], [0], [1], [0, 0, 1, 1], [], []>} : vector<8x16xf32>, vector<16x6xf32>, vector<8x6xf32> -> vector<8x6xf32>
    %571 = vector.broadcast %529 : vector<1x6xf32> to vector<8x6xf32>
    %572 = arith.addf %570, %571 : vector<8x6xf32>
    %cst_135 = arith.constant 0.000000e+00 : f32
    %573 = vector.broadcast %cst_135 : f32 to vector<8x6xf32>
    %574 = arith.maximumf %572, %573 : vector<8x6xf32>
    %575 = vector.extract_strided_slice %530 {offsets = [32, 0], sizes = [8, 40], strides = [1, 1]} : vector<64x40xf32> to vector<8x40xf32>
    %cst_136 = arith.constant dense<0.000000e+00> : vector<6x40xf32>
    %576 = tpu.matmul %574, %575, %cst_136 {dimension_numbers = #tpu.dot_dimension_numbers<[0], [0], [1], [1], [0, 1, 1, 1], [], []>} : vector<8x6xf32>, vector<8x40xf32>, vector<6x40xf32> -> vector<6x40xf32>
    %577 = arith.addf %568, %576 : vector<6x40xf32>
    %578 = vector.extract_strided_slice %527 {offsets = [0, 80], sizes = [8, 16], strides = [1, 1]} : vector<8x128xf32> to vector<8x16xf32>
    %cst_137 = arith.constant dense<0.000000e+00> : vector<8x6xf32>
    %579 = tpu.matmul %578, %528, %cst_137 {dimension_numbers = #tpu.dot_dimension_numbers<[1], [0], [0], [1], [0, 0, 1, 1], [], []>} : vector<8x16xf32>, vector<16x6xf32>, vector<8x6xf32> -> vector<8x6xf32>
    %580 = vector.broadcast %529 : vector<1x6xf32> to vector<8x6xf32>
    %581 = arith.addf %579, %580 : vector<8x6xf32>
    %cst_138 = arith.constant 0.000000e+00 : f32
    %582 = vector.broadcast %cst_138 : f32 to vector<8x6xf32>
    %583 = arith.maximumf %581, %582 : vector<8x6xf32>
    %584 = vector.extract_strided_slice %530 {offsets = [40, 0], sizes = [8, 40], strides = [1, 1]} : vector<64x40xf32> to vector<8x40xf32>
    %cst_139 = arith.constant dense<0.000000e+00> : vector<6x40xf32>
    %585 = tpu.matmul %583, %584, %cst_139 {dimension_numbers = #tpu.dot_dimension_numbers<[0], [0], [1], [1], [0, 1, 1, 1], [], []>} : vector<8x6xf32>, vector<8x40xf32>, vector<6x40xf32> -> vector<6x40xf32>
    %586 = arith.addf %577, %585 : vector<6x40xf32>
    %587 = vector.extract_strided_slice %527 {offsets = [0, 96], sizes = [8, 16], strides = [1, 1]} : vector<8x128xf32> to vector<8x16xf32>
    %cst_140 = arith.constant dense<0.000000e+00> : vector<8x6xf32>
    %588 = tpu.matmul %587, %528, %cst_140 {dimension_numbers = #tpu.dot_dimension_numbers<[1], [0], [0], [1], [0, 0, 1, 1], [], []>} : vector<8x16xf32>, vector<16x6xf32>, vector<8x6xf32> -> vector<8x6xf32>
    %589 = vector.broadcast %529 : vector<1x6xf32> to vector<8x6xf32>
    %590 = arith.addf %588, %589 : vector<8x6xf32>
    %cst_141 = arith.constant 0.000000e+00 : f32
    %591 = vector.broadcast %cst_141 : f32 to vector<8x6xf32>
    %592 = arith.maximumf %590, %591 : vector<8x6xf32>
    %593 = vector.extract_strided_slice %530 {offsets = [48, 0], sizes = [8, 40], strides = [1, 1]} : vector<64x40xf32> to vector<8x40xf32>
    %cst_142 = arith.constant dense<0.000000e+00> : vector<6x40xf32>
    %594 = tpu.matmul %592, %593, %cst_142 {dimension_numbers = #tpu.dot_dimension_numbers<[0], [0], [1], [1], [0, 1, 1, 1], [], []>} : vector<8x6xf32>, vector<8x40xf32>, vector<6x40xf32> -> vector<6x40xf32>
    %595 = arith.addf %586, %594 : vector<6x40xf32>
    %596 = vector.extract_strided_slice %527 {offsets = [0, 112], sizes = [8, 16], strides = [1, 1]} : vector<8x128xf32> to vector<8x16xf32>
    %cst_143 = arith.constant dense<0.000000e+00> : vector<8x6xf32>
    %597 = tpu.matmul %596, %528, %cst_143 {dimension_numbers = #tpu.dot_dimension_numbers<[1], [0], [0], [1], [0, 0, 1, 1], [], []>} : vector<8x16xf32>, vector<16x6xf32>, vector<8x6xf32> -> vector<8x6xf32>
    %598 = vector.broadcast %529 : vector<1x6xf32> to vector<8x6xf32>
    %599 = arith.addf %597, %598 : vector<8x6xf32>
    %cst_144 = arith.constant 0.000000e+00 : f32
    %600 = vector.broadcast %cst_144 : f32 to vector<8x6xf32>
    %601 = arith.maximumf %599, %600 : vector<8x6xf32>
    %602 = vector.extract_strided_slice %530 {offsets = [56, 0], sizes = [8, 40], strides = [1, 1]} : vector<64x40xf32> to vector<8x40xf32>
    %cst_145 = arith.constant dense<0.000000e+00> : vector<6x40xf32>
    %603 = tpu.matmul %601, %602, %cst_145 {dimension_numbers = #tpu.dot_dimension_numbers<[0], [0], [1], [1], [0, 1, 1, 1], [], []>} : vector<8x6xf32>, vector<8x40xf32>, vector<6x40xf32> -> vector<6x40xf32>
    %604 = arith.addf %595, %603 : vector<6x40xf32>
    %605 = vector.broadcast %531 : vector<1x40xf32> to vector<6x40xf32>
    %606 = arith.addf %604, %605 : vector<6x40xf32>
    %cst_146 = arith.constant 0.000000e+00 : f32
    %607 = vector.broadcast %cst_146 : f32 to vector<6x40xf32>
    %608 = arith.maximumf %606, %607 : vector<6x40xf32>
    %c0_147 = arith.constant 0 : index
    %c0_148 = arith.constant 0 : index
    %c0_149 = arith.constant 0 : index
    %609 = vector.load %arg4[%c0_147, %c0_148, %c0_149] : memref<1x6x40xf32, #tpu.memory_space<vmem>>, vector<1x6x40xf32>
    %610 = vector.shape_cast %609 : vector<1x6x40xf32> to vector<6x40xf32>
    %611 = vector.shape_cast %608 : vector<6x40xf32> to vector<1x6x40xf32>
    tpu.vector_store %arg4[%c0_147, %c0_148, %c0_149], %611 {strides = array<i32>} : memref<1x6x40xf32, #tpu.memory_space<vmem>>, vector<1x6x40xf32>,
    return
  }
  func.func @transform_0(%arg0: i32) -> (i32, i32, i32) {
    %c0_i32 = arith.constant 0 : i32
    %c0_i32_0 = arith.constant 0 : i32
    %c0_i32_1 = arith.constant 0 : i32
    return %arg0, %c0_i32, %c0_i32_0 : i32, i32, i32
  }
  func.func @transform_1(%arg0: i32) -> (i32, i32) {
    %c0_i32 = arith.constant 0 : i32
    %c0_i32_0 = arith.constant 0 : i32
    %c0_i32_1 = arith.constant 0 : i32
    return %c0_i32, %c0_i32_0 : i32, i32
  }
  func.func @transform_2(%arg0: i32) -> (i32, i32) {
    %c0_i32 = arith.constant 0 : i32
    %c0_i32_0 = arith.constant 0 : i32
    %c0_i32_1 = arith.constant 0 : i32
    return %c0_i32, %c0_i32_0 : i32, i32
  }
  func.func @transform_3(%arg0: i32) -> (i32, i32, i32) {
    %c0_i32 = arith.constant 0 : i32
    %c0_i32_0 = arith.constant 0 : i32
    %c0_i32_1 = arith.constant 0 : i32
    return %arg0, %c0_i32, %c0_i32_0 : i32, i32, i32
  }
}

</mosaic_0001>

<llo_original>
// kernel: forward.1
$region0: #{forward.1}
  #allocation0 [shape = 'u32[]', space=smem, size = 0x4, offset = 0x4, fixed_abs, tag = 'smem constant byte address 0x4 - core index']
  #allocation1 [shape = 'u32[144,128]{1,0:T(1,128)}', space=vmem, size = 0x12000, scoped, tag = 'internal scratch']
  %s0 = inlined_call_operand.vmem [shape: f32[2,32,216], index: 0, kind: input, shape index: {}]
  %s1 = inlined_call_operand.vmem [shape: f32[928,128], index: 1, kind: input, shape index: {}]
  %s2 = inlined_call_operand.vmem [shape: f32[256,256], index: 2, kind: input, shape index: {}]
  %s3 = inlined_call_operand.vmem [shape: f32[2,6,40], index: 3, kind: output, shape index: {}]
  %s4 = sld [smem:[#allocation0]]
  $region45: #{forward.1} parent=0
    _
  %s6 = ssub.s32 1, %s4
  %s7 = scalar_select 0, %s6, %s4
  loop: start=0, step=1, limit=4
  $region2: #{forward.1} parent=0 // loop_pre_header
    _
  $region3: #{forward.1} parent=0 // loop_header
    %s9 = sphi 0, %s13
    %p10 = scmp.ge.s32.totalorder %s9, 4
    %s19 = sphi 0, %s21
    %s22 = sphi 0, %s19
    %s23 = sphi 0, %s22
    %s39 = sphi 0, %s23
    %s43 = sphi 0, %s43
    %s45 = sphi 0, %s43
    %s46 = sphi 0, %s45
    %s60 = sphi 0, %s46
    %s64 = sphi 0, %s64
    %s66 = sphi 0, %s64
    %s67 = sphi 0, %s66
    %s81 = sphi 0, %s67
    %s87 = sphi 0, %s89
    %s90 = sphi 0, %s87
    %s91 = sphi 0, %s90
    %s107 = sphi 0, %s91
  $region4: #{forward.1} parent=0 // loop_header_branch
    %12 = sbr.rel (%p10) target = $region8
  $region5: #{forward.1} parent=0 // loop_body
    %s14 = ssub.s32 %s9, 1
    %s15 = ssub.s32 %s9, 2
    %s16 = sadd.s32 %s9, 1
    %s17 = ssub.s32 %s9, %s16
    %p18 = scmp.eq.s32.totalorder %s17, 0
    %s20 = sadd.s32 %s19, 1
    %s21 = scalar_select %p18, %s19, %s20
    %p24 = pneg %p18
    %p25 = scmp.eq.s32.totalorder %s9, 1
    %p26 = por %p24, %p25
    %p27 = scmp.ne.s32.totalorder %s19, %s22
    %p28 = scmp.eq.s32.totalorder %s9, 0
    %p29 = por %p27, %p28
    %p30 = scmp.ne.s32.totalorder %s19, %s22
    %p31 = scmp.eq.s32.totalorder %s14, 1
    %p32 = por %p30, %p31
    %p33 = scmp.ne.s32.totalorder %s22, %s23
    %p34 = scmp.eq.s32.totalorder %s14, 0
    %p35 = por %p33, %p34
    %p36 = scmp.ne.s32.totalorder %s22, %s23
    %p37 = scmp.eq.s32.totalorder %s15, 1
    %p38 = por %p36, %p37
    %p40 = scmp.ne.s32.totalorder %s23, %s39
    %p41 = scmp.eq.s32.totalorder %s15, 0
    %p42 = por %p40, %p41
    %s44 = sadd.s32 %s43, 1
    %p47 = scmp.eq.s32.totalorder %s9, 1
    %p48 = scmp.ne.s32.totalorder %s43, %s45
    %p49 = scmp.eq.s32.totalorder %s9, 0
    %p50 = por %p48, %p49
    %p51 = scmp.ne.s32.totalorder %s43, %s45
    %p52 = scmp.eq.s32.totalorder %s14, 1
    %p53 = por %p51, %p52
    %p54 = scmp.ne.s32.totalorder %s45, %s46
    %p55 = scmp.eq.s32.totalorder %s14, 0
    %p56 = por %p54, %p55
    %p57 = scmp.ne.s32.totalorder %s45, %s46
    %p58 = scmp.eq.s32.totalorder %s15, 1
    %p59 = por %p57, %p58
    %p61 = scmp.ne.s32.totalorder %s46, %s60
    %p62 = scmp.eq.s32.totalorder %s15, 0
    %p63 = por %p61, %p62
    %s65 = sadd.s32 %s64, 1
    %p68 = scmp.eq.s32.totalorder %s9, 1
    %p69 = scmp.ne.s32.totalorder %s64, %s66
    %p70 = scmp.eq.s32.totalorder %s9, 0
    %p71 = por %p69, %p70
    %p72 = scmp.ne.s32.totalorder %s64, %s66
    %p73 = scmp.eq.s32.totalorder %s14, 1
    %p74 = por %p72, %p73
    %p75 = scmp.ne.s32.totalorder %s66, %s67
    %p76 = scmp.eq.s32.totalorder %s14, 0
    %p77 = por %p75, %p76
    %p78 = scmp.ne.s32.totalorder %s66, %s67
    %p79 = scmp.eq.s32.totalorder %s15, 1
    %p80 = por %p78, %p79
    %p82 = scmp.ne.s32.totalorder %s67, %s81
    %p83 = scmp.eq.s32.totalorder %s15, 0
    %p84 = por %p82, %p83
    %s85 = ssub.s32 %s9, %s16
    %p86 = scmp.eq.s32.totalorder %s85, 0
    %s88 = sadd.s32 %s87, 1
    %s89 = scalar_select %p86, %s87, %s88
    %p92 = pneg %p86
    %p93 = scmp.eq.s32.totalorder %s9, 1
    %p94 = por %p92, %p93
    %p95 = scmp.ne.s32.totalorder %s87, %s90
    %p96 = scmp.eq.s32.totalorder %s9, 0
    %p97 = por %p95, %p96
    %p98 = scmp.ne.s32.totalorder %s87, %s90
    %p99 = scmp.eq.s32.totalorder %s14, 1
    %p100 = por %p98, %p99
    %p101 = scmp.ne.s32.totalorder %s90, %s91
    %p102 = scmp.eq.s32.totalorder %s14, 0
    %p103 = por %p101, %p102
    %p104 = scmp.ne.s32.totalorder %s90, %s91
    %p105 = scmp.eq.s32.totalorder %s15, 1
    %p106 = por %p104, %p105
    %p108 = scmp.ne.s32.totalorder %s91, %s107
    %p109 = scmp.eq.s32.totalorder %s15, 0
    %p110 = por %p108, %p109
    %p111 = scmp.le.s32.totalorder 1, %s9
    %p112 = scmp.lt.s32.totalorder %s9, 3
    %p113 = pnand %p111, %p112
    %p114 = pneg %p113
    // Predicated region
    $region9: #{forward.1} parent=5 // pred_check
      _
    $region10: #{forward.1} parent=5 // pred_check_branch
      %116 = sbr.rel (%p113) target = $region12
    $region11: #{forward.1} parent=5 // pred_region
      %s117 = ssub.s32 %s9, 1
      // Predicated region
      $region13: #{forward.1} parent=11 // pred_check
        %p118 = pneg %p56
      $region14: #{forward.1} parent=11 // pred_check_branch
        %120 = sbr.rel (%p118) target = $region16
      $region15: #{forward.1} parent=11 // pred_region
        _
      $region16: #{forward.1} parent=11 // pred_fallthru
        _
      // Predicated region
      $region17: #{forward.1} parent=11 // pred_check
        %p121 = pneg %p77
      $region18: #{forward.1} parent=11 // pred_check_branch
        %123 = sbr.rel (%p121) target = $region20
      $region19: #{forward.1} parent=11 // pred_region
        _
      $region20: #{forward.1} parent=11 // pred_fallthru
        _
    $region12: #{forward.1} parent=5 // pred_fallthru
      _
    %p124 = scmp.lt.s32.totalorder %s9, 2
    // Predicated region
    $region21: #{forward.1} parent=5 // pred_check
      %p125 = pneg %p124
    $region22: #{forward.1} parent=5 // pred_check_branch
      %127 = sbr.rel (%p125) target = $region24
    $region23: #{forward.1} parent=5 // pred_region
      // Predicated region
      $region25: #{forward.1} parent=23 // pred_check
        %p128 = pneg %p29
      $region26: #{forward.1} parent=23 // pred_check_branch
        %130 = sbr.rel (%p128) target = $region28
      $region27: #{forward.1} parent=23 // pred_region
        %p131 = scmp.lt.s32.totalorder %s9, 1
        %s132 = scalar_select %p131, %s9, 1
        %s133 = smul.addr %s132, 8
        %s134 = smul.addr %s133, 8
        %s135 = scalar_lea.vmem %s0, %s134
      $region28: #{forward.1} parent=23 // pred_fallthru
        _
    $region24: #{forward.1} parent=5 // pred_fallthru
      _
    %p136 = scmp.le.s32.totalorder 1, %s9
    %p137 = scmp.lt.s32.totalorder %s9, 3
    %p138 = pnand %p136, %p137
    %p139 = pneg %p138
    // Predicated region
    $region29: #{forward.1} parent=5 // pred_check
      _
    $region30: #{forward.1} parent=5 // pred_check_branch
      %141 = sbr.rel (%p138) target = $region32
    $region31: #{forward.1} parent=5 // pred_region
      %s142 = ssub.s32 %s9, 1
      %p143 = scmp.lt.s32.totalorder %s14, 1
      %s144 = scalar_select %p143, %s14, 1
      %s145 = smul.addr %s144, 8
      %s146 = smul.addr %s145, 8
      %s147 = scalar_lea.vmem %s0, %s146
      %p148 = pneg %p35
      %p149 = pneg %p32
      %p150 = pneg %p56
      %p151 = pneg %p53
      %p152 = pneg %p77
      %p153 = pneg %p74
      %p154 = pneg %p103
      %p155 = pneg %p100
      %p156 = scmp.lt.s32.totalorder %s14, 1
      %s157 = scalar_select %p156, %s14, 1
      %s158 = smul.addr %s157, 8
      %s159 = scalar_lea.vmem %s3, %s158
      %p160 = scmp.lt.s32.totalorder %s14, 1
      %s161 = scalar_select %p160, %s14, 1
      %s162 = smul.addr %s161, 8
      %s163 = smul.addr %s162, 8
      %s164 = scalar_lea.vmem %s0, %s163
      %p165 = scmp.lt.s32.totalorder %s14, 1
      %s166 = scalar_select %p165, %s14, 1
      %s167 = smul.addr %s166, 8
      %s168 = scalar_lea.vmem %s3, %s167
      %v169 = vld [vmem:[%s164] sm:$0xff]
      %v170 = vld [vmem:[%s164 + $0x8] sm:$0xff]
      %v171 = vld [vmem:[%s164 + $0x10] sm:$0xff]
      %v172 = vld [vmem:[%s164 + $0x18] sm:$0xff]
      %v173 = vld [vmem:[%s164 + $0x20] sm:$0xff]
      %v174 = vld [vmem:[%s164 + $0x28] sm:$0xff]
      %v175 = vld [vmem:[%s164 + $0x30] sm:$0xff]
      %v176 = vld [vmem:[%s164 + $0x38] sm:$0xff]
      %v177 = vld [vmem:[%s1] sm:$0xff]
      %v178 = vld [vmem:[%s1 + $0x8] sm:$0xff]
      %v179 = vld [vmem:[%s1 + $0x10] sm:$0xff]
      %v180 = vld [vmem:[%s1 + $0x18] sm:$0xff]
      %v181 = vld [vmem:[%s1 + $0x20] sm:$0xff]
      %v182 = vld [vmem:[%s1 + $0x28] sm:$0xff]
      %v183 = vld [vmem:[%s1 + $0x30] sm:$0xff]
      %v184 = vld [vmem:[%s1 + $0x38] sm:$0xff]
      %v185 = vld [vmem:[%s1 + $0x40] sm:$0xff]
      %v186 = vld [vmem:[%s1 + $0x48] sm:$0xff]
      %v187 = vld [vmem:[%s1 + $0x50] sm:$0xff]
      %v188 = vld [vmem:[%s1 + $0x58] sm:$0xff]
      %v189 = vld [vmem:[%s1 + $0x60] sm:$0xff]
      %v190 = vld [vmem:[%s1 + $0x68] sm:$0xff]
      %v191 = vld [vmem:[%s1 + $0x70] sm:$0xff]
      %v192 = vld [vmem:[%s1 + $0x78] sm:$0xff]
      %v193 = vld [vmem:[%s1 + $0x80] sm:$0xff]
      %v194 = vld [vmem:[%s1 + $0x88] sm:$0xff]
      %v195 = vld [vmem:[%s1 + $0x90] sm:$0xff]
      %v196 = vld [vmem:[%s1 + $0x98] sm:$0xff]
      %v197 = vld [vmem:[%s1 + $0xa0] sm:$0xff]
      %v198 = vld [vmem:[%s1 + $0xa8] sm:$0xff]
      %v199 = vld [vmem:[%s1 + $0xb0] sm:$0xff]
      %v200 = vld [vmem:[%s1 + $0xb8] sm:$0xff]
      %v201 = vld [vmem:[%s1 + $0xc0] sm:$0xff]
      %v202 = vld [vmem:[%s1 + $0xc8] sm:$0xff]
      %v203 = vld [vmem:[%s1 + $0xd0] sm:$0xff]
      %v204 = vld [vmem:[%s1 + $0xd8] sm:$0x1]
      %v205 = vlaneseq
      %v206 = vshrl.u32 %v205, 7
      %v207 = vsub.s32 0, %v206
      %v208 = vrot.slane %v204, %v207
      %vm209 = vcmask 719872
      %v211 = vsel %vm209, %v170, 0
      %v214 = vsel %vm209, %v172, 0
      %v217 = vsel %vm209, %v174, 0
      %v220 = vsel %vm209, %v176, 0
      %222 = vmatprep.subr.mxu0 0.0
      %223 = vmatpush1.msra.mxu0 %v177
      %224 = vmatprep.subr.mxu0 0.0
      %225 = vmatpush1.msra.mxu0 %v178
      %226 = vmatprep.subr.mxu0 0.0
      %227 = vmatpush1.msra.mxu0 %v179
      %228 = vmatprep.subr.mxu0 0.0
      %229 = vmatpush1.msra.mxu0 %v180
      %230 = vmatprep.subr.mxu0 0.0
      %231 = vmatpush1.msra.mxu0 %v181
      %232 = vmatprep.subr.mxu0 0.0
      %233 = vmatpush1.msra.mxu0 %v182
      %234 = vmatprep.subr.mxu0 0.0
      %235 = vmatpush1.msra.mxu0 %v183
      %236 = vmatprep.subr.mxu0 0.0
      %237 = vmatpush1.msra.mxu0 %v184
      %238 = vmatprep.subr.mxu0 0.0
      %239 = vmatpush1.msra.mxu0 %v185
      %240 = vmatprep.subr.mxu0 0.0
      %241 = vmatpush1.msra.mxu0 %v186
      %242 = vmatprep.subr.mxu0 0.0
      %243 = vmatpush1.msra.mxu0 %v187
      %244 = vmatprep.subr.mxu0 0.0
      %245 = vmatpush1.msra.mxu0 %v188
      %246 = vmatprep.subr.mxu0 0.0
      %247 = vmatpush1.msra.mxu0 %v189
      %248 = vmatprep.subr.mxu0 0.0
      %249 = vmatpush1.msra.mxu0 %v190
      %250 = vmatprep.subr.mxu0 0.0
      %251 = vmatpush1.msra.mxu0 %v191
      %252 = vmatprep.subr.mxu0 0.0
      %253 = vmatpush1.msra.mxu0 %v192
      %254 = vmatprep.subr.mxu0 0.0
      %255 = vmatpush1.msra.mxu0 %v193
      %256 = vmatprep.subr.mxu0 0.0
      %257 = vmatpush1.msra.mxu0 %v194
      %258 = vmatprep.subr.mxu0 0.0
      %259 = vmatpush1.msra.mxu0 %v195
      %260 = vmatprep.subr.mxu0 0.0
      %261 = vmatpush1.msra.mxu0 %v196
      %262 = vmatprep.subr.mxu0 0.0
      %263 = vmatpush1.msra.mxu0 %v197
      %264 = vmatprep.subr.mxu0 0.0
      %265 = vmatpush1.msra.mxu0 %v198
      %266 = vmatprep.subr.mxu0 0.0
      %267 = vmatpush1.msra.mxu0 %v199
      %268 = vmatprep.subr.mxu0 0.0
      %269 = vmatpush1.msra.mxu0 %v200
      %270 = vmatprep.subr.mxu0 0.0
      %271 = vmatpush1.msra.mxu0 %v201
      %272 = vmatprep.subr.mxu0 0.0
      %273 = vmatpush1.msra.mxu0 %v202
      %274 = vmatprep.subr.mxu0 0.0
      %275 = vmatpush1.msra.mxu0 %v203
      %276 = vmatprep.subr.mxu0 0.0
      %277 = vmatpush1.msra.mxu0 0.0
      %278 = vmatprep.subr.mxu0 0.0
      %279 = vmatpush1.msra.mxu0 0.0
      %280 = vmatprep.subr.mxu0 0.0
      %281 = vmatpush1.msra.mxu0 0.0
      %282 = vmatprep.subr.mxu0 0.0
      %283 = vmatpush1.msra.mxu0 0.0
      %284 = vmatprep.subr.mxu0 0.0
      %285 = vmatpush1.msra.mxu0 0.0
      %286 = vmatprep.mubr.f32.mxu0 %v211
      %287 = vmatmul.mubr.f32.gmra.mrb[0].mxu0 %v169
      %v288 = vpop.f32.mrb[0].mxu0
      %v289 = vadd.f32 %v208, %v288
      %v290 = vpop.f32.mrb[0].mxu0
      %291 = vmatprep.mubr.f32.mxu0 %v214
      %292 = vmatmul.mubr.f32.gmra.mrb[0].mxu0 %v171
      %v293 = vpop.f32.mrb[0].mxu0
      %v294 = vadd.f32 %v208, %v293
      %v295 = vpop.f32.mrb[0].mxu0
      %296 = vmatprep.mubr.f32.mxu0 %v217
      %297 = vmatmul.mubr.f32.gmra.mrb[0].mxu0 %v173
      %v298 = vpop.f32.mrb[0].mxu0
      %v299 = vadd.f32 %v208, %v298
      %v300 = vpop.f32.mrb[0].mxu0
      %301 = vmatprep.mubr.f32.mxu0 %v220
      %302 = vmatmul.mubr.f32.gmra.mrb[0].mxu0 %v175
      %v303 = vpop.f32.mrb[0].mxu0
      %v304 = vadd.f32 %v208, %v303
      %v305 = vpop.f32.mrb[0].mxu0
      %306 = vdwg.mxu0
      %v307 = vadd.f32 %v289, 3.0
      %v308 = vadd.f32 %v294, 3.0
      %v309 = vadd.f32 %v299, 3.0
      %v310 = vadd.f32 %v304, 3.0
      %v311 = vmax.f32 %v307, 0.0
      %v312 = vmax.f32 %v308, 0.0
      %v313 = vmax.f32 %v309, 0.0
      %v314 = vmax.f32 %v310, 0.0
      %v315 = vmin.f32 %v311, 6.0
      %v316 = vmin.f32 %v312, 6.0
      %v317 = vmin.f32 %v313, 6.0
      %v318 = vmin.f32 %v314, 6.0
      %v319 = vmul.f32 %v289, %v315
      %v320 = vmul.f32 %v294, %v316
      %v321 = vmul.f32 %v299, %v317
      %v322 = vmul.f32 %v304, %v318
      %v323 = vmul.f32 %v319, 0.16666667
      %v324 = vmul.f32 %v320, 0.16666667
      %v325 = vmul.f32 %v321, 0.16666667
      %v326 = vmul.f32 %v322, 0.16666667
      %v327 = vld [vmem:[%s1 + $0xe0] sm:$0xff]
      %v328 = vld [vmem:[%s1 + $0xe8] sm:$0x1]
      %v329 = vld [vmem:[%s1 + $0xf0] sm:$0x1]
      %331 = vrot.lane.b32.xlu0 %v323, 8
      %v332 = vpop.permute.xlu0 %331
      %vm334 = vcmask 64512
      %v335 = vsel %vm334, 0.0, %v332
      %vm336 = vcmask 588800
      %v337 = vsel %vm336, %v335, 0.0
      %v339 = vrot.slane %v337, 7
      %vm341 = vcmask 1040384
      %v342 = vsel %vm341, 0.0, %v339
      %v343 = vsel %vm341, %v339, 0.0
      %345 = vrot.lane.b32.xlu0 %v324, 8
      %v346 = vpop.permute.xlu0 %345
      %v348 = vsel %vm334, 0.0, %v346
      %v349 = vsel %vm336, %v348, 0.0
      %v351 = vrot.slane %v349, 7
      %v353 = vsel %vm341, 0.0, %v351
      %v354 = vsel %vm341, %v351, 0.0
      %356 = vrot.lane.b32.xlu0 %v325, 8
      %v357 = vpop.permute.xlu0 %356
      %v359 = vsel %vm334, 0.0, %v357
      %v360 = vsel %vm336, %v359, 0.0
      %v362 = vrot.slane %v360, 7
      %v364 = vsel %vm341, 0.0, %v362
      %v365 = vsel %vm341, %v362, 0.0
      %367 = vrot.lane.b32.xlu0 %v326, 8
      %v368 = vpop.permute.xlu0 %367
      %v370 = vsel %vm334, 0.0, %v368
      %v371 = vsel %vm336, %v370, 0.0
      %v373 = vrot.slane %v371, 7
      %v375 = vsel %vm341, 0.0, %v373
      %v376 = vsel %vm341, %v373, 0.0
      %v377 = vlaneseq
      %v378 = vshrl.u32 %v377, 7
      %v379 = vsub.s32 0, %v378
      %v380 = vrot.slane %v327, %v379
      %v381 = vmul.f32 %v375, %v380
      %v382 = vadd.f32 %v381, 0.0
      %v383 = vlaneseq
      %v384 = vshrl.u32 %v383, 7
      %v385 = vsub.s32 1, %v384
      %v386 = vrot.slane %v327, %v385
      %388 = vrot.lane.b32.xlu0 %v386, 8
      %v389 = vpop.permute.xlu0 %388
      %v391 = vmul.f32 %v364, %v389
      %393 = vrot.lane.b32.xlu0 %v391, 120
      %v394 = vpop.permute.xlu0 %393
      %v396 = vadd.f32 %v382, %v394
      %v397 = vlaneseq
      %v398 = vshrl.u32 %v397, 7
      %v399 = vsub.s32 2, %v398
      %v400 = vrot.slane %v327, %v399
      %402 = vrot.lane.b32.xlu0 %v400, 8
      %v403 = vpop.permute.xlu0 %402
      %v405 = vmul.f32 %v375, %v403
      %407 = vrot.lane.b32.xlu0 %v405, 120
      %v408 = vpop.permute.xlu0 %407
      %v410 = vadd.f32 %v396, %v408
      %v411 = vlaneseq
      %v412 = vshrl.u32 %v411, 7
      %v413 = vsub.s32 3, %v412
      %v414 = vrot.slane %v327, %v413
      %v415 = vmul.f32 %v353, %v414
      %v416 = vmul.f32 %v354, %v414
      %vm419 = vcmask 1046528
      %v420 = vrot.slane %v415, 1
      %v421 = vrot.slane %v416, 1
      %v422 = vsel %vm419, %v420, %v421
      %v424 = vadd.f32 %v410, %v422
      %v425 = vlaneseq
      %v426 = vshrl.u32 %v425, 7
      %v427 = vsub.s32 4, %v426
      %v428 = vrot.slane %v327, %v427
      %430 = vrot.lane.b32.xlu0 %v428, 8
      %v431 = vpop.permute.xlu0 %430
      %v433 = vmul.f32 %v342, %v431
      %v434 = vmul.f32 %v343, %v431
      %v437 = vrot.slane %v433, 1
      %v438 = vrot.slane %v434, 1
      %v439 = vsel %vm419, %v437, %v438
      %440 = vrot.lane.b32.xlu0 %v439, 120
      %v441 = vpop.permute.xlu0 %440
      %v443 = vadd.f32 %v424, %v441
      %v444 = vlaneseq
      %v445 = vshrl.u32 %v444, 7
      %v446 = vsub.s32 5, %v445
      %v447 = vrot.slane %v327, %v446
      %449 = vrot.lane.b32.xlu0 %v447, 8
      %v450 = vpop.permute.xlu0 %449
      %v452 = vmul.f32 %v353, %v450
      %v453 = vmul.f32 %v354, %v450
      %v456 = vrot.slane %v452, 1
      %v457 = vrot.slane %v453, 1
      %v458 = vsel %vm419, %v456, %v457
      %459 = vrot.lane.b32.xlu0 %v458, 120
      %v460 = vpop.permute.xlu0 %459
      %v462 = vadd.f32 %v443, %v460
      %v463 = vlaneseq
      %v464 = vshrl.u32 %v463, 7
      %v465 = vsub.s32 6, %v464
      %v466 = vrot.slane %v327, %v465
      %v467 = vmul.f32 %v375, %v466
      %v468 = vmul.f32 %v376, %v466
      %v471 = vrot.slane %v467, 1
      %v472 = vrot.slane %v468, 1
      %v473 = vsel %vm419, %v471, %v472
      %v475 = vadd.f32 %v462, %v473
      %v476 = vlaneseq
      %v477 = vshrl.u32 %v476, 7
      %v478 = vsub.s32 7, %v477
      %v479 = vrot.slane %v327, %v478
      %481 = vrot.lane.b32.xlu0 %v479, 8
      %v482 = vpop.permute.xlu0 %481
      %v484 = vmul.f32 %v364, %v482
      %v485 = vmul.f32 %v365, %v482
      %v488 = vrot.slane %v484, 1
      %v489 = vrot.slane %v485, 1
      %v490 = vsel %vm419, %v488, %v489
      %491 = vrot.lane.b32.xlu0 %v490, 120
      %v492 = vpop.permute.xlu0 %491
      %v494 = vadd.f32 %v475, %v492
      %v495 = vlaneseq
      %v496 = vshrl.u32 %v495, 7
      %v497 = vsub.s32 0, %v496
      %v498 = vrot.slane %v328, %v497
      %500 = vrot.lane.b32.xlu0 %v498, 8
      %v501 = vpop.permute.xlu0 %500
      %v503 = vmul.f32 %v375, %v501
      %v504 = vmul.f32 %v376, %v501
      %v507 = vrot.slane %v503, 1
      %v508 = vrot.slane %v504, 1
      %v509 = vsel %vm419, %v507, %v508
      %510 = vrot.lane.b32.xlu0 %v509, 120
      %v511 = vpop.permute.xlu0 %510
      %v513 = vadd.f32 %v494, %v511
      %v514 = vlaneseq
      %v515 = vshrl.u32 %v514, 7
      %v516 = vsub.s32 0, %v515
      %v517 = vrot.slane %v329, %v516
      %v518 = vadd.f32 %v513, %v517
      %v519 = vmax.f32 %v518, 0.0
      %521 = vrot.lane.b32.xlu0 %v380, 8
      %v522 = vpop.permute.xlu0 %521
      %v524 = vmul.f32 %v364, %v522
      %v525 = vadd.f32 %v524, 0.0
      %v526 = vmul.f32 %v375, %v389
      %v527 = vadd.f32 %v525, %v526
      %528 = vrot.lane.b32.xlu0 %v400, 16
      %v529 = vpop.permute.xlu0 %528
      %v531 = vmul.f32 %v364, %v529
      %533 = vrot.lane.b32.xlu0 %v531, 120
      %v534 = vpop.permute.xlu0 %533
      %v536 = vadd.f32 %v527, %v534
      %538 = vrot.lane.b32.xlu0 %v414, 8
      %v539 = vpop.permute.xlu0 %538
      %v541 = vmul.f32 %v342, %v539
      %v542 = vmul.f32 %v343, %v539
      %v545 = vrot.slane %v541, 1
      %v546 = vrot.slane %v542, 1
      %v547 = vsel %vm419, %v545, %v546
      %v549 = vadd.f32 %v536, %v547
      %v550 = vmul.f32 %v353, %v431
      %v551 = vmul.f32 %v354, %v431
      %v554 = vrot.slane %v550, 1
      %v555 = vrot.slane %v551, 1
      %v556 = vsel %vm419, %v554, %v555
      %v558 = vadd.f32 %v549, %v556
      %559 = vrot.lane.b32.xlu0 %v447, 16
      %v560 = vpop.permute.xlu0 %559
      %v562 = vmul.f32 %v342, %v560
      %v563 = vmul.f32 %v343, %v560
      %v566 = vrot.slane %v562, 1
      %v567 = vrot.slane %v563, 1
      %v568 = vsel %vm419, %v566, %v567
      %569 = vrot.lane.b32.xlu0 %v568, 120
      %v570 = vpop.permute.xlu0 %569
      %v572 = vadd.f32 %v558, %v570
      %574 = vrot.lane.b32.xlu0 %v466, 8
      %v575 = vpop.permute.xlu0 %574
      %v577 = vmul.f32 %v364, %v575
      %v578 = vmul.f32 %v365, %v575
      %v581 = vrot.slane %v577, 1
      %v582 = vrot.slane %v578, 1
      %v583 = vsel %vm419, %v581, %v582
      %v585 = vadd.f32 %v572, %v583
      %v586 = vmul.f32 %v375, %v482
      %v587 = vmul.f32 %v376, %v482
      %v590 = vrot.slane %v586, 1
      %v591 = vrot.slane %v587, 1
      %v592 = vsel %vm419, %v590, %v591
      %v594 = vadd.f32 %v585, %v592
      %595 = vrot.lane.b32.xlu0 %v498, 16
      %v596 = vpop.permute.xlu0 %595
      %v598 = vmul.f32 %v364, %v596
      %v599 = vmul.f32 %v365, %v596
      %v602 = vrot.slane %v598, 1
      %v603 = vrot.slane %v599, 1
      %v604 = vsel %vm419, %v602, %v603
      %605 = vrot.lane.b32.xlu0 %v604, 120
      %v606 = vpop.permute.xlu0 %605
      %v608 = vadd.f32 %v594, %v606
      %610 = vrot.lane.b32.xlu0 %v517, 8
      %v611 = vpop.permute.xlu0 %610
      %v613 = vadd.f32 %v608, %v611
      %v614 = vmax.f32 %v613, 0.0
      %v615 = vmul.f32 %v353, %v380
      %v616 = vmul.f32 %v354, %v380
      %v617 = vadd.f32 %v615, 0.0
      %v618 = vadd.f32 %v616, 0.0
      %v619 = vmul.f32 %v342, %v389
      %v620 = vmul.f32 %v343, %v389
      %623 = vrot.lane.b32.xlu0 %v619, 120
      %v624 = vpop.permute.xlu0 %623
      %625 = vrot.lane.b32.xlu0 %v620, 120
      %v626 = vpop.permute.xlu0 %625
      %v629 = vadd.f32 %v617, %v624
      %v630 = vadd.f32 %v618, %v626
      %v631 = vmul.f32 %v353, %v403
      %v632 = vmul.f32 %v354, %v403
      %635 = vrot.lane.b32.xlu0 %v631, 120
      %v636 = vpop.permute.xlu0 %635
      %637 = vrot.lane.b32.xlu0 %v632, 120
      %v638 = vpop.permute.xlu0 %637
      %v641 = vadd.f32 %v629, %v636
      %v642 = vadd.f32 %v630, %v638
      %v643 = vmul.f32 %v375, %v414
      %v644 = vmul.f32 %v376, %v414
      %v645 = vadd.f32 %v641, %v643
      %v646 = vadd.f32 %v642, %v644
      %v647 = vmul.f32 %v364, %v431
      %v648 = vmul.f32 %v365, %v431
      %651 = vrot.lane.b32.xlu0 %v647, 120
      %v652 = vpop.permute.xlu0 %651
      %653 = vrot.lane.b32.xlu0 %v648, 120
      %v654 = vpop.permute.xlu0 %653
      %v657 = vadd.f32 %v645, %v652
      %v658 = vadd.f32 %v646, %v654
      %v659 = vmul.f32 %v375, %v450
      %v660 = vmul.f32 %v376, %v450
      %663 = vrot.lane.b32.xlu0 %v659, 120
      %v664 = vpop.permute.xlu0 %663
      %665 = vrot.lane.b32.xlu0 %v660, 120
      %v666 = vpop.permute.xlu0 %665
      %v669 = vadd.f32 %v657, %v664
      %v670 = vadd.f32 %v658, %v666
      %v671 = vmul.f32 %v353, %v466
      %v672 = vmul.f32 %v354, %v466
      %v675 = vrot.slane %v671, 1
      %v676 = vrot.slane %v672, 1
      %v677 = vsel %vm419, %v675, %v676
      %v680 = vadd.f32 %v669, %v677
      %v681 = vadd.f32 %v670, %v676
      %v682 = vmul.f32 %v342, %v482
      %v683 = vmul.f32 %v343, %v482
      %v686 = vrot.slane %v682, 1
      %v687 = vrot.slane %v683, 1
      %v688 = vsel %vm419, %v686, %v687
      %689 = vrot.lane.b32.xlu0 %v688, 120
      %v690 = vpop.permute.xlu0 %689
      %691 = vrot.lane.b32.xlu0 %v687, 120
      %v692 = vpop.permute.xlu0 %691
      %v695 = vadd.f32 %v680, %v690
      %v696 = vadd.f32 %v681, %v692
      %v697 = vmul.f32 %v353, %v501
      %v698 = vmul.f32 %v354, %v501
      %v701 = vrot.slane %v697, 1
      %v702 = vrot.slane %v698, 1
      %v703 = vsel %vm419, %v701, %v702
      %704 = vrot.lane.b32.xlu0 %v703, 120
      %v705 = vpop.permute.xlu0 %704
      %706 = vrot.lane.b32.xlu0 %v702, 120
      %v707 = vpop.permute.xlu0 %706
      %v710 = vadd.f32 %v695, %v705
      %v711 = vadd.f32 %v696, %v707
      %v712 = vadd.f32 %v710, %v517
      %v713 = vadd.f32 %v711, %v517
      %v714 = vmax.f32 %v712, 0.0
      %v715 = vmax.f32 %v713, 0.0
      %v716 = vmul.f32 %v342, %v522
      %v717 = vmul.f32 %v343, %v522
      %v718 = vadd.f32 %v716, 0.0
      %v719 = vadd.f32 %v717, 0.0
      %v720 = vmul.f32 %v353, %v389
      %v721 = vmul.f32 %v354, %v389
      %v722 = vadd.f32 %v718, %v720
      %v723 = vadd.f32 %v719, %v721
      %v724 = vmul.f32 %v342, %v529
      %v725 = vmul.f32 %v343, %v529
      %728 = vrot.lane.b32.xlu0 %v724, 120
      %v729 = vpop.permute.xlu0 %728
      %730 = vrot.lane.b32.xlu0 %v725, 120
      %v731 = vpop.permute.xlu0 %730
      %v734 = vadd.f32 %v722, %v729
      %v735 = vadd.f32 %v723, %v731
      %v736 = vmul.f32 %v364, %v539
      %v737 = vmul.f32 %v365, %v539
      %v738 = vadd.f32 %v734, %v736
      %v739 = vadd.f32 %v735, %v737
      %v740 = vmul.f32 %v375, %v431
      %v741 = vmul.f32 %v376, %v431
      %v742 = vadd.f32 %v738, %v740
      %v743 = vadd.f32 %v739, %v741
      %v744 = vmul.f32 %v364, %v560
      %v745 = vmul.f32 %v365, %v560
      %748 = vrot.lane.b32.xlu0 %v744, 120
      %v749 = vpop.permute.xlu0 %748
      %750 = vrot.lane.b32.xlu0 %v745, 120
      %v751 = vpop.permute.xlu0 %750
      %v754 = vadd.f32 %v742, %v749
      %v755 = vadd.f32 %v743, %v751
      %v756 = vmul.f32 %v342, %v575
      %v757 = vmul.f32 %v343, %v575
      %v760 = vrot.slane %v756, 1
      %v761 = vrot.slane %v757, 1
      %v762 = vsel %vm419, %v760, %v761
      %v765 = vadd.f32 %v754, %v762
      %v766 = vadd.f32 %v755, %v761
      %v767 = vmul.f32 %v353, %v482
      %v768 = vmul.f32 %v354, %v482
      %v771 = vrot.slane %v767, 1
      %v772 = vrot.slane %v768, 1
      %v773 = vsel %vm419, %v771, %v772
      %v776 = vadd.f32 %v765, %v773
      %v777 = vadd.f32 %v766, %v772
      %v778 = vmul.f32 %v342, %v596
      %v779 = vmul.f32 %v343, %v596
      %v782 = vrot.slane %v778, 1
      %v783 = vrot.slane %v779, 1
      %v784 = vsel %vm419, %v782, %v783
      %785 = vrot.lane.b32.xlu0 %v784, 120
      %v786 = vpop.permute.xlu0 %785
      %787 = vrot.lane.b32.xlu0 %v783, 120
      %v788 = vpop.permute.xlu0 %787
      %v791 = vadd.f32 %v776, %v786
      %v792 = vadd.f32 %v777, %v788
      %v793 = vadd.f32 %v791, %v611
      %v794 = vadd.f32 %v792, %v611
      %v795 = vmax.f32 %v793, 0.0
      %v796 = vmax.f32 %v794, 0.0
      %798 = vrot.lane.b32.xlu0 %v614, 120
      %v799 = vpop.permute.xlu0 %798
      %v802 = vrot.slane %v714, 1
      %v803 = vrot.slane %v715, 1
      %v804 = vsel %vm419, %v802, %v803
      %v807 = vrot.slane %v795, 1
      %v808 = vrot.slane %v796, 1
      %v809 = vsel %vm419, %v807, %v808
      %810 = vrot.lane.b32.xlu0 %v809, 120
      %v811 = vpop.permute.xlu0 %810
      %v812 = vld [vmem:[%s1 + $0xf8] sm:$0xff]
      %v813 = vld [vmem:[%s1 + $0x100] sm:$0xff]
      %v814 = vld [vmem:[%s1 + $0x108] sm:$0xff]
      %v815 = vld [vmem:[%s1 + $0x110] sm:$0xff]
      %v816 = vld [vmem:[%s1 + $0x118] sm:$0xff]
      %v817 = vld [vmem:[%s1 + $0x120] sm:$0xff]
      %v818 = vld [vmem:[%s1 + $0x128] sm:$0xff]
      %v819 = vld [vmem:[%s1 + $0x130] sm:$0xff]
      %v820 = vld [vmem:[%s1 + $0x138] sm:$0x1]
      %v821 = vlaneseq
      %v822 = vshrl.u32 %v821, 7
      %v823 = vsub.s32 0, %v822
      %v824 = vrot.slane %v820, %v823
      %vm825 = vcmask 523264
      %v827 = vsel %vm825, %v519, 0
      %v829 = vsel %vm825, %v799, 0
      %v831 = vsel %vm825, %v804, 0
      %v833 = vsel %vm825, %v811, 0
      %835 = vmatprep.subr.mxu0 0.0
      %836 = vmatpush1.msra.mxu0 %v812
      %837 = vmatprep.subr.mxu0 0.0
      %838 = vmatpush1.msra.mxu0 %v813
      %839 = vmatprep.subr.mxu0 0.0
      %840 = vmatpush1.msra.mxu0 %v814
      %841 = vmatprep.subr.mxu0 0.0
      %842 = vmatpush1.msra.mxu0 %v815
      %843 = vmatprep.subr.mxu0 0.0
      %844 = vmatpush1.msra.mxu0 %v816
      %845 = vmatprep.subr.mxu0 0.0
      %846 = vmatpush1.msra.mxu0 %v817
      %847 = vmatprep.subr.mxu0 0.0
      %848 = vmatpush1.msra.mxu0 %v818
      %849 = vmatprep.subr.mxu0 0.0
      %850 = vmatpush1.msra.mxu0 %v819
      %851 = vmatprep.subr.mxu0 0.0
      %852 = vmatpush1.msra.mxu0 0.0
      %853 = vmatprep.subr.mxu0 0.0
      %854 = vmatpush1.msra.mxu0 0.0
      %855 = vmatprep.subr.mxu0 0.0
      %856 = vmatpush1.msra.mxu0 0.0
      %857 = vmatprep.subr.mxu0 0.0
      %858 = vmatpush1.msra.mxu0 0.0
      %859 = vmatprep.subr.mxu0 0.0
      %860 = vmatpush1.msra.mxu0 0.0
      %861 = vmatprep.subr.mxu0 0.0
      %862 = vmatpush1.msra.mxu0 0.0
      %863 = vmatprep.subr.mxu0 0.0
      %864 = vmatpush1.msra.mxu0 0.0
      %865 = vmatprep.subr.mxu0 0.0
      %866 = vmatpush1.msra.mxu0 0.0
      %867 = vmatprep.subr.mxu0 0.0
      %868 = vmatpush1.msra.mxu0 0.0
      %869 = vmatprep.subr.mxu0 0.0
      %870 = vmatpush1.msra.mxu0 0.0
      %871 = vmatprep.subr.mxu0 0.0
      %872 = vmatpush1.msra.mxu0 0.0
      %873 = vmatprep.subr.mxu0 0.0
      %874 = vmatpush1.msra.mxu0 0.0
      %875 = vmatprep.subr.mxu0 0.0
      %876 = vmatpush1.msra.mxu0 0.0
      %877 = vmatprep.subr.mxu0 0.0
      %878 = vmatpush1.msra.mxu0 0.0
      %879 = vmatprep.subr.mxu0 0.0
      %880 = vmatpush1.msra.mxu0 0.0
      %881 = vmatprep.subr.mxu0 0.0
      %882 = vmatpush1.msra.mxu0 0.0
      %883 = vmatprep.subr.mxu0 0.0
      %884 = vmatpush1.msra.mxu0 0.0
      %885 = vmatprep.subr.mxu0 0.0
      %886 = vmatpush1.msra.mxu0 0.0
      %887 = vmatprep.subr.mxu0 0.0
      %888 = vmatpush1.msra.mxu0 0.0
      %889 = vmatprep.subr.mxu0 0.0
      %890 = vmatpush1.msra.mxu0 0.0
      %891 = vmatprep.subr.mxu0 0.0
      %892 = vmatpush1.msra.mxu0 0.0
      %893 = vmatprep.subr.mxu0 0.0
      %894 = vmatpush1.msra.mxu0 0.0
      %895 = vmatprep.subr.mxu0 0.0
      %896 = vmatpush1.msra.mxu0 0.0
      %897 = vmatprep.subr.mxu0 0.0
      %898 = vmatpush1.msra.mxu0 0.0
      %899 = vmatprep.mubr.f32.mxu0 0.0
      %900 = vmatmul.mubr.f32.gmra.mrb[0].mxu0 %v827
      %v901 = vpop.f32.mrb[0].mxu0
      %v902 = vadd.f32 %v824, %v901
      %v903 = vpop.f32.mrb[0].mxu0
      %904 = vmatprep.mubr.f32.mxu0 0.0
      %905 = vmatmul.mubr.f32.gmra.mrb[0].mxu0 %v829
      %v906 = vpop.f32.mrb[0].mxu0
      %v907 = vadd.f32 %v824, %v906
      %v908 = vpop.f32.mrb[0].mxu0
      %909 = vmatprep.mubr.f32.mxu0 0.0
      %910 = vmatmul.mubr.f32.gmra.mrb[0].mxu0 %v831
      %v911 = vpop.f32.mrb[0].mxu0
      %v912 = vadd.f32 %v824, %v911
      %v913 = vpop.f32.mrb[0].mxu0
      %914 = vmatprep.mubr.f32.mxu0 0.0
      %915 = vmatmul.mubr.f32.gmra.mrb[0].mxu0 %v833
      %v916 = vpop.f32.mrb[0].mxu0
      %v917 = vadd.f32 %v824, %v916
      %v918 = vpop.f32.mrb[0].mxu0
      %919 = vdwg.mxu0
      %v920 = vadd.f32 %v902, %v323
      %v921 = vadd.f32 %v907, %v324
      %v922 = vadd.f32 %v912, %v325
      %v923 = vadd.f32 %v917, %v326
      %v924 = vld [vmem:[%s2] sm:$0xff]
      %v925 = vld [vmem:[%s2 + $0x8] sm:$0xff]
      %v926 = vld [vmem:[%s2 + $0x10] sm:$0xff]
      %v927 = vld [vmem:[%s2 + $0x18] sm:$0xff]
      %v928 = vld [vmem:[%s2 + $0x20] sm:$0xff]
      %v929 = vld [vmem:[%s2 + $0x28] sm:$0xff]
      %v930 = vld [vmem:[%s2 + $0x30] sm:$0xff]
      %v931 = vld [vmem:[%s2 + $0x38] sm:$0xff]
      %v932 = vld [vmem:[%s2 + $0x40] sm:$0xff]
      %v933 = vld [vmem:[%s2 + $0x48] sm:$0xff]
      %v934 = vld [vmem:[%s2 + $0x50] sm:$0xff]
      %v935 = vld [vmem:[%s2 + $0x58] sm:$0xff]
      %v936 = vld [vmem:[%s2 + $0x60] sm:$0xff]
      %v937 = vld [vmem:[%s2 + $0x68] sm:$0xff]
      %v938 = vld [vmem:[%s2 + $0x70] sm:$0xff]
      %v939 = vld [vmem:[%s2 + $0x78] sm:$0xff]
      %s940 = scalar_lea.vmem %s2, 128
      %v941 = vld [vmem:[%s940] ss:$8 sm:$0x3]
      %v943 = vlaneseq
      %v944 = vshrl.u32 %v943, 7
      %v945 = vsub.s32 0, %v944
      %v946 = vrot.slane %v941, %v945
      %v947 = vlaneseq
      %v948 = vshrl.u32 %v947, 7
      %v949 = vsub.s32 1, %v948
      %v950 = vrot.slane %v941, %v949
      %v954 = vsel %vm825, %v920, 0
      %v957 = vsel %vm825, %v921, 0
      %v960 = vsel %vm825, %v922, 0
      %v963 = vsel %vm825, %v923, 0
      %965 = vmatprep.subr.mxu0 %v925
      %966 = vmatpush1.msra.mxu0 %v924
      %967 = vmatprep.subr.mxu0 %v927
      %968 = vmatpush1.msra.mxu0 %v926
      %969 = vmatprep.subr.mxu0 %v929
      %970 = vmatpush1.msra.mxu0 %v928
      %971 = vmatprep.subr.mxu0 %v931
      %972 = vmatpush1.msra.mxu0 %v930
      %973 = vmatprep.subr.mxu0 %v933
      %974 = vmatpush1.msra.mxu0 %v932
      %975 = vmatprep.subr.mxu0 %v935
      %976 = vmatpush1.msra.mxu0 %v934
      %977 = vmatprep.subr.mxu0 %v937
      %978 = vmatpush1.msra.mxu0 %v936
      %979 = vmatprep.subr.mxu0 %v939
      %980 = vmatpush1.msra.mxu0 %v938
      %981 = vmatprep.subr.mxu0 0.0
      %982 = vmatpush1.msra.mxu0 0.0
      %983 = vmatprep.subr.mxu0 0.0
      %984 = vmatpush1.msra.mxu0 0.0
      %985 = vmatprep.subr.mxu0 0.0
      %986 = vmatpush1.msra.mxu0 0.0
      %987 = vmatprep.subr.mxu0 0.0
      %988 = vmatpush1.msra.mxu0 0.0
      %989 = vmatprep.subr.mxu0 0.0
      %990 = vmatpush1.msra.mxu0 0.0
      %991 = vmatprep.subr.mxu0 0.0
      %992 = vmatpush1.msra.mxu0 0.0
      %993 = vmatprep.subr.mxu0 0.0
      %994 = vmatpush1.msra.mxu0 0.0
      %995 = vmatprep.subr.mxu0 0.0
      %996 = vmatpush1.msra.mxu0 0.0
      %997 = vmatprep.subr.mxu0 0.0
      %998 = vmatpush1.msra.mxu0 0.0
      %999 = vmatprep.subr.mxu0 0.0
      %1000 = vmatpush1.msra.mxu0 0.0
      %1001 = vmatprep.subr.mxu0 0.0
      %1002 = vmatpush1.msra.mxu0 0.0
      %1003 = vmatprep.subr.mxu0 0.0
      %1004 = vmatpush1.msra.mxu0 0.0
      %1005 = vmatprep.subr.mxu0 0.0
      %1006 = vmatpush1.msra.mxu0 0.0
      %1007 = vmatprep.subr.mxu0 0.0
      %1008 = vmatpush1.msra.mxu0 0.0
      %1009 = vmatprep.subr.mxu0 0.0
      %1010 = vmatpush1.msra.mxu0 0.0
      %1011 = vmatprep.subr.mxu0 0.0
      %1012 = vmatpush1.msra.mxu0 0.0
      %1013 = vmatprep.subr.mxu0 0.0
      %1014 = vmatpush1.msra.mxu0 0.0
      %1015 = vmatprep.subr.mxu0 0.0
      %1016 = vmatpush1.msra.mxu0 0.0
      %1017 = vmatprep.subr.mxu0 0.0
      %1018 = vmatpush1.msra.mxu0 0.0
      %1019 = vmatprep.subr.mxu0 0.0
      %1020 = vmatpush1.msra.mxu0 0.0
      %1021 = vmatprep.subr.mxu0 0.0
      %1022 = vmatpush1.msra.mxu0 0.0
      %1023 = vmatprep.subr.mxu0 0.0
      %1024 = vmatpush1.msra.mxu0 0.0
      %1025 = vmatprep.subr.mxu0 0.0
      %1026 = vmatpush1.msra.mxu0 0.0
      %1027 = vmatprep.subr.mxu0 0.0
      %1028 = vmatpush1.msra.mxu0 0.0
      %1029 = vmatprep.mubr.f32.mxu0 0.0
      %1030 = vmatmul.mubr.f32.gmra.mrb[0].mxu0 %v954
      %v1031 = vpop.f32.mrb[0].mxu0
      %v1032 = vadd.f32 %v946, %v1031
      %v1033 = vpop.f32.mrb[0].mxu0
      %v1034 = vadd.f32 %v950, %v1033
      %1035 = vmatprep.mubr.f32.mxu0 0.0
      %1036 = vmatmul.mubr.f32.gmra.mrb[0].mxu0 %v957
      %v1037 = vpop.f32.mrb[0].mxu0
      %v1038 = vadd.f32 %v946, %v1037
      %v1039 = vpop.f32.mrb[0].mxu0
      %v1040 = vadd.f32 %v950, %v1039
      %1041 = vmatprep.mubr.f32.mxu0 0.0
      %1042 = vmatmul.mubr.f32.gmra.mrb[0].mxu0 %v960
      %v1043 = vpop.f32.mrb[0].mxu0
      %v1044 = vadd.f32 %v946, %v1043
      %v1045 = vpop.f32.mrb[0].mxu0
      %v1046 = vadd.f32 %v950, %v1045
      %1047 = vmatprep.mubr.f32.mxu0 0.0
      %1048 = vmatmul.mubr.f32.gmra.mrb[0].mxu0 %v963
      %v1049 = vpop.f32.mrb[0].mxu0
      %v1050 = vadd.f32 %v946, %v1049
      %v1051 = vpop.f32.mrb[0].mxu0
      %v1052 = vadd.f32 %v950, %v1051
      %1053 = vdwg.mxu0
      %v1054 = vadd.f32 %v1032, 3.0
      %v1055 = vadd.f32 %v1034, 3.0
      %v1056 = vadd.f32 %v1038, 3.0
      %v1057 = vadd.f32 %v1040, 3.0
      %v1058 = vadd.f32 %v1044, 3.0
      %v1059 = vadd.f32 %v1046, 3.0
      %v1060 = vadd.f32 %v1050, 3.0
      %v1061 = vadd.f32 %v1052, 3.0
      %v1062 = vmax.f32 %v1054, 0.0
      %v1063 = vmax.f32 %v1055, 0.0
      %v1064 = vmax.f32 %v1056, 0.0
      %v1065 = vmax.f32 %v1057, 0.0
      %v1066 = vmax.f32 %v1058, 0.0
      %v1067 = vmax.f32 %v1059, 0.0
      %v1068 = vmax.f32 %v1060, 0.0
      %v1069 = vmax.f32 %v1061, 0.0
      %v1070 = vmin.f32 %v1062, 6.0
      %v1071 = vmin.f32 %v1063, 6.0
      %v1072 = vmin.f32 %v1064, 6.0
      %v1073 = vmin.f32 %v1065, 6.0
      %v1074 = vmin.f32 %v1066, 6.0
      %v1075 = vmin.f32 %v1067, 6.0
      %v1076 = vmin.f32 %v1068, 6.0
      %v1077 = vmin.f32 %v1069, 6.0
      %v1078 = vmul.f32 %v1032, %v1070
      %v1079 = vmul.f32 %v1034, %v1071
      %v1080 = vmul.f32 %v1038, %v1072
      %v1081 = vmul.f32 %v1040, %v1073
      %v1082 = vmul.f32 %v1044, %v1074
      %v1083 = vmul.f32 %v1046, %v1075
      %v1084 = vmul.f32 %v1050, %v1076
      %v1085 = vmul.f32 %v1052, %v1077
      %v1086 = vmul.f32 %v1078, 0.16666667
      %v1087 = vmul.f32 %v1079, 0.16666667
      %v1088 = vmul.f32 %v1080, 0.16666667
      %v1089 = vmul.f32 %v1081, 0.16666667
      %v1090 = vmul.f32 %v1082, 0.16666667
      %v1091 = vmul.f32 %v1083, 0.16666667
      %v1092 = vmul.f32 %v1084, 0.16666667
      %v1093 = vmul.f32 %v1085, 0.16666667
      %v1094 = vld [vmem:[%s2 + $0x90] sm:$0xff]
      %v1095 = vld [vmem:[%s2 + $0x98] sm:$0xff]
      %v1096 = vld [vmem:[%s2 + $0xa0] sm:$0x1]
      %v1097 = vld [vmem:[%s2 + $0xa8] sm:$0x1]
      %1100 = vrot.lane.b32.xlu0 %v1086, 24
      %v1101 = vpop.permute.xlu0 %1100
      %1102 = vrot.lane.b32.xlu0 %v1087, 24
      %v1103 = vpop.permute.xlu0 %1102
      %vm1104 = vcmask 195584
      %v1105 = vsel %vm1104, %v1101, %v1103
      %v1107 = vsel %vm1104, 0.0, %v1101
      %v1109 = vrot.slane %v1107, 7
      %v1110 = vrot.slane %v1105, 7
      %v1113 = vsel %vm341, 0.0, %v1109
      %v1114 = vsel %vm341, 0.0, %v1110
      %1117 = vrot.lane.b32.xlu0 %v1088, 24
      %v1118 = vpop.permute.xlu0 %1117
      %1119 = vrot.lane.b32.xlu0 %v1089, 24
      %v1120 = vpop.permute.xlu0 %1119
      %v1121 = vsel %vm1104, %v1118, %v1120
      %v1123 = vsel %vm1104, 0.0, %v1118
      %v1125 = vrot.slane %v1123, 7
      %v1126 = vrot.slane %v1121, 7
      %v1129 = vsel %vm341, 0.0, %v1125
      %v1130 = vsel %vm341, 0.0, %v1126
      %1133 = vrot.lane.b32.xlu0 %v1090, 24
      %v1134 = vpop.permute.xlu0 %1133
      %1135 = vrot.lane.b32.xlu0 %v1091, 24
      %v1136 = vpop.permute.xlu0 %1135
      %v1137 = vsel %vm1104, %v1134, %v1136
      %v1139 = vsel %vm1104, 0.0, %v1134
      %v1141 = vrot.slane %v1139, 7
      %v1142 = vrot.slane %v1137, 7
      %v1145 = vsel %vm341, 0.0, %v1141
      %v1146 = vsel %vm341, 0.0, %v1142
      %1149 = vrot.lane.b32.xlu0 %v1092, 24
      %v1150 = vpop.permute.xlu0 %1149
      %1151 = vrot.lane.b32.xlu0 %v1093, 24
      %v1152 = vpop.permute.xlu0 %1151
      %v1153 = vsel %vm1104, %v1150, %v1152
      %v1155 = vsel %vm1104, 0.0, %v1150
      %v1157 = vrot.slane %v1155, 7
      %v1158 = vrot.slane %v1153, 7
      %v1161 = vsel %vm341, 0.0, %v1157
      %v1162 = vsel %vm341, 0.0, %v1158
      %v1163 = vlaneseq
      %v1164 = vshrl.u32 %v1163, 7
      %v1165 = vsub.s32 0, %v1164
      %v1166 = vrot.slane %v1094, %v1165
      %v1167 = vlaneseq
      %v1168 = vshrl.u32 %v1167, 7
      %v1169 = vsub.s32 0, %v1168
      %v1170 = vrot.slane %v1095, %v1169
      %v1171 = vmul.f32 %v1161, %v1166
      %v1172 = vmul.f32 %v1162, %v1170
      %v1173 = vadd.f32 %v1171, 0.0
      %v1174 = vadd.f32 %v1172, 0.0
      %v1175 = vlaneseq
      %v1176 = vshrl.u32 %v1175, 7
      %v1177 = vsub.s32 1, %v1176
      %v1178 = vrot.slane %v1094, %v1177
      %v1179 = vlaneseq
      %v1180 = vshrl.u32 %v1179, 7
      %v1181 = vsub.s32 1, %v1180
      %v1182 = vrot.slane %v1095, %v1181
      %1185 = vrot.lane.b32.xlu0 %v1178, 24
      %v1186 = vpop.permute.xlu0 %1185
      %1187 = vrot.lane.b32.xlu0 %v1182, 24
      %v1188 = vpop.permute.xlu0 %1187
      %v1189 = vsel %vm1104, %v1186, %v1188
      %v1192 = vmul.f32 %v1145, %v1186
      %v1193 = vmul.f32 %v1146, %v1189
      %1196 = vrot.lane.b32.xlu0 %v1192, 104
      %v1197 = vpop.permute.xlu0 %1196
      %1198 = vrot.lane.b32.xlu0 %v1193, 104
      %v1199 = vpop.permute.xlu0 %1198
      %vm1200 = vcmask 850944
      %v1201 = vsel %vm1200, %v1197, %v1199
      %v1204 = vadd.f32 %v1173, %v1201
      %v1205 = vadd.f32 %v1174, %v1199
      %v1206 = vlaneseq
      %v1207 = vshrl.u32 %v1206, 7
      %v1208 = vsub.s32 2, %v1207
      %v1209 = vrot.slane %v1094, %v1208
      %v1210 = vlaneseq
      %v1211 = vshrl.u32 %v1210, 7
      %v1212 = vsub.s32 2, %v1211
      %v1213 = vrot.slane %v1095, %v1212
      %1216 = vrot.lane.b32.xlu0 %v1209, 24
      %v1217 = vpop.permute.xlu0 %1216
      %1218 = vrot.lane.b32.xlu0 %v1213, 24
      %v1219 = vpop.permute.xlu0 %1218
      %v1220 = vsel %vm1104, %v1217, %v1219
      %v1223 = vmul.f32 %v1161, %v1217
      %v1224 = vmul.f32 %v1162, %v1220
      %1227 = vrot.lane.b32.xlu0 %v1223, 104
      %v1228 = vpop.permute.xlu0 %1227
      %1229 = vrot.lane.b32.xlu0 %v1224, 104
      %v1230 = vpop.permute.xlu0 %1229
      %v1231 = vsel %vm1200, %v1228, %v1230
      %v1234 = vadd.f32 %v1204, %v1231
      %v1235 = vadd.f32 %v1205, %v1230
      %v1236 = vlaneseq
      %v1237 = vshrl.u32 %v1236, 7
      %v1238 = vsub.s32 3, %v1237
      %v1239 = vrot.slane %v1094, %v1238
      %v1240 = vlaneseq
      %v1241 = vshrl.u32 %v1240, 7
      %v1242 = vsub.s32 3, %v1241
      %v1243 = vrot.slane %v1095, %v1242
      %v1244 = vmul.f32 %v1129, %v1239
      %v1245 = vmul.f32 %v1130, %v1243
      %v1246 = vmul.f32 %v1125, %v1239
      %v1247 = vmul.f32 %v1126, %v1243
      %v1252 = vrot.slane %v1244, 1
      %v1253 = vrot.slane %v1246, 1
      %v1254 = vsel %vm419, %v1252, %v1253
      %v1255 = vrot.slane %v1245, 1
      %v1256 = vrot.slane %v1247, 1
      %v1257 = vsel %vm419, %v1255, %v1256
      %v1260 = vadd.f32 %v1234, %v1254
      %v1261 = vadd.f32 %v1235, %v1257
      %v1262 = vlaneseq
      %v1263 = vshrl.u32 %v1262, 7
      %v1264 = vsub.s32 4, %v1263
      %v1265 = vrot.slane %v1094, %v1264
      %v1266 = vlaneseq
      %v1267 = vshrl.u32 %v1266, 7
      %v1268 = vsub.s32 4, %v1267
      %v1269 = vrot.slane %v1095, %v1268
      %1272 = vrot.lane.b32.xlu0 %v1265, 24
      %v1273 = vpop.permute.xlu0 %1272
      %1274 = vrot.lane.b32.xlu0 %v1269, 24
      %v1275 = vpop.permute.xlu0 %1274
      %v1276 = vsel %vm1104, %v1273, %v1275
      %v1279 = vmul.f32 %v1113, %v1273
      %v1280 = vmul.f32 %v1114, %v1276
      %v1281 = vmul.f32 %v1109, %v1273
      %v1282 = vmul.f32 %v1110, %v1276
      %v1287 = vrot.slane %v1279, 1
      %v1288 = vrot.slane %v1281, 1
      %v1289 = vsel %vm419, %v1287, %v1288
      %v1290 = vrot.slane %v1280, 1
      %v1291 = vrot.slane %v1282, 1
      %v1292 = vsel %vm419, %v1290, %v1291
      %1293 = vrot.lane.b32.xlu0 %v1289, 104
      %v1294 = vpop.permute.xlu0 %1293
      %1295 = vrot.lane.b32.xlu0 %v1292, 104
      %v1296 = vpop.permute.xlu0 %1295
      %v1297 = vsel %vm1200, %v1294, %v1296
      %v1300 = vadd.f32 %v1260, %v1297
      %v1301 = vadd.f32 %v1261, %v1296
      %v1302 = vlaneseq
      %v1303 = vshrl.u32 %v1302, 7
      %v1304 = vsub.s32 5, %v1303
      %v1305 = vrot.slane %v1094, %v1304
      %v1306 = vlaneseq
      %v1307 = vshrl.u32 %v1306, 7
      %v1308 = vsub.s32 5, %v1307
      %v1309 = vrot.slane %v1095, %v1308
      %1312 = vrot.lane.b32.xlu0 %v1305, 24
      %v1313 = vpop.permute.xlu0 %1312
      %1314 = vrot.lane.b32.xlu0 %v1309, 24
      %v1315 = vpop.permute.xlu0 %1314
      %v1316 = vsel %vm1104, %v1313, %v1315
      %v1319 = vmul.f32 %v1129, %v1313
      %v1320 = vmul.f32 %v1130, %v1316
      %v1321 = vmul.f32 %v1125, %v1313
      %v1322 = vmul.f32 %v1126, %v1316
      %v1327 = vrot.slane %v1319, 1
      %v1328 = vrot.slane %v1321, 1
      %v1329 = vsel %vm419, %v1327, %v1328
      %v1330 = vrot.slane %v1320, 1
      %v1331 = vrot.slane %v1322, 1
      %v1332 = vsel %vm419, %v1330, %v1331
      %1333 = vrot.lane.b32.xlu0 %v1329, 104
      %v1334 = vpop.permute.xlu0 %1333
      %1335 = vrot.lane.b32.xlu0 %v1332, 104
      %v1336 = vpop.permute.xlu0 %1335
      %v1337 = vsel %vm1200, %v1334, %v1336
      %v1340 = vadd.f32 %v1300, %v1337
      %v1341 = vadd.f32 %v1301, %v1336
      %v1342 = vlaneseq
      %v1343 = vshrl.u32 %v1342, 7
      %v1344 = vsub.s32 6, %v1343
      %v1345 = vrot.slane %v1094, %v1344
      %v1346 = vlaneseq
      %v1347 = vshrl.u32 %v1346, 7
      %v1348 = vsub.s32 6, %v1347
      %v1349 = vrot.slane %v1095, %v1348
      %v1350 = vmul.f32 %v1161, %v1345
      %v1351 = vmul.f32 %v1162, %v1349
      %v1352 = vmul.f32 %v1157, %v1345
      %v1353 = vmul.f32 %v1158, %v1349
      %v1358 = vrot.slane %v1350, 1
      %v1359 = vrot.slane %v1352, 1
      %v1360 = vsel %vm419, %v1358, %v1359
      %v1361 = vrot.slane %v1351, 1
      %v1362 = vrot.slane %v1353, 1
      %v1363 = vsel %vm419, %v1361, %v1362
      %v1366 = vadd.f32 %v1340, %v1360
      %v1367 = vadd.f32 %v1341, %v1363
      %v1368 = vlaneseq
      %v1369 = vshrl.u32 %v1368, 7
      %v1370 = vsub.s32 7, %v1369
      %v1371 = vrot.slane %v1094, %v1370
      %v1372 = vlaneseq
      %v1373 = vshrl.u32 %v1372, 7
      %v1374 = vsub.s32 7, %v1373
      %v1375 = vrot.slane %v1095, %v1374
      %1378 = vrot.lane.b32.xlu0 %v1371, 24
      %v1379 = vpop.permute.xlu0 %1378
      %1380 = vrot.lane.b32.xlu0 %v1375, 24
      %v1381 = vpop.permute.xlu0 %1380
      %v1382 = vsel %vm1104, %v1379, %v1381
      %v1385 = vmul.f32 %v1145, %v1379
      %v1386 = vmul.f32 %v1146, %v1382
      %v1387 = vmul.f32 %v1141, %v1379
      %v1388 = vmul.f32 %v1142, %v1382
      %v1393 = vrot.slane %v1385, 1
      %v1394 = vrot.slane %v1387, 1
      %v1395 = vsel %vm419, %v1393, %v1394
      %v1396 = vrot.slane %v1386, 1
      %v1397 = vrot.slane %v1388, 1
      %v1398 = vsel %vm419, %v1396, %v1397
      %1399 = vrot.lane.b32.xlu0 %v1395, 104
      %v1400 = vpop.permute.xlu0 %1399
      %1401 = vrot.lane.b32.xlu0 %v1398, 104
      %v1402 = vpop.permute.xlu0 %1401
      %v1403 = vsel %vm1200, %v1400, %v1402
      %v1406 = vadd.f32 %v1366, %v1403
      %v1407 = vadd.f32 %v1367, %v1402
      %v1408 = vlaneseq
      %v1409 = vshrl.u32 %v1408, 7
      %v1410 = vsub.s32 0, %v1409
      %v1411 = vrot.slane %v1096, %v1410
      %v1412 = vlaneseq
      %v1413 = vshrl.u32 %v1412, 7
      %v1414 = vsub.s32 0, %v1413
      %v1415 = vrot.slane %v1097, %v1414
      %1418 = vrot.lane.b32.xlu0 %v1411, 24
      %v1419 = vpop.permute.xlu0 %1418
      %1420 = vrot.lane.b32.xlu0 %v1415, 24
      %v1421 = vpop.permute.xlu0 %1420
      %v1422 = vsel %vm1104, %v1419, %v1421
      %v1425 = vmul.f32 %v1161, %v1419
      %v1426 = vmul.f32 %v1162, %v1422
      %v1427 = vmul.f32 %v1157, %v1419
      %v1428 = vmul.f32 %v1158, %v1422
      %v1433 = vrot.slane %v1425, 1
      %v1434 = vrot.slane %v1427, 1
      %v1435 = vsel %vm419, %v1433, %v1434
      %v1436 = vrot.slane %v1426, 1
      %v1437 = vrot.slane %v1428, 1
      %v1438 = vsel %vm419, %v1436, %v1437
      %1439 = vrot.lane.b32.xlu0 %v1435, 104
      %v1440 = vpop.permute.xlu0 %1439
      %1441 = vrot.lane.b32.xlu0 %v1438, 104
      %v1442 = vpop.permute.xlu0 %1441
      %v1443 = vsel %vm1200, %v1440, %v1442
      %v1446 = vadd.f32 %v1406, %v1443
      %v1447 = vadd.f32 %v1407, %v1442
      %s1448 = scalar_lea.vmem %s2, 176
      %v1449 = vld [vmem:[%s1448] ss:$8 sm:$0x3]
      %v1451 = vlaneseq
      %v1452 = vshrl.u32 %v1451, 7
      %v1453 = vsub.s32 0, %v1452
      %v1454 = vrot.slane %v1449, %v1453
      %v1455 = vlaneseq
      %v1456 = vshrl.u32 %v1455, 7
      %v1457 = vsub.s32 1, %v1456
      %v1458 = vrot.slane %v1449, %v1457
      %v1461 = vadd.f32 %v1446, %v1454
      %v1462 = vadd.f32 %v1447, %v1458
      %v1463 = vadd.f32 %v1461, 3.0
      %v1464 = vadd.f32 %v1462, 3.0
      %v1465 = vmax.f32 %v1463, 0.0
      %v1466 = vmax.f32 %v1464, 0.0
      %v1467 = vmin.f32 %v1465, 6.0
      %v1468 = vmin.f32 %v1466, 6.0
      %v1469 = vmul.f32 %v1461, %v1467
      %v1470 = vmul.f32 %v1462, %v1468
      %v1471 = vmul.f32 %v1469, 0.16666667
      %v1472 = vmul.f32 %v1470, 0.16666667
      %1474 = vrot.lane.b32.xlu0 %v1471, 104
      %v1475 = vpop.permute.xlu0 %1474
      %v1477 = vadd.f32 %v1471, %v1475
      %1478 = vrot.lane.b32.xlu0 %v1471, 80
      %v1479 = vpop.permute.xlu0 %1478
      %v1481 = vadd.f32 %v1477, %v1479
      %1482 = vrot.lane.b32.xlu0 %v1471, 56
      %v1483 = vpop.permute.xlu0 %1482
      %v1485 = vadd.f32 %v1481, %v1483
      %1486 = vrot.lane.b32.xlu0 %v1471, 32
      %v1487 = vpop.permute.xlu0 %1486
      %v1489 = vadd.f32 %v1485, %v1487
      %1491 = vrot.lane.b32.xlu0 %v1471, 8
      %v1492 = vpop.permute.xlu0 %1491
      %1493 = vrot.lane.b32.xlu0 %v1472, 8
      %v1494 = vpop.permute.xlu0 %1493
      %v1495 = vsel %vm334, %v1492, %v1494
      %v1497 = vadd.f32 %v1489, %v1495
      %1498 = vrot.lane.b32.xlu0 %v1472, 112
      %v1499 = vpop.permute.xlu0 %1498
      %v1501 = vadd.f32 %v1497, %v1499
      %1502 = vrot.lane.b32.xlu0 %v1472, 88
      %v1503 = vpop.permute.xlu0 %1502
      %v1505 = vadd.f32 %v1501, %v1503
      %v1506 = vmul.f32 %v1505, 0.125
      %v1507 = vsel %vm1104, %v1471, 0.0
      %v1508 = vrot.slane %v1507, 4
      %v1509 = vadd.f32 %v1507, %v1508
      %v1510 = vrot.slane %v1509, 2
      %v1511 = vadd.f32 %v1509, %v1510
      %v1512 = vrot.slane %v1511, 1
      %v1513 = vadd.f32 %v1511, %v1512
      %v1514 = vrcp.pop 8.0
      %v1515 = vmul.f32 %v1513, %v1514
      %vm1516 = vcmask 392384
      %v1517 = vsel %vm1516, %v1471, 0.0
      %v1518 = vrot.slane %v1517, 4
      %v1519 = vadd.f32 %v1517, %v1518
      %v1520 = vrot.slane %v1519, 2
      %v1521 = vadd.f32 %v1519, %v1520
      %v1522 = vrot.slane %v1521, 1
      %v1523 = vadd.f32 %v1521, %v1522
      %v1524 = vmul.f32 %v1523, %v1514
      %vm1525 = vcmask 589184
      %v1526 = vsel %vm1525, %v1471, 0.0
      %v1527 = vrot.slane %v1526, 4
      %v1528 = vadd.f32 %v1526, %v1527
      %v1529 = vrot.slane %v1528, 2
      %v1530 = vadd.f32 %v1528, %v1529
      %v1531 = vrot.slane %v1530, 1
      %v1532 = vadd.f32 %v1530, %v1531
      %v1533 = vmul.f32 %v1532, %v1514
      %vm1534 = vcmask 785984
      %v1535 = vsel %vm1534, %v1471, 0.0
      %v1536 = vrot.slane %v1535, 4
      %v1537 = vadd.f32 %v1535, %v1536
      %v1538 = vrot.slane %v1537, 2
      %v1539 = vadd.f32 %v1537, %v1538
      %v1540 = vrot.slane %v1539, 1
      %v1541 = vadd.f32 %v1539, %v1540
      %v1542 = vmul.f32 %v1541, %v1514
      %vm1543 = vcmask 982784
      %v1544 = vsel %vm1543, %v1471, 0.0
      %v1545 = vrot.slane %v1544, 4
      %v1546 = vadd.f32 %v1544, %v1545
      %v1547 = vrot.slane %v1546, 2
      %v1548 = vadd.f32 %v1546, %v1547
      %v1549 = vrot.slane %v1548, 1
      %v1550 = vadd.f32 %v1548, %v1549
      %v1551 = vmul.f32 %v1550, %v1514
      %vm1552 = vcmask 1048512
      %v1553 = vsel %vm1552, %v1471, 0.0
      %v1554 = vrot.slane %v1553, 4
      %v1555 = vadd.f32 %v1553, %v1554
      %v1556 = vrot.slane %v1555, 2
      %v1557 = vadd.f32 %v1555, %v1556
      %v1558 = vrot.slane %v1557, 1
      %v1559 = vadd.f32 %v1557, %v1558
      %vm1560 = vcmask 130048
      %v1561 = vsel %vm1560, %v1472, 0.0
      %v1562 = vrot.slane %v1561, 4
      %v1563 = vadd.f32 %v1561, %v1562
      %v1564 = vrot.slane %v1563, 2
      %v1565 = vadd.f32 %v1563, %v1564
      %v1566 = vrot.slane %v1565, 1
      %v1567 = vadd.f32 %v1565, %v1566
      %v1568 = vmul.f32 %v1559, %v1514
      %v1569 = vmul.f32 %v1567, %v1514
      %vm1570 = vcmask 326784
      %v1571 = vsel %vm1570, %v1472, 0.0
      %v1572 = vrot.slane %v1571, 4
      %v1573 = vadd.f32 %v1571, %v1572
      %v1574 = vrot.slane %v1573, 2
      %v1575 = vadd.f32 %v1573, %v1574
      %v1576 = vrot.slane %v1575, 1
      %v1577 = vadd.f32 %v1575, %v1576
      %v1578 = vmul.f32 %v1577, %v1514
      %vm1579 = vcmask 523584
      %v1580 = vsel %vm1579, %v1472, 0.0
      %v1581 = vrot.slane %v1580, 4
      %v1582 = vadd.f32 %v1580, %v1581
      %v1583 = vrot.slane %v1582, 2
      %v1584 = vadd.f32 %v1582, %v1583
      %v1585 = vrot.slane %v1584, 1
      %v1586 = vadd.f32 %v1584, %v1585
      %v1587 = vmul.f32 %v1586, %v1514
      %1589 = vrot.lane.b32.xlu0 %v1524, 104
      %v1590 = vpop.permute.xlu0 %1589
      %1593 = vrot.lane.b32.xlu0 %v1533, 80
      %v1594 = vpop.permute.xlu0 %1593
      %1597 = vrot.lane.b32.xlu0 %v1542, 56
      %v1598 = vpop.permute.xlu0 %1597
      %1601 = vrot.lane.b32.xlu0 %v1551, 32
      %v1602 = vpop.permute.xlu0 %1601
      %1606 = vrot.lane.b32.xlu0 %v1568, 8
      %v1607 = vpop.permute.xlu0 %1606
      %1608 = vrot.lane.b32.xlu0 %v1569, 8
      %v1609 = vpop.permute.xlu0 %1608
      %v1610 = vsel %vm334, %v1607, %v1609
      %1613 = vrot.lane.b32.xlu0 %v1578, 112
      %v1614 = vpop.permute.xlu0 %1613
      %1617 = vrot.lane.b32.xlu0 %v1587, 88
      %v1618 = vpop.permute.xlu0 %1617
      %v1620 = vsel %vm341, %v1515, %v1590
      %vm1621 = vcmask 1041408
      %v1622 = vsel %vm1621, %v1620, %v1594
      %vm1623 = vcmask 1042432
      %v1624 = vsel %vm1623, %v1622, %v1598
      %vm1625 = vcmask 1043456
      %v1626 = vsel %vm1625, %v1624, %v1602
      %vm1627 = vcmask 1044480
      %v1628 = vsel %vm1627, %v1626, %v1610
      %vm1629 = vcmask 1045504
      %v1630 = vsel %vm1629, %v1628, %v1614
      %v1631 = vsel %vm419, %v1630, %v1618
      %v1632 = vld [vmem:[%s1 + $0x140] sm:$0xff]
      %v1633 = vld [vmem:[%s1 + $0x148] sm:$0xff]
      %v1634 = vld [vmem:[%s1 + $0x150] sm:$0xff]
      %v1635 = vld [vmem:[%s1 + $0x158] sm:$0x1]
      %v1636 = vlaneseq
      %v1637 = vshrl.u32 %v1636, 7
      %v1638 = vsub.s32 0, %v1637
      %v1639 = vrot.slane %v1635, %v1638
      %v1641 = vsel %vm1104, %v1506, 0
      %v1644 = vsel %vm1104, %v1631, 0
      %1646 = vmatprep.subr.mxu0 0.0
      %1647 = vmatpush1.msra.mxu0 %v1632
      %1648 = vmatprep.subr.mxu0 0.0
      %1649 = vmatpush1.msra.mxu0 %v1633
      %1650 = vmatprep.subr.mxu0 0.0
      %1651 = vmatpush1.msra.mxu0 %v1634
      %1652 = vmatprep.subr.mxu0 0.0
      %1653 = vmatpush1.msra.mxu0 0.0
      %1654 = vmatprep.subr.mxu0 0.0
      %1655 = vmatpush1.msra.mxu0 0.0
      %1656 = vmatprep.subr.mxu0 0.0
      %1657 = vmatpush1.msra.mxu0 0.0
      %1658 = vmatprep.subr.mxu0 0.0
      %1659 = vmatpush1.msra.mxu0 0.0
      %1660 = vmatprep.subr.mxu0 0.0
      %1661 = vmatpush1.msra.mxu0 0.0
      %1662 = vmatprep.subr.mxu0 0.0
      %1663 = vmatpush1.msra.mxu0 0.0
      %1664 = vmatprep.subr.mxu0 0.0
      %1665 = vmatpush1.msra.mxu0 0.0
      %1666 = vmatprep.subr.mxu0 0.0
      %1667 = vmatpush1.msra.mxu0 0.0
      %1668 = vmatprep.subr.mxu0 0.0
      %1669 = vmatpush1.msra.mxu0 0.0
      %1670 = vmatprep.subr.mxu0 0.0
      %1671 = vmatpush1.msra.mxu0 0.0
      %1672 = vmatprep.subr.mxu0 0.0
      %1673 = vmatpush1.msra.mxu0 0.0
      %1674 = vmatprep.subr.mxu0 0.0
      %1675 = vmatpush1.msra.mxu0 0.0
      %1676 = vmatprep.subr.mxu0 0.0
      %1677 = vmatpush1.msra.mxu0 0.0
      %1678 = vmatprep.subr.mxu0 0.0
      %1679 = vmatpush1.msra.mxu0 0.0
      %1680 = vmatprep.subr.mxu0 0.0
      %1681 = vmatpush1.msra.mxu0 0.0
      %1682 = vmatprep.subr.mxu0 0.0
      %1683 = vmatpush1.msra.mxu0 0.0
      %1684 = vmatprep.subr.mxu0 0.0
      %1685 = vmatpush1.msra.mxu0 0.0
      %1686 = vmatprep.subr.mxu0 0.0
      %1687 = vmatpush1.msra.mxu0 0.0
      %1688 = vmatprep.subr.mxu0 0.0
      %1689 = vmatpush1.msra.mxu0 0.0
      %1690 = vmatprep.subr.mxu0 0.0
      %1691 = vmatpush1.msra.mxu0 0.0
      %1692 = vmatprep.subr.mxu0 0.0
      %1693 = vmatpush1.msra.mxu0 0.0
      %1694 = vmatprep.subr.mxu0 0.0
      %1695 = vmatpush1.msra.mxu0 0.0
      %1696 = vmatprep.subr.mxu0 0.0
      %1697 = vmatpush1.msra.mxu0 0.0
      %1698 = vmatprep.subr.mxu0 0.0
      %1699 = vmatpush1.msra.mxu0 0.0
      %1700 = vmatprep.subr.mxu0 0.0
      %1701 = vmatpush1.msra.mxu0 0.0
      %1702 = vmatprep.subr.mxu0 0.0
      %1703 = vmatpush1.msra.mxu0 0.0
      %1704 = vmatprep.subr.mxu0 0.0
      %1705 = vmatpush1.msra.mxu0 0.0
      %1706 = vmatprep.subr.mxu0 0.0
      %1707 = vmatpush1.msra.mxu0 0.0
      %1708 = vmatprep.subr.mxu0 0.0
      %1709 = vmatpush1.msra.mxu0 0.0
      %1710 = vmatprep.mubr.f32.mxu0 0.0
      %1711 = vmatmul.mubr.f32.gmra.mrb[0].mxu0 %v1641
      %v1712 = vpop.f32.mrb[0].mxu0
      %v1713 = vadd.f32 %v1639, %v1712
      %v1714 = vpop.f32.mrb[0].mxu0
      %1715 = vmatprep.mubr.f32.mxu0 0.0
      %1716 = vmatmul.mubr.f32.gmra.mrb[0].mxu0 %v1644
      %v1717 = vpop.f32.mrb[0].mxu0
      %v1718 = vadd.f32 %v1639, %v1717
      %v1719 = vpop.f32.mrb[0].mxu0
      %1720 = vdwg.mxu0
      %v1721 = vadd.f32 %v1713, 3.0
      %v1722 = vadd.f32 %v1718, 3.0
      %v1723 = vmax.f32 %v1721, 0.0
      %v1724 = vmax.f32 %v1722, 0.0
      %v1725 = vmin.f32 %v1723, 6.0
      %v1726 = vmin.f32 %v1724, 6.0
      %v1727 = vmul.f32 %v1713, %v1725
      %v1728 = vmul.f32 %v1718, %v1726
      %v1729 = vmul.f32 %v1727, 0.16666667
      %v1730 = vmul.f32 %v1728, 0.16666667
      %v1731 = vld [vmem:[%s1 + $0x160] sm:$0xff]
      %v1732 = vld [vmem:[%s1 + $0x168] sm:$0x1]
      %v1733 = vlaneseq
      %v1734 = vshrl.u32 %v1733, 7
      %v1735 = vsub.s32 0, %v1734
      %v1736 = vrot.slane %v1732, %v1735
      %v1738 = vsel %vm334, %v1729, 0
      %v1741 = vsel %vm334, %v1730, 0
      %1743 = vmatprep.subr.mxu0 0.0
      %1744 = vmatpush1.msra.mxu0 %v1731
      %1745 = vmatprep.subr.mxu0 0.0
      %1746 = vmatpush1.msra.mxu0 0.0
      %1747 = vmatprep.subr.mxu0 0.0
      %1748 = vmatpush1.msra.mxu0 0.0
      %1749 = vmatprep.subr.mxu0 0.0
      %1750 = vmatpush1.msra.mxu0 0.0
      %1751 = vmatprep.subr.mxu0 0.0
      %1752 = vmatpush1.msra.mxu0 0.0
      %1753 = vmatprep.subr.mxu0 0.0
      %1754 = vmatpush1.msra.mxu0 0.0
      %1755 = vmatprep.subr.mxu0 0.0
      %1756 = vmatpush1.msra.mxu0 0.0
      %1757 = vmatprep.subr.mxu0 0.0
      %1758 = vmatpush1.msra.mxu0 0.0
      %1759 = vmatprep.subr.mxu0 0.0
      %1760 = vmatpush1.msra.mxu0 0.0
      %1761 = vmatprep.subr.mxu0 0.0
      %1762 = vmatpush1.msra.mxu0 0.0
      %1763 = vmatprep.subr.mxu0 0.0
      %1764 = vmatpush1.msra.mxu0 0.0
      %1765 = vmatprep.subr.mxu0 0.0
      %1766 = vmatpush1.msra.mxu0 0.0
      %1767 = vmatprep.subr.mxu0 0.0
      %1768 = vmatpush1.msra.mxu0 0.0
      %1769 = vmatprep.subr.mxu0 0.0
      %1770 = vmatpush1.msra.mxu0 0.0
      %1771 = vmatprep.subr.mxu0 0.0
      %1772 = vmatpush1.msra.mxu0 0.0
      %1773 = vmatprep.subr.mxu0 0.0
      %1774 = vmatpush1.msra.mxu0 0.0
      %1775 = vmatprep.subr.mxu0 0.0
      %1776 = vmatpush1.msra.mxu0 0.0
      %1777 = vmatprep.subr.mxu0 0.0
      %1778 = vmatpush1.msra.mxu0 0.0
      %1779 = vmatprep.subr.mxu0 0.0
      %1780 = vmatpush1.msra.mxu0 0.0
      %1781 = vmatprep.subr.mxu0 0.0
      %1782 = vmatpush1.msra.mxu0 0.0
      %1783 = vmatprep.subr.mxu0 0.0
      %1784 = vmatpush1.msra.mxu0 0.0
      %1785 = vmatprep.subr.mxu0 0.0
      %1786 = vmatpush1.msra.mxu0 0.0
      %1787 = vmatprep.subr.mxu0 0.0
      %1788 = vmatpush1.msra.mxu0 0.0
      %1789 = vmatprep.subr.mxu0 0.0
      %1790 = vmatpush1.msra.mxu0 0.0
      %1791 = vmatprep.subr.mxu0 0.0
      %1792 = vmatpush1.msra.mxu0 0.0
      %1793 = vmatprep.subr.mxu0 0.0
      %1794 = vmatpush1.msra.mxu0 0.0
      %1795 = vmatprep.subr.mxu0 0.0
      %1796 = vmatpush1.msra.mxu0 0.0
      %1797 = vmatprep.subr.mxu0 0.0
      %1798 = vmatpush1.msra.mxu0 0.0
      %1799 = vmatprep.subr.mxu0 0.0
      %1800 = vmatpush1.msra.mxu0 0.0
      %1801 = vmatprep.subr.mxu0 0.0
      %1802 = vmatpush1.msra.mxu0 0.0
      %1803 = vmatprep.subr.mxu0 0.0
      %1804 = vmatpush1.msra.mxu0 0.0
      %1805 = vmatprep.subr.mxu0 0.0
      %1806 = vmatpush1.msra.mxu0 0.0
      %1807 = vmatprep.mubr.f32.mxu0 0.0
      %1808 = vmatmul.mubr.f32.gmra.mrb[0].mxu0 %v1738
      %v1809 = vpop.f32.mrb[0].mxu0
      %v1810 = vadd.f32 %v1736, %v1809
      %v1811 = vpop.f32.mrb[0].mxu0
      %1812 = vmatprep.mubr.f32.mxu0 0.0
      %1813 = vmatmul.mubr.f32.gmra.mrb[0].mxu0 %v1741
      %v1814 = vpop.f32.mrb[0].mxu0
      %v1815 = vadd.f32 %v1736, %v1814
      %v1816 = vpop.f32.mrb[0].mxu0
      %1817 = vdwg.mxu0
      %v1818 = vsub.f32 0.0, %v1810
      %v1819 = vsub.f32 0.0, %v1815
      %v1820 = vmul.f32 %v1818, 1.442695
      %v1821 = vpow.pop %v1820
      %v1822 = vmul.f32 %v1819, 1.442695
      %v1823 = vpow.pop %v1822
      %v1824 = vadd.f32 %v1821, 1.0
      %v1825 = vadd.f32 %v1823, 1.0
      %v1826 = vrcp.pop %v1824
      %v1827 = vmul.f32 1.0, %v1826
      %v1828 = vrcp.pop %v1825
      %v1829 = vmul.f32 1.0, %v1828
      %1831 = vrot.lane.b32.xlu0 %v1827, 24
      %v1832 = vpop.permute.xlu0 %1831
      %1834 = vrot.lane.b32.xlu0 %v1827, 48
      %v1835 = vpop.permute.xlu0 %1834
      %1837 = vrot.lane.b32.xlu0 %v1827, 72
      %v1838 = vpop.permute.xlu0 %1837
      %1840 = vrot.lane.b32.xlu0 %v1827, 96
      %v1841 = vpop.permute.xlu0 %1840
      %1843 = vrot.lane.b32.xlu0 %v1827, 120
      %v1844 = vpop.permute.xlu0 %1843
      %1846 = vrot.lane.b32.xlu0 %v1827, 16
      %v1847 = vpop.permute.xlu0 %1846
      %1849 = vrot.lane.b32.xlu0 %v1827, 40
      %v1850 = vpop.permute.xlu0 %1849
      %v1852 = vsel %vm1104, %v1827, %v1832
      %vm1853 = vcmask 392192
      %v1854 = vsel %vm1853, %v1852, %v1835
      %v1855 = vsel %vm336, %v1854, %v1838
      %vm1856 = vcmask 785408
      %v1857 = vsel %vm1856, %v1855, %v1841
      %vm1858 = vcmask 982016
      %v1859 = vsel %vm1858, %v1857, %v1844
      %v1860 = vsel %vm1560, %v1844, %v1847
      %vm1861 = vcmask 326656
      %v1862 = vsel %vm1861, %v1860, %v1850
      %1864 = vrot.lane.b32.xlu0 %v1829, 104
      %v1865 = vpop.permute.xlu0 %1864
      %v1867 = vrot.slane %v1829, 1
      %v1869 = vrot.slane %v1829, 2
      %1870 = vrot.lane.b32.xlu0 %v1869, 24
      %v1871 = vpop.permute.xlu0 %1870
      %v1873 = vrot.slane %v1829, 3
      %1874 = vrot.lane.b32.xlu0 %v1873, 48
      %v1875 = vpop.permute.xlu0 %1874
      %v1877 = vrot.slane %v1829, 4
      %1878 = vrot.lane.b32.xlu0 %v1877, 72
      %v1879 = vpop.permute.xlu0 %1878
      %v1881 = vrot.slane %v1829, 5
      %1882 = vrot.lane.b32.xlu0 %v1881, 96
      %v1883 = vpop.permute.xlu0 %1882
      %v1885 = vrot.slane %v1829, 6
      %1886 = vrot.lane.b32.xlu0 %v1885, 120
      %v1887 = vpop.permute.xlu0 %1886
      %v1889 = vrot.slane %v1829, 7
      %1890 = vrot.lane.b32.xlu0 %v1889, 16
      %v1891 = vpop.permute.xlu0 %1890
      %v1893 = vsel %vm1104, %v1865, %v1867
      %v1894 = vsel %vm1853, %v1893, %v1871
      %v1895 = vsel %vm336, %v1894, %v1875
      %v1896 = vsel %vm1856, %v1895, %v1879
      %v1897 = vsel %vm1858, %v1896, %v1883
      %v1898 = vsel %vm1560, %v1883, %v1887
      %v1899 = vsel %vm1861, %v1898, %v1891
      %v1900 = vmul.f32 %v1471, %v1859
      %v1901 = vmul.f32 %v1472, %v1862
      %v1902 = vlaneseq
      %v1903 = vshrl.u32 %v1902, 7
      %v1904 = vsub.s32 0, %v1903
      %v1905 = vrot.slane %v1897, %v1904
      %v1906 = vlaneseq
      %v1907 = vshrl.u32 %v1906, 7
      %v1908 = vsub.s32 0, %v1907
      %v1909 = vrot.slane %v1899, %v1908
      %v1910 = vmul.f32 %v1900, %v1905
      %v1911 = vmul.f32 %v1901, %v1909
      %v1912 = vld [vmem:[%s1 + $0x170] sm:$0xff]
      %v1913 = vld [vmem:[%s1 + $0x178] sm:$0xff]
      %v1914 = vld [vmem:[%s1 + $0x180] sm:$0xff]
      %v1915 = vld [vmem:[%s1 + $0x188] sm:$0xff]
      %v1916 = vld [vmem:[%s1 + $0x190] sm:$0xff]
      %v1917 = vld [vmem:[%s1 + $0x198] sm:$0xff]
      %v1918 = vld [vmem:[%s1 + $0x1a0] sm:$0xff]
      %v1919 = vld [vmem:[%s1 + $0x1a8] sm:$0xff]
      %v1920 = vld [vmem:[%s1 + $0x1b0] sm:$0xff]
      %v1921 = vld [vmem:[%s1 + $0x1b8] sm:$0xff]
      %v1922 = vld [vmem:[%s1 + $0x1c0] sm:$0xff]
      %v1923 = vld [vmem:[%s1 + $0x1c8] sm:$0xff]
      %v1924 = vld [vmem:[%s1 + $0x1d0] sm:$0xff]
      %v1925 = vld [vmem:[%s1 + $0x1d8] sm:$0xff]
      %v1926 = vld [vmem:[%s1 + $0x1e0] sm:$0xff]
      %v1927 = vld [vmem:[%s1 + $0x1e8] sm:$0xff]
      %v1928 = vld [vmem:[%s1 + $0x1f0] sm:$0xff]
      %v1929 = vld [vmem:[%s1 + $0x1f8] sm:$0xff]
      %v1930 = vld [vmem:[%s1 + $0x200] sm:$0xff]
      %v1931 = vld [vmem:[%s1 + $0x208] sm:$0xff]
      %v1932 = vld [vmem:[%s1 + $0x210] sm:$0xff]
      %v1933 = vld [vmem:[%s1 + $0x218] sm:$0xff]
      %v1934 = vld [vmem:[%s1 + $0x220] sm:$0xff]
      %v1935 = vld [vmem:[%s1 + $0x228] sm:$0xff]
      %v1936 = vld [vmem:[%s1 + $0x230] sm:$0x1]
      %v1937 = vlaneseq
      %v1938 = vshrl.u32 %v1937, 7
      %v1939 = vsub.s32 0, %v1938
      %v1940 = vrot.slane %v1936, %v1939
      %v1942 = vsel %vm825, %v1911, 0
      %1944 = vmatprep.subr.mxu0 0.0
      %1945 = vmatpush1.msra.mxu0 %v1912
      %1946 = vmatprep.subr.mxu0 0.0
      %1947 = vmatpush1.msra.mxu0 %v1913
      %1948 = vmatprep.subr.mxu0 0.0
      %1949 = vmatpush1.msra.mxu0 %v1914
      %1950 = vmatprep.subr.mxu0 0.0
      %1951 = vmatpush1.msra.mxu0 %v1915
      %1952 = vmatprep.subr.mxu0 0.0
      %1953 = vmatpush1.msra.mxu0 %v1916
      %1954 = vmatprep.subr.mxu0 0.0
      %1955 = vmatpush1.msra.mxu0 %v1917
      %1956 = vmatprep.subr.mxu0 0.0
      %1957 = vmatpush1.msra.mxu0 %v1918
      %1958 = vmatprep.subr.mxu0 0.0
      %1959 = vmatpush1.msra.mxu0 %v1919
      %1960 = vmatprep.subr.mxu0 0.0
      %1961 = vmatpush1.msra.mxu0 %v1920
      %1962 = vmatprep.subr.mxu0 0.0
      %1963 = vmatpush1.msra.mxu0 %v1921
      %1964 = vmatprep.subr.mxu0 0.0
      %1965 = vmatpush1.msra.mxu0 %v1922
      %1966 = vmatprep.subr.mxu0 0.0
      %1967 = vmatpush1.msra.mxu0 %v1923
      %1968 = vmatprep.subr.mxu0 0.0
      %1969 = vmatpush1.msra.mxu0 %v1924
      %1970 = vmatprep.subr.mxu0 0.0
      %1971 = vmatpush1.msra.mxu0 %v1925
      %1972 = vmatprep.subr.mxu0 0.0
      %1973 = vmatpush1.msra.mxu0 %v1926
      %1974 = vmatprep.subr.mxu0 0.0
      %1975 = vmatpush1.msra.mxu0 %v1927
      %1976 = vmatprep.subr.mxu0 0.0
      %1977 = vmatpush1.msra.mxu0 %v1928
      %1978 = vmatprep.subr.mxu0 0.0
      %1979 = vmatpush1.msra.mxu0 %v1929
      %1980 = vmatprep.subr.mxu0 0.0
      %1981 = vmatpush1.msra.mxu0 %v1930
      %1982 = vmatprep.subr.mxu0 0.0
      %1983 = vmatpush1.msra.mxu0 %v1931
      %1984 = vmatprep.subr.mxu0 0.0
      %1985 = vmatpush1.msra.mxu0 %v1932
      %1986 = vmatprep.subr.mxu0 0.0
      %1987 = vmatpush1.msra.mxu0 %v1933
      %1988 = vmatprep.subr.mxu0 0.0
      %1989 = vmatpush1.msra.mxu0 %v1934
      %1990 = vmatprep.subr.mxu0 0.0
      %1991 = vmatpush1.msra.mxu0 %v1935
      %1992 = vmatprep.subr.mxu0 0.0
      %1993 = vmatpush1.msra.mxu0 0.0
      %1994 = vmatprep.subr.mxu0 0.0
      %1995 = vmatpush1.msra.mxu0 0.0
      %1996 = vmatprep.subr.mxu0 0.0
      %1997 = vmatpush1.msra.mxu0 0.0
      %1998 = vmatprep.subr.mxu0 0.0
      %1999 = vmatpush1.msra.mxu0 0.0
      %2000 = vmatprep.subr.mxu0 0.0
      %2001 = vmatpush1.msra.mxu0 0.0
      %2002 = vmatprep.subr.mxu0 0.0
      %2003 = vmatpush1.msra.mxu0 0.0
      %2004 = vmatprep.subr.mxu0 0.0
      %2005 = vmatpush1.msra.mxu0 0.0
      %2006 = vmatprep.subr.mxu0 0.0
      %2007 = vmatpush1.msra.mxu0 0.0
      %2008 = vmatprep.mubr.f32.mxu0 %v1942
      %2009 = vmatmul.mubr.f32.gmra.mrb[0].mxu0 %v1910
      %v2010 = vpop.f32.mrb[0].mxu0
      %v2011 = vadd.f32 %v1940, %v2010
      %v2012 = vpop.f32.mrb[0].mxu0
      %2013 = vdwg.mxu0
      %v2014 = vld [vmem:[%s2 + $0xc0] sm:$0xff]
      %v2015 = vld [vmem:[%s2 + $0xc8] sm:$0xff]
      %v2016 = vld [vmem:[%s2 + $0xd0] sm:$0xff]
      %v2017 = vld [vmem:[%s2 + $0xd8] sm:$0xff]
      %v2018 = vld [vmem:[%s2 + $0xe0] sm:$0xff]
      %v2019 = vld [vmem:[%s2 + $0xe8] sm:$0xff]
      %v2020 = vld [vmem:[%s2 + $0xf0] sm:$0xff]
      %v2021 = vld [vmem:[%s2 + $0xf8] sm:$0xff]
      %v2022 = vld [vmem:[%s2 + $0x100] sm:$0xff]
      %v2023 = vld [vmem:[%s2 + $0x108] sm:$0xff]
      %v2024 = vld [vmem:[%s2 + $0x110] sm:$0xff]
      %v2025 = vld [vmem:[%s2 + $0x118] sm:$0xff]
      %v2026 = vld [vmem:[%s2 + $0x120] sm:$0xff]
      %v2027 = vld [vmem:[%s2 + $0x128] sm:$0xff]
      %v2028 = vld [vmem:[%s2 + $0x130] sm:$0xff]
      %v2029 = vld [vmem:[%s2 + $0x138] sm:$0xff]
      %v2030 = vld [vmem:[%s2 + $0x140] sm:$0xff]
      %v2031 = vld [vmem:[%s2 + $0x148] sm:$0xff]
      %v2032 = vld [vmem:[%s2 + $0x150] sm:$0xff]
      %v2033 = vld [vmem:[%s2 + $0x158] sm:$0xff]
      %v2034 = vld [vmem:[%s2 + $0x160] sm:$0xff]
      %v2035 = vld [vmem:[%s2 + $0x168] sm:$0xff]
      %v2036 = vld [vmem:[%s2 + $0x170] sm:$0xff]
      %v2037 = vld [vmem:[%s2 + $0x178] sm:$0xff]
      %v2038 = vld [vmem:[%s2 + $0x180] sm:$0xff]
      %v2039 = vld [vmem:[%s2 + $0x188] sm:$0xff]
      %v2040 = vld [vmem:[%s2 + $0x190] sm:$0xff]
      %v2041 = vld [vmem:[%s2 + $0x198] sm:$0xff]
      %v2042 = vld [vmem:[%s2 + $0x1a0] sm:$0xff]
      %v2043 = vld [vmem:[%s2 + $0x1a8] sm:$0xff]
      %v2044 = vld [vmem:[%s2 + $0x1b0] sm:$0xff]
      %v2045 = vld [vmem:[%s2 + $0x1b8] sm:$0xff]
      %s2046 = scalar_lea.vmem %s2, 448
      %v2047 = vld [vmem:[%s2046] ss:$8 sm:$0x3]
      %v2049 = vlaneseq
      %v2050 = vshrl.u32 %v2049, 7
      %v2051 = vsub.s32 0, %v2050
      %v2052 = vrot.slane %v2047, %v2051
      %v2053 = vlaneseq
      %v2054 = vshrl.u32 %v2053, 7
      %v2055 = vsub.s32 1, %v2054
      %v2056 = vrot.slane %v2047, %v2055
      %2059 = vmatprep.subr.mxu0 %v2015
      %2060 = vmatpush1.msra.mxu0 %v2014
      %2061 = vmatprep.subr.mxu0 %v2017
      %2062 = vmatpush1.msra.mxu0 %v2016
      %2063 = vmatprep.subr.mxu0 %v2019
      %2064 = vmatpush1.msra.mxu0 %v2018
      %2065 = vmatprep.subr.mxu0 %v2021
      %2066 = vmatpush1.msra.mxu0 %v2020
      %2067 = vmatprep.subr.mxu0 %v2023
      %2068 = vmatpush1.msra.mxu0 %v2022
      %2069 = vmatprep.subr.mxu0 %v2025
      %2070 = vmatpush1.msra.mxu0 %v2024
      %2071 = vmatprep.subr.mxu0 %v2027
      %2072 = vmatpush1.msra.mxu0 %v2026
      %2073 = vmatprep.subr.mxu0 %v2029
      %2074 = vmatpush1.msra.mxu0 %v2028
      %2075 = vmatprep.subr.mxu0 %v2031
      %2076 = vmatpush1.msra.mxu0 %v2030
      %2077 = vmatprep.subr.mxu0 %v2033
      %2078 = vmatpush1.msra.mxu0 %v2032
      %2079 = vmatprep.subr.mxu0 %v2035
      %2080 = vmatpush1.msra.mxu0 %v2034
      %2081 = vmatprep.subr.mxu0 %v2037
      %2082 = vmatpush1.msra.mxu0 %v2036
      %2083 = vmatprep.subr.mxu0 %v2039
      %2084 = vmatpush1.msra.mxu0 %v2038
      %2085 = vmatprep.subr.mxu0 %v2041
      %2086 = vmatpush1.msra.mxu0 %v2040
      %2087 = vmatprep.subr.mxu0 %v2043
      %2088 = vmatpush1.msra.mxu0 %v2042
      %2089 = vmatprep.subr.mxu0 %v2045
      %2090 = vmatpush1.msra.mxu0 %v2044
      %2091 = vmatprep.subr.mxu0 0.0
      %2092 = vmatpush1.msra.mxu0 0.0
      %2093 = vmatprep.subr.mxu0 0.0
      %2094 = vmatpush1.msra.mxu0 0.0
      %2095 = vmatprep.subr.mxu0 0.0
      %2096 = vmatpush1.msra.mxu0 0.0
      %2097 = vmatprep.subr.mxu0 0.0
      %2098 = vmatpush1.msra.mxu0 0.0
      %2099 = vmatprep.subr.mxu0 0.0
      %2100 = vmatpush1.msra.mxu0 0.0
      %2101 = vmatprep.subr.mxu0 0.0
      %2102 = vmatpush1.msra.mxu0 0.0
      %2103 = vmatprep.subr.mxu0 0.0
      %2104 = vmatpush1.msra.mxu0 0.0
      %2105 = vmatprep.subr.mxu0 0.0
      %2106 = vmatpush1.msra.mxu0 0.0
      %2107 = vmatprep.subr.mxu0 0.0
      %2108 = vmatpush1.msra.mxu0 0.0
      %2109 = vmatprep.subr.mxu0 0.0
      %2110 = vmatpush1.msra.mxu0 0.0
      %2111 = vmatprep.subr.mxu0 0.0
      %2112 = vmatpush1.msra.mxu0 0.0
      %2113 = vmatprep.subr.mxu0 0.0
      %2114 = vmatpush1.msra.mxu0 0.0
      %2115 = vmatprep.subr.mxu0 0.0
      %2116 = vmatpush1.msra.mxu0 0.0
      %2117 = vmatprep.subr.mxu0 0.0
      %2118 = vmatpush1.msra.mxu0 0.0
      %2119 = vmatprep.subr.mxu0 0.0
      %2120 = vmatpush1.msra.mxu0 0.0
      %2121 = vmatprep.subr.mxu0 0.0
      %2122 = vmatpush1.msra.mxu0 0.0
      %2123 = vmatprep.mubr.f32.mxu0 0.0
      %2124 = vmatmul.mubr.f32.gmra.mrb[0].mxu0 %v2011
      %v2125 = vpop.f32.mrb[0].mxu0
      %v2126 = vadd.f32 %v2052, %v2125
      %v2127 = vpop.f32.mrb[0].mxu0
      %v2128 = vadd.f32 %v2056, %v2127
      %2129 = vdwg.mxu0
      %v2130 = vadd.f32 %v2126, 3.0
      %v2131 = vadd.f32 %v2128, 3.0
      %v2132 = vmax.f32 %v2130, 0.0
      %v2133 = vmax.f32 %v2131, 0.0
      %v2134 = vmin.f32 %v2132, 6.0
      %v2135 = vmin.f32 %v2133, 6.0
      %v2136 = vmul.f32 %v2126, %v2134
      %v2137 = vmul.f32 %v2128, %v2135
      %v2138 = vmul.f32 %v2136, 0.16666667
      %v2139 = vmul.f32 %v2137, 0.16666667
      %v2140 = vld [vmem:[%s2 + $0x1d0] sm:$0xff]
      %v2141 = vld [vmem:[%s2 + $0x1d8] sm:$0xff]
      %v2142 = vld [vmem:[%s2 + $0x1e0] sm:$0x1]
      %v2143 = vld [vmem:[%s2 + $0x1e8] sm:$0x1]
      %2146 = vrot.lane.b32.xlu0 %v2138, 32
      %v2147 = vpop.permute.xlu0 %2146
      %2148 = vrot.lane.b32.xlu0 %v2139, 32
      %v2149 = vpop.permute.xlu0 %2148
      %vm2150 = vcmask 261120
      %v2151 = vsel %vm2150, %v2147, %v2149
      %v2154 = vsel %vm2150, 0.0, %v2147
      %v2155 = vsel %vm2150, %v2149, 0.0
      %v2158 = vrot.slane %v2154, 7
      %v2159 = vrot.slane %v2151, 7
      %v2160 = vrot.slane %v2155, 7
      %v2164 = vsel %vm341, 0.0, %v2158
      %v2165 = vsel %vm341, 0.0, %v2159
      %v2166 = vsel %vm341, 0.0, %v2160
      %v2167 = vsel %vm341, %v2158, 0.0
      %v2168 = vsel %vm341, %v2159, 0.0
      %v2169 = vsel %vm341, %v2160, 0.0
      %v2170 = vlaneseq
      %v2171 = vshrl.u32 %v2170, 7
      %v2172 = vsub.s32 0, %v2171
      %v2173 = vrot.slane %v2140, %v2172
      %v2174 = vlaneseq
      %v2175 = vshrl.u32 %v2174, 7
      %v2176 = vsub.s32 0, %v2175
      %v2177 = vrot.slane %v2141, %v2176
      %v2178 = vmul.f32 %v2164, %v2173
      %v2179 = vmul.f32 %v2165, %v2177
      %v2180 = vadd.f32 %v2178, 0.0
      %v2181 = vadd.f32 %v2179, 0.0
      %v2182 = vlaneseq
      %v2183 = vshrl.u32 %v2182, 7
      %v2184 = vsub.s32 1, %v2183
      %v2185 = vrot.slane %v2140, %v2184
      %v2186 = vlaneseq
      %v2187 = vshrl.u32 %v2186, 7
      %v2188 = vsub.s32 1, %v2187
      %v2189 = vrot.slane %v2141, %v2188
      %2192 = vrot.lane.b32.xlu0 %v2185, 32
      %v2193 = vpop.permute.xlu0 %2192
      %2194 = vrot.lane.b32.xlu0 %v2189, 32
      %v2195 = vpop.permute.xlu0 %2194
      %v2196 = vsel %vm2150, %v2193, %v2195
      %v2200 = vmul.f32 %v2164, %v2193
      %v2201 = vmul.f32 %v2165, %v2196
      %v2202 = vmul.f32 %v2166, %v2195
      %2206 = vrot.lane.b32.xlu0 %v2200, 96
      %v2207 = vpop.permute.xlu0 %2206
      %2208 = vrot.lane.b32.xlu0 %v2201, 96
      %v2209 = vpop.permute.xlu0 %2208
      %2210 = vrot.lane.b32.xlu0 %v2202, 96
      %v2211 = vpop.permute.xlu0 %2210
      %v2212 = vsel %vm1856, %v2207, %v2209
      %v2213 = vsel %vm1856, %v2209, %v2211
      %v2216 = vadd.f32 %v2180, %v2212
      %v2217 = vadd.f32 %v2181, %v2213
      %v2218 = vlaneseq
      %v2219 = vshrl.u32 %v2218, 7
      %v2220 = vsub.s32 2, %v2219
      %v2221 = vrot.slane %v2140, %v2220
      %v2222 = vlaneseq
      %v2223 = vshrl.u32 %v2222, 7
      %v2224 = vsub.s32 2, %v2223
      %v2225 = vrot.slane %v2141, %v2224
      %2228 = vrot.lane.b32.xlu0 %v2221, 64
      %v2229 = vpop.permute.xlu0 %2228
      %2230 = vrot.lane.b32.xlu0 %v2225, 64
      %v2231 = vpop.permute.xlu0 %2230
      %v2232 = vsel %vm825, %v2229, %v2231
      %v2236 = vmul.f32 %v2164, %v2229
      %v2237 = vmul.f32 %v2165, %v2232
      %v2238 = vmul.f32 %v2166, %v2231
      %2242 = vrot.lane.b32.xlu0 %v2236, 64
      %v2243 = vpop.permute.xlu0 %2242
      %2244 = vrot.lane.b32.xlu0 %v2237, 64
      %v2245 = vpop.permute.xlu0 %2244
      %2246 = vrot.lane.b32.xlu0 %v2238, 64
      %v2247 = vpop.permute.xlu0 %2246
      %v2248 = vsel %vm825, %v2243, %v2245
      %v2249 = vsel %vm825, %v2245, %v2247
      %v2252 = vadd.f32 %v2216, %v2248
      %v2253 = vadd.f32 %v2217, %v2249
      %v2254 = vlaneseq
      %v2255 = vshrl.u32 %v2254, 7
      %v2256 = vsub.s32 3, %v2255
      %v2257 = vrot.slane %v2140, %v2256
      %v2258 = vlaneseq
      %v2259 = vshrl.u32 %v2258, 7
      %v2260 = vsub.s32 3, %v2259
      %v2261 = vrot.slane %v2141, %v2260
      %v2262 = vmul.f32 %v2164, %v2257
      %v2263 = vmul.f32 %v2165, %v2261
      %v2264 = vmul.f32 %v2167, %v2257
      %v2265 = vmul.f32 %v2168, %v2261
      %v2270 = vrot.slane %v2262, 1
      %v2271 = vrot.slane %v2264, 1
      %v2272 = vsel %vm419, %v2270, %v2271
      %v2273 = vrot.slane %v2263, 1
      %v2274 = vrot.slane %v2265, 1
      %v2275 = vsel %vm419, %v2273, %v2274
      %v2278 = vadd.f32 %v2252, %v2272
      %v2279 = vadd.f32 %v2253, %v2275
      %v2280 = vlaneseq
      %v2281 = vshrl.u32 %v2280, 7
      %v2282 = vsub.s32 4, %v2281
      %v2283 = vrot.slane %v2140, %v2282
      %v2284 = vlaneseq
      %v2285 = vshrl.u32 %v2284, 7
      %v2286 = vsub.s32 4, %v2285
      %v2287 = vrot.slane %v2141, %v2286
      %2290 = vrot.lane.b32.xlu0 %v2283, 32
      %v2291 = vpop.permute.xlu0 %2290
      %2292 = vrot.lane.b32.xlu0 %v2287, 32
      %v2293 = vpop.permute.xlu0 %2292
      %v2294 = vsel %vm2150, %v2291, %v2293
      %v2298 = vmul.f32 %v2164, %v2291
      %v2299 = vmul.f32 %v2165, %v2294
      %v2300 = vmul.f32 %v2166, %v2293
      %v2301 = vmul.f32 %v2167, %v2291
      %v2302 = vmul.f32 %v2168, %v2294
      %v2303 = vmul.f32 %v2169, %v2293
      %v2310 = vrot.slane %v2298, 1
      %v2311 = vrot.slane %v2301, 1
      %v2312 = vsel %vm419, %v2310, %v2311
      %v2313 = vrot.slane %v2299, 1
      %v2314 = vrot.slane %v2302, 1
      %v2315 = vsel %vm419, %v2313, %v2314
      %v2316 = vrot.slane %v2300, 1
      %v2317 = vrot.slane %v2303, 1
      %v2318 = vsel %vm419, %v2316, %v2317
      %2319 = vrot.lane.b32.xlu0 %v2312, 96
      %v2320 = vpop.permute.xlu0 %2319
      %2321 = vrot.lane.b32.xlu0 %v2315, 96
      %v2322 = vpop.permute.xlu0 %2321
      %2323 = vrot.lane.b32.xlu0 %v2318, 96
      %v2324 = vpop.permute.xlu0 %2323
      %v2325 = vsel %vm1856, %v2320, %v2322
      %v2326 = vsel %vm1856, %v2322, %v2324
      %v2329 = vadd.f32 %v2278, %v2325
      %v2330 = vadd.f32 %v2279, %v2326
      %v2331 = vlaneseq
      %v2332 = vshrl.u32 %v2331, 7
      %v2333 = vsub.s32 5, %v2332
      %v2334 = vrot.slane %v2140, %v2333
      %v2335 = vlaneseq
      %v2336 = vshrl.u32 %v2335, 7
      %v2337 = vsub.s32 5, %v2336
      %v2338 = vrot.slane %v2141, %v2337
      %2341 = vrot.lane.b32.xlu0 %v2334, 64
      %v2342 = vpop.permute.xlu0 %2341
      %2343 = vrot.lane.b32.xlu0 %v2338, 64
      %v2344 = vpop.permute.xlu0 %2343
      %v2345 = vsel %vm825, %v2342, %v2344
      %v2349 = vmul.f32 %v2164, %v2342
      %v2350 = vmul.f32 %v2165, %v2345
      %v2351 = vmul.f32 %v2166, %v2344
      %v2352 = vmul.f32 %v2167, %v2342
      %v2353 = vmul.f32 %v2168, %v2345
      %v2354 = vmul.f32 %v2169, %v2344
      %v2361 = vrot.slane %v2349, 1
      %v2362 = vrot.slane %v2352, 1
      %v2363 = vsel %vm419, %v2361, %v2362
      %v2364 = vrot.slane %v2350, 1
      %v2365 = vrot.slane %v2353, 1
      %v2366 = vsel %vm419, %v2364, %v2365
      %v2367 = vrot.slane %v2351, 1
      %v2368 = vrot.slane %v2354, 1
      %v2369 = vsel %vm419, %v2367, %v2368
      %2370 = vrot.lane.b32.xlu0 %v2363, 64
      %v2371 = vpop.permute.xlu0 %2370
      %2372 = vrot.lane.b32.xlu0 %v2366, 64
      %v2373 = vpop.permute.xlu0 %2372
      %2374 = vrot.lane.b32.xlu0 %v2369, 64
      %v2375 = vpop.permute.xlu0 %2374
      %v2376 = vsel %vm825, %v2371, %v2373
      %v2377 = vsel %vm825, %v2373, %v2375
      %v2380 = vadd.f32 %v2329, %v2376
      %v2381 = vadd.f32 %v2330, %v2377
      %v2382 = vlaneseq
      %v2383 = vshrl.u32 %v2382, 7
      %v2384 = vsub.s32 6, %v2383
      %v2385 = vrot.slane %v2140, %v2384
      %v2386 = vlaneseq
      %v2387 = vshrl.u32 %v2386, 7
      %v2388 = vsub.s32 6, %v2387
      %v2389 = vrot.slane %v2141, %v2388
      %v2390 = vmul.f32 %v2164, %v2385
      %v2391 = vmul.f32 %v2165, %v2389
      %v2392 = vmul.f32 %v2167, %v2385
      %v2393 = vmul.f32 %v2168, %v2389
      %v2398 = vrot.slane %v2390, 2
      %v2399 = vrot.slane %v2392, 2
      %v2400 = vsel %vm1629, %v2398, %v2399
      %v2401 = vrot.slane %v2391, 2
      %v2402 = vrot.slane %v2393, 2
      %v2403 = vsel %vm1629, %v2401, %v2402
      %v2406 = vadd.f32 %v2380, %v2400
      %v2407 = vadd.f32 %v2381, %v2403
      %v2408 = vlaneseq
      %v2409 = vshrl.u32 %v2408, 7
      %v2410 = vsub.s32 7, %v2409
      %v2411 = vrot.slane %v2140, %v2410
      %v2412 = vlaneseq
      %v2413 = vshrl.u32 %v2412, 7
      %v2414 = vsub.s32 7, %v2413
      %v2415 = vrot.slane %v2141, %v2414
      %2418 = vrot.lane.b32.xlu0 %v2411, 32
      %v2419 = vpop.permute.xlu0 %2418
      %2420 = vrot.lane.b32.xlu0 %v2415, 32
      %v2421 = vpop.permute.xlu0 %2420
      %v2422 = vsel %vm2150, %v2419, %v2421
      %v2426 = vmul.f32 %v2164, %v2419
      %v2427 = vmul.f32 %v2165, %v2422
      %v2428 = vmul.f32 %v2166, %v2421
      %v2429 = vmul.f32 %v2167, %v2419
      %v2430 = vmul.f32 %v2168, %v2422
      %v2431 = vmul.f32 %v2169, %v2421
      %v2438 = vrot.slane %v2426, 2
      %v2439 = vrot.slane %v2429, 2
      %v2440 = vsel %vm1629, %v2438, %v2439
      %v2441 = vrot.slane %v2427, 2
      %v2442 = vrot.slane %v2430, 2
      %v2443 = vsel %vm1629, %v2441, %v2442
      %v2444 = vrot.slane %v2428, 2
      %v2445 = vrot.slane %v2431, 2
      %v2446 = vsel %vm1629, %v2444, %v2445
      %2447 = vrot.lane.b32.xlu0 %v2440, 96
      %v2448 = vpop.permute.xlu0 %2447
      %2449 = vrot.lane.b32.xlu0 %v2443, 96
      %v2450 = vpop.permute.xlu0 %2449
      %2451 = vrot.lane.b32.xlu0 %v2446, 96
      %v2452 = vpop.permute.xlu0 %2451
      %v2453 = vsel %vm1856, %v2448, %v2450
      %v2454 = vsel %vm1856, %v2450, %v2452
      %v2457 = vadd.f32 %v2406, %v2453
      %v2458 = vadd.f32 %v2407, %v2454
      %v2459 = vlaneseq
      %v2460 = vshrl.u32 %v2459, 7
      %v2461 = vsub.s32 0, %v2460
      %v2462 = vrot.slane %v2142, %v2461
      %v2463 = vlaneseq
      %v2464 = vshrl.u32 %v2463, 7
      %v2465 = vsub.s32 0, %v2464
      %v2466 = vrot.slane %v2143, %v2465
      %2469 = vrot.lane.b32.xlu0 %v2462, 64
      %v2470 = vpop.permute.xlu0 %2469
      %2471 = vrot.lane.b32.xlu0 %v2466, 64
      %v2472 = vpop.permute.xlu0 %2471
      %v2473 = vsel %vm825, %v2470, %v2472
      %v2477 = vmul.f32 %v2164, %v2470
      %v2478 = vmul.f32 %v2165, %v2473
      %v2479 = vmul.f32 %v2166, %v2472
      %v2480 = vmul.f32 %v2167, %v2470
      %v2481 = vmul.f32 %v2168, %v2473
      %v2482 = vmul.f32 %v2169, %v2472
      %v2489 = vrot.slane %v2477, 2
      %v2490 = vrot.slane %v2480, 2
      %v2491 = vsel %vm1629, %v2489, %v2490
      %v2492 = vrot.slane %v2478, 2
      %v2493 = vrot.slane %v2481, 2
      %v2494 = vsel %vm1629, %v2492, %v2493
      %v2495 = vrot.slane %v2479, 2
      %v2496 = vrot.slane %v2482, 2
      %v2497 = vsel %vm1629, %v2495, %v2496
      %2498 = vrot.lane.b32.xlu0 %v2491, 64
      %v2499 = vpop.permute.xlu0 %2498
      %2500 = vrot.lane.b32.xlu0 %v2494, 64
      %v2501 = vpop.permute.xlu0 %2500
      %2502 = vrot.lane.b32.xlu0 %v2497, 64
      %v2503 = vpop.permute.xlu0 %2502
      %v2504 = vsel %vm825, %v2499, %v2501
      %v2505 = vsel %vm825, %v2501, %v2503
      %v2508 = vadd.f32 %v2457, %v2504
      %v2509 = vadd.f32 %v2458, %v2505
      %s2510 = scalar_lea.vmem %s2, 496
      %v2511 = vld [vmem:[%s2510] ss:$8 sm:$0x3]
      %v2513 = vlaneseq
      %v2514 = vshrl.u32 %v2513, 7
      %v2515 = vsub.s32 0, %v2514
      %v2516 = vrot.slane %v2511, %v2515
      %v2517 = vlaneseq
      %v2518 = vshrl.u32 %v2517, 7
      %v2519 = vsub.s32 1, %v2518
      %v2520 = vrot.slane %v2511, %v2519
      %v2523 = vadd.f32 %v2508, %v2516
      %v2524 = vadd.f32 %v2509, %v2520
      %v2525 = vadd.f32 %v2523, 3.0
      %v2526 = vadd.f32 %v2524, 3.0
      %v2527 = vmax.f32 %v2525, 0.0
      %v2528 = vmax.f32 %v2526, 0.0
      %v2529 = vmin.f32 %v2527, 6.0
      %v2530 = vmin.f32 %v2528, 6.0
      %v2531 = vmul.f32 %v2523, %v2529
      %v2532 = vmul.f32 %v2524, %v2530
      %v2533 = vmul.f32 %v2531, 0.16666667
      %v2534 = vmul.f32 %v2532, 0.16666667
      %v2535 = vld [vmem:[%s1 + $0x238] sm:$0xff]
      %v2536 = vld [vmem:[%s1 + $0x240] sm:$0xff]
      %v2537 = vld [vmem:[%s1 + $0x248] sm:$0xff]
      %v2538 = vld [vmem:[%s1 + $0x250] sm:$0xff]
      %v2539 = vld [vmem:[%s1 + $0x258] sm:$0xff]
      %v2540 = vld [vmem:[%s1 + $0x260] sm:$0xff]
      %v2541 = vld [vmem:[%s1 + $0x268] sm:$0xff]
      %v2542 = vld [vmem:[%s1 + $0x270] sm:$0xff]
      %v2543 = vld [vmem:[%s1 + $0x278] sm:$0xff]
      %v2544 = vld [vmem:[%s1 + $0x280] sm:$0xff]
      %v2545 = vld [vmem:[%s1 + $0x288] sm:$0xff]
      %v2546 = vld [vmem:[%s1 + $0x290] sm:$0xff]
      %v2547 = vld [vmem:[%s1 + $0x298] sm:$0xff]
      %v2548 = vld [vmem:[%s1 + $0x2a0] sm:$0xff]
      %v2549 = vld [vmem:[%s1 + $0x2a8] sm:$0xff]
      %v2550 = vld [vmem:[%s1 + $0x2b0] sm:$0xff]
      %v2551 = vld [vmem:[%s1 + $0x2b8] sm:$0xff]
      %v2552 = vld [vmem:[%s1 + $0x2c0] sm:$0xff]
      %v2553 = vld [vmem:[%s1 + $0x2c8] sm:$0xff]
      %v2554 = vld [vmem:[%s1 + $0x2d0] sm:$0xff]
      %v2555 = vld [vmem:[%s1 + $0x2d8] sm:$0xff]
      %v2556 = vld [vmem:[%s1 + $0x2e0] sm:$0xff]
      %v2557 = vld [vmem:[%s1 + $0x2e8] sm:$0xff]
      %v2558 = vld [vmem:[%s1 + $0x2f0] sm:$0xff]
      %v2559 = vld [vmem:[%s1 + $0x2f8] sm:$0xff]
      %v2560 = vld [vmem:[%s1 + $0x300] sm:$0xff]
      %v2561 = vld [vmem:[%s1 + $0x308] sm:$0xff]
      %v2562 = vld [vmem:[%s1 + $0x310] sm:$0xff]
      %v2563 = vld [vmem:[%s1 + $0x318] sm:$0xff]
      %v2564 = vld [vmem:[%s1 + $0x320] sm:$0xff]
      %v2565 = vld [vmem:[%s1 + $0x328] sm:$0xff]
      %v2566 = vld [vmem:[%s1 + $0x330] sm:$0xff]
      %v2567 = vld [vmem:[%s1 + $0x338] sm:$0x1]
      %v2568 = vlaneseq
      %v2569 = vshrl.u32 %v2568, 7
      %v2570 = vsub.s32 0, %v2569
      %v2571 = vrot.slane %v2567, %v2570
      %2572 = vmatprep.subr.mxu0 0.0
      %2573 = vmatpush1.msra.mxu0 %v2535
      %2574 = vmatprep.subr.mxu0 0.0
      %2575 = vmatpush1.msra.mxu0 %v2536
      %2576 = vmatprep.subr.mxu0 0.0
      %2577 = vmatpush1.msra.mxu0 %v2537
      %2578 = vmatprep.subr.mxu0 0.0
      %2579 = vmatpush1.msra.mxu0 %v2538
      %2580 = vmatprep.subr.mxu0 0.0
      %2581 = vmatpush1.msra.mxu0 %v2539
      %2582 = vmatprep.subr.mxu0 0.0
      %2583 = vmatpush1.msra.mxu0 %v2540
      %2584 = vmatprep.subr.mxu0 0.0
      %2585 = vmatpush1.msra.mxu0 %v2541
      %2586 = vmatprep.subr.mxu0 0.0
      %2587 = vmatpush1.msra.mxu0 %v2542
      %2588 = vmatprep.subr.mxu0 0.0
      %2589 = vmatpush1.msra.mxu0 %v2543
      %2590 = vmatprep.subr.mxu0 0.0
      %2591 = vmatpush1.msra.mxu0 %v2544
      %2592 = vmatprep.subr.mxu0 0.0
      %2593 = vmatpush1.msra.mxu0 %v2545
      %2594 = vmatprep.subr.mxu0 0.0
      %2595 = vmatpush1.msra.mxu0 %v2546
      %2596 = vmatprep.subr.mxu0 0.0
      %2597 = vmatpush1.msra.mxu0 %v2547
      %2598 = vmatprep.subr.mxu0 0.0
      %2599 = vmatpush1.msra.mxu0 %v2548
      %2600 = vmatprep.subr.mxu0 0.0
      %2601 = vmatpush1.msra.mxu0 %v2549
      %2602 = vmatprep.subr.mxu0 0.0
      %2603 = vmatpush1.msra.mxu0 %v2550
      %2604 = vmatprep.subr.mxu0 0.0
      %2605 = vmatpush1.msra.mxu0 %v2551
      %2606 = vmatprep.subr.mxu0 0.0
      %2607 = vmatpush1.msra.mxu0 %v2552
      %2608 = vmatprep.subr.mxu0 0.0
      %2609 = vmatpush1.msra.mxu0 %v2553
      %2610 = vmatprep.subr.mxu0 0.0
      %2611 = vmatpush1.msra.mxu0 %v2554
      %2612 = vmatprep.subr.mxu0 0.0
      %2613 = vmatpush1.msra.mxu0 %v2555
      %2614 = vmatprep.subr.mxu0 0.0
      %2615 = vmatpush1.msra.mxu0 %v2556
      %2616 = vmatprep.subr.mxu0 0.0
      %2617 = vmatpush1.msra.mxu0 %v2557
      %2618 = vmatprep.subr.mxu0 0.0
      %2619 = vmatpush1.msra.mxu0 %v2558
      %2620 = vmatprep.subr.mxu0 0.0
      %2621 = vmatpush1.msra.mxu0 %v2559
      %2622 = vmatprep.subr.mxu0 0.0
      %2623 = vmatpush1.msra.mxu0 %v2560
      %2624 = vmatprep.subr.mxu0 0.0
      %2625 = vmatpush1.msra.mxu0 %v2561
      %2626 = vmatprep.subr.mxu0 0.0
      %2627 = vmatpush1.msra.mxu0 %v2562
      %2628 = vmatprep.subr.mxu0 0.0
      %2629 = vmatpush1.msra.mxu0 %v2563
      %2630 = vmatprep.subr.mxu0 0.0
      %2631 = vmatpush1.msra.mxu0 %v2564
      %2632 = vmatprep.subr.mxu0 0.0
      %2633 = vmatpush1.msra.mxu0 %v2565
      %2634 = vmatprep.subr.mxu0 0.0
      %2635 = vmatpush1.msra.mxu0 %v2566
      %2636 = vmatprep.mubr.f32.mxu0 %v2534
      %2637 = vmatmul.mubr.f32.gmra.mrb[0].mxu0 %v2533
      %v2638 = vpop.f32.mrb[0].mxu0
      %v2639 = vadd.f32 %v2571, %v2638
      %v2640 = vpop.f32.mrb[0].mxu0
      %2641 = vdwg.mxu0
      %v2642 = vadd.f32 %v2639, %v2011
      %v2643 = vld [vmem:[%s1 + $0x340] sm:$0xff]
      %v2644 = vld [vmem:[%s1 + $0x348] sm:$0xff]
      %v2645 = vld [vmem:[%s1 + $0x350] sm:$0x1]
      %v2646 = vld [vmem:[%s1 + $0x358] sm:$0xff]
      %v2647 = vld [vmem:[%s1 + $0x360] sm:$0xff]
      %v2648 = vld [vmem:[%s1 + $0x368] sm:$0xff]
      %v2649 = vld [vmem:[%s1 + $0x370] sm:$0xff]
      %v2650 = vld [vmem:[%s1 + $0x378] sm:$0xff]
      %v2651 = vld [vmem:[%s1 + $0x380] sm:$0xff]
      %v2652 = vld [vmem:[%s1 + $0x388] sm:$0xff]
      %v2653 = vld [vmem:[%s1 + $0x390] sm:$0xff]
      %v2654 = vld [vmem:[%s1 + $0x398] sm:$0x1]
      %v2655 = vlaneseq
      %v2656 = vshrl.u32 %v2655, 7
      %v2657 = vsub.s32 0, %v2656
      %v2658 = vrot.slane %v2645, %v2657
      %v2660 = vsel %vm1560, %v2642, 0
      %2662 = vmatprep.subr.mxu0 0.0
      %2663 = vmatpush1.msra.mxu0 %v2643
      %2664 = vmatprep.subr.mxu0 0.0
      %2665 = vmatpush1.msra.mxu0 %v2644
      %2666 = vmatprep.subr.mxu0 0.0
      %2667 = vmatpush1.msra.mxu0 0.0
      %2668 = vmatprep.subr.mxu0 0.0
      %2669 = vmatpush1.msra.mxu0 0.0
      %2670 = vmatprep.subr.mxu0 0.0
      %2671 = vmatpush1.msra.mxu0 0.0
      %2672 = vmatprep.subr.mxu0 0.0
      %2673 = vmatpush1.msra.mxu0 0.0
      %2674 = vmatprep.subr.mxu0 0.0
      %2675 = vmatpush1.msra.mxu0 0.0
      %2676 = vmatprep.subr.mxu0 0.0
      %2677 = vmatpush1.msra.mxu0 0.0
      %2678 = vmatprep.subr.mxu0 0.0
      %2679 = vmatpush1.msra.mxu0 0.0
      %2680 = vmatprep.subr.mxu0 0.0
      %2681 = vmatpush1.msra.mxu0 0.0
      %2682 = vmatprep.subr.mxu0 0.0
      %2683 = vmatpush1.msra.mxu0 0.0
      %2684 = vmatprep.subr.mxu0 0.0
      %2685 = vmatpush1.msra.mxu0 0.0
      %2686 = vmatprep.subr.mxu0 0.0
      %2687 = vmatpush1.msra.mxu0 0.0
      %2688 = vmatprep.subr.mxu0 0.0
      %2689 = vmatpush1.msra.mxu0 0.0
      %2690 = vmatprep.subr.mxu0 0.0
      %2691 = vmatpush1.msra.mxu0 0.0
      %2692 = vmatprep.subr.mxu0 0.0
      %2693 = vmatpush1.msra.mxu0 0.0
      %2694 = vmatprep.subr.mxu0 0.0
      %2695 = vmatpush1.msra.mxu0 0.0
      %2696 = vmatprep.subr.mxu0 0.0
      %2697 = vmatpush1.msra.mxu0 0.0
      %2698 = vmatprep.subr.mxu0 0.0
      %2699 = vmatpush1.msra.mxu0 0.0
      %2700 = vmatprep.subr.mxu0 0.0
      %2701 = vmatpush1.msra.mxu0 0.0
      %2702 = vmatprep.subr.mxu0 0.0
      %2703 = vmatpush1.msra.mxu0 0.0
      %2704 = vmatprep.subr.mxu0 0.0
      %2705 = vmatpush1.msra.mxu0 0.0
      %2706 = vmatprep.subr.mxu0 0.0
      %2707 = vmatpush1.msra.mxu0 0.0
      %2708 = vmatprep.subr.mxu0 0.0
      %2709 = vmatpush1.msra.mxu0 0.0
      %2710 = vmatprep.subr.mxu0 0.0
      %2711 = vmatpush1.msra.mxu0 0.0
      %2712 = vmatprep.subr.mxu0 0.0
      %2713 = vmatpush1.msra.mxu0 0.0
      %2714 = vmatprep.subr.mxu0 0.0
      %2715 = vmatpush1.msra.mxu0 0.0
      %2716 = vmatprep.subr.mxu0 0.0
      %2717 = vmatpush1.msra.mxu0 0.0
      %2718 = vmatprep.subr.mxu0 0.0
      %2719 = vmatpush1.msra.mxu0 0.0
      %2720 = vmatprep.subr.mxu0 0.0
      %2721 = vmatpush1.msra.mxu0 0.0
      %2722 = vmatprep.subr.mxu0 0.0
      %2723 = vmatpush1.msra.mxu0 0.0
      %2724 = vmatprep.subr.mxu0 0.0
      %2725 = vmatpush1.msra.mxu0 0.0
      %2726 = vmatprep.mubr.f32.mxu0 0.0
      %2727 = vmatmul.mubr.f32.gmra.mrb[0].mxu0 %v2660
      %v2728 = vpop.f32.mrb[0].mxu0
      %v2729 = vadd.f32 %v2658, %v2728
      %v2730 = vpop.f32.mrb[0].mxu0
      %2731 = vdwg.mxu0
      %v2732 = vmax.f32 %v2729, 0.0
      %2733 = vrot.lane.b32.xlu0 %v2642, 112
      %v2734 = vpop.permute.xlu0 %2733
      %v2735 = vsel %vm1560, %v2734, 0
      %2737 = vmatprep.subr.mxu0 0.0
      %2738 = vmatpush1.msra.mxu0 %v2643
      %2739 = vmatprep.subr.mxu0 0.0
      %2740 = vmatpush1.msra.mxu0 %v2644
      %2741 = vmatprep.subr.mxu0 0.0
      %2742 = vmatpush1.msra.mxu0 0.0
      %2743 = vmatprep.subr.mxu0 0.0
      %2744 = vmatpush1.msra.mxu0 0.0
      %2745 = vmatprep.subr.mxu0 0.0
      %2746 = vmatpush1.msra.mxu0 0.0
      %2747 = vmatprep.subr.mxu0 0.0
      %2748 = vmatpush1.msra.mxu0 0.0
      %2749 = vmatprep.subr.mxu0 0.0
      %2750 = vmatpush1.msra.mxu0 0.0
      %2751 = vmatprep.subr.mxu0 0.0
      %2752 = vmatpush1.msra.mxu0 0.0
      %2753 = vmatprep.subr.mxu0 0.0
      %2754 = vmatpush1.msra.mxu0 0.0
      %2755 = vmatprep.subr.mxu0 0.0
      %2756 = vmatpush1.msra.mxu0 0.0
      %2757 = vmatprep.subr.mxu0 0.0
      %2758 = vmatpush1.msra.mxu0 0.0
      %2759 = vmatprep.subr.mxu0 0.0
      %2760 = vmatpush1.msra.mxu0 0.0
      %2761 = vmatprep.subr.mxu0 0.0
      %2762 = vmatpush1.msra.mxu0 0.0
      %2763 = vmatprep.subr.mxu0 0.0
      %2764 = vmatpush1.msra.mxu0 0.0
      %2765 = vmatprep.subr.mxu0 0.0
      %2766 = vmatpush1.msra.mxu0 0.0
      %2767 = vmatprep.subr.mxu0 0.0
      %2768 = vmatpush1.msra.mxu0 0.0
      %2769 = vmatprep.subr.mxu0 0.0
      %2770 = vmatpush1.msra.mxu0 0.0
      %2771 = vmatprep.subr.mxu0 0.0
      %2772 = vmatpush1.msra.mxu0 0.0
      %2773 = vmatprep.subr.mxu0 0.0
      %2774 = vmatpush1.msra.mxu0 0.0
      %2775 = vmatprep.subr.mxu0 0.0
      %2776 = vmatpush1.msra.mxu0 0.0
      %2777 = vmatprep.subr.mxu0 0.0
      %2778 = vmatpush1.msra.mxu0 0.0
      %2779 = vmatprep.subr.mxu0 0.0
      %2780 = vmatpush1.msra.mxu0 0.0
      %2781 = vmatprep.subr.mxu0 0.0
      %2782 = vmatpush1.msra.mxu0 0.0
      %2783 = vmatprep.subr.mxu0 0.0
      %2784 = vmatpush1.msra.mxu0 0.0
      %2785 = vmatprep.subr.mxu0 0.0
      %2786 = vmatpush1.msra.mxu0 0.0
      %2787 = vmatprep.subr.mxu0 0.0
      %2788 = vmatpush1.msra.mxu0 0.0
      %2789 = vmatprep.subr.mxu0 0.0
      %2790 = vmatpush1.msra.mxu0 0.0
      %2791 = vmatprep.subr.mxu0 0.0
      %2792 = vmatpush1.msra.mxu0 0.0
      %2793 = vmatprep.subr.mxu0 0.0
      %2794 = vmatpush1.msra.mxu0 0.0
      %2795 = vmatprep.subr.mxu0 0.0
      %2796 = vmatpush1.msra.mxu0 0.0
      %2797 = vmatprep.subr.mxu0 0.0
      %2798 = vmatpush1.msra.mxu0 0.0
      %2799 = vmatprep.subr.mxu0 0.0
      %2800 = vmatpush1.msra.mxu0 0.0
      %2801 = vmatprep.mubr.f32.mxu0 0.0
      %2802 = vmatmul.mubr.f32.gmra.mrb[0].mxu0 %v2735
      %v2803 = vpop.f32.mrb[0].mxu0
      %v2804 = vadd.f32 %v2658, %v2803
      %v2805 = vpop.f32.mrb[0].mxu0
      %2806 = vdwg.mxu0
      %v2807 = vmax.f32 %v2804, 0.0
      %2808 = vxpose.xlu0.b32.start [1/16] %v2807, 128
      %2809 = vxpose.xlu0.b32.cont [2/16] 0.0, 128
      %2810 = vxpose.xlu0.b32.cont [3/16] 0.0, 128
      %2811 = vxpose.xlu0.b32.cont [4/16] 0.0, 128
      %2812 = vxpose.xlu0.b32.cont [5/16] 0.0, 128
      %2813 = vxpose.xlu0.b32.cont [6/16] 0.0, 128
      %2814 = vxpose.xlu0.b32.cont [7/16] 0.0, 128
      %2815 = vxpose.xlu0.b32.cont [8/16] 0.0, 128
      %2816 = vxpose.xlu0.b32.cont [9/16] 0.0, 128
      %2817 = vxpose.xlu0.b32.cont [10/16] 0.0, 128
      %2818 = vxpose.xlu0.b32.cont [11/16] 0.0, 128
      %2819 = vxpose.xlu0.b32.cont [12/16] 0.0, 128
      %2820 = vxpose.xlu0.b32.cont [13/16] 0.0, 128
      %2821 = vxpose.xlu0.b32.cont [14/16] 0.0, 128
      %2822 = vxpose.xlu0.b32.cont [15/16] 0.0, 128
      %2823 = vxpose.xlu0.b32.end [16/16] 0.0, 128
      %v2824 = vpop.trf.xlu0
      %v2825 = vpop.trf.xlu0
      %v2826 = vpop.trf.xlu0
      %v2827 = vpop.trf.xlu0
      %v2828 = vpop.trf.xlu0
      %v2829 = vpop.trf.xlu0
      %v2830 = vpop.trf.xlu0
      %v2831 = vpop.trf.xlu0
      %v2832 = vpop.trf.xlu0
      %v2833 = vpop.trf.xlu0
      %v2834 = vpop.trf.xlu0
      %v2835 = vpop.trf.xlu0
      %v2836 = vpop.trf.xlu0
      %v2837 = vpop.trf.xlu0
      %v2838 = vpop.trf.xlu0
      %v2839 = vpop.trf.xlu0
      %v2841 = vsel %vm334, %v2824, 0
      %2843 = vmatprep.subr.mxu0 0.0
      %2844 = vmatpush1.msra.mxu0 %v2647
      %2845 = vmatprep.subr.mxu0 0.0
      %2846 = vmatpush1.msra.mxu0 0.0
      %2847 = vmatprep.subr.mxu0 0.0
      %2848 = vmatpush1.msra.mxu0 0.0
      %2849 = vmatprep.subr.mxu0 0.0
      %2850 = vmatpush1.msra.mxu0 0.0
      %2851 = vmatprep.subr.mxu0 0.0
      %2852 = vmatpush1.msra.mxu0 0.0
      %2853 = vmatprep.subr.mxu0 0.0
      %2854 = vmatpush1.msra.mxu0 0.0
      %2855 = vmatprep.subr.mxu0 0.0
      %2856 = vmatpush1.msra.mxu0 0.0
      %2857 = vmatprep.subr.mxu0 0.0
      %2858 = vmatpush1.msra.mxu0 0.0
      %2859 = vmatprep.subr.mxu0 0.0
      %2860 = vmatpush1.msra.mxu0 0.0
      %2861 = vmatprep.subr.mxu0 0.0
      %2862 = vmatpush1.msra.mxu0 0.0
      %2863 = vmatprep.subr.mxu0 0.0
      %2864 = vmatpush1.msra.mxu0 0.0
      %2865 = vmatprep.subr.mxu0 0.0
      %2866 = vmatpush1.msra.mxu0 0.0
      %2867 = vmatprep.subr.mxu0 0.0
      %2868 = vmatpush1.msra.mxu0 0.0
      %2869 = vmatprep.subr.mxu0 0.0
      %2870 = vmatpush1.msra.mxu0 0.0
      %2871 = vmatprep.subr.mxu0 0.0
      %2872 = vmatpush1.msra.mxu0 0.0
      %2873 = vmatprep.subr.mxu0 0.0
      %2874 = vmatpush1.msra.mxu0 0.0
      %2875 = vmatprep.subr.mxu0 0.0
      %2876 = vmatpush1.msra.mxu0 0.0
      %2877 = vmatprep.subr.mxu0 0.0
      %2878 = vmatpush1.msra.mxu0 0.0
      %2879 = vmatprep.subr.mxu0 0.0
      %2880 = vmatpush1.msra.mxu0 0.0
      %2881 = vmatprep.subr.mxu0 0.0
      %2882 = vmatpush1.msra.mxu0 0.0
      %2883 = vmatprep.subr.mxu0 0.0
      %2884 = vmatpush1.msra.mxu0 0.0
      %2885 = vmatprep.subr.mxu0 0.0
      %2886 = vmatpush1.msra.mxu0 0.0
      %2887 = vmatprep.subr.mxu0 0.0
      %2888 = vmatpush1.msra.mxu0 0.0
      %2889 = vmatprep.subr.mxu0 0.0
      %2890 = vmatpush1.msra.mxu0 0.0
      %2891 = vmatprep.subr.mxu0 0.0
      %2892 = vmatpush1.msra.mxu0 0.0
      %2893 = vmatprep.subr.mxu0 0.0
      %2894 = vmatpush1.msra.mxu0 0.0
      %2895 = vmatprep.subr.mxu0 0.0
      %2896 = vmatpush1.msra.mxu0 0.0
      %2897 = vmatprep.subr.mxu0 0.0
      %2898 = vmatpush1.msra.mxu0 0.0
      %2899 = vmatprep.subr.mxu0 0.0
      %2900 = vmatpush1.msra.mxu0 0.0
      %2901 = vmatprep.subr.mxu0 0.0
      %2902 = vmatpush1.msra.mxu0 0.0
      %2903 = vmatprep.subr.mxu0 0.0
      %2904 = vmatpush1.msra.mxu0 0.0
      %2905 = vmatprep.subr.mxu0 0.0
      %2906 = vmatpush1.msra.mxu0 0.0
      %2907 = vmatprep.mubr.f32.mxu0 0.0
      %2908 = vmatmul.mubr.f32.gmra.mrb[0].mxu0 %v2841
      %v2909 = vpop.f32.mrb[0].mxu0
      %v2910 = vadd.f32 0.0, %v2909
      %v2911 = vpop.f32.mrb[0].mxu0
      %2912 = vdwg.mxu0
      %2913 = vxpose.xlu0.b32.start [1/16] %v2732, 128
      %2914 = vxpose.xlu0.b32.cont [2/16] 0.0, 128
      %2915 = vxpose.xlu0.b32.cont [3/16] 0.0, 128
      %2916 = vxpose.xlu0.b32.cont [4/16] 0.0, 128
      %2917 = vxpose.xlu0.b32.cont [5/16] 0.0, 128
      %2918 = vxpose.xlu0.b32.cont [6/16] 0.0, 128
      %2919 = vxpose.xlu0.b32.cont [7/16] 0.0, 128
      %2920 = vxpose.xlu0.b32.cont [8/16] 0.0, 128
      %2921 = vxpose.xlu0.b32.cont [9/16] 0.0, 128
      %2922 = vxpose.xlu0.b32.cont [10/16] 0.0, 128
      %2923 = vxpose.xlu0.b32.cont [11/16] 0.0, 128
      %2924 = vxpose.xlu0.b32.cont [12/16] 0.0, 128
      %2925 = vxpose.xlu0.b32.cont [13/16] 0.0, 128
      %2926 = vxpose.xlu0.b32.cont [14/16] 0.0, 128
      %2927 = vxpose.xlu0.b32.cont [15/16] 0.0, 128
      %2928 = vxpose.xlu0.b32.end [16/16] 0.0, 128
      %v2929 = vpop.trf.xlu0
      %v2930 = vpop.trf.xlu0
      %v2931 = vpop.trf.xlu0
      %v2932 = vpop.trf.xlu0
      %v2933 = vpop.trf.xlu0
      %v2934 = vpop.trf.xlu0
      %v2935 = vpop.trf.xlu0
      %v2936 = vpop.trf.xlu0
      %v2937 = vpop.trf.xlu0
      %v2938 = vpop.trf.xlu0
      %v2939 = vpop.trf.xlu0
      %v2940 = vpop.trf.xlu0
      %v2941 = vpop.trf.xlu0
      %v2942 = vpop.trf.xlu0
      %v2943 = vpop.trf.xlu0
      %v2944 = vpop.trf.xlu0
      %v2946 = vsel %vm334, %v2929, 0
      %2948 = vmatprep.subr.mxu0 0.0
      %2949 = vmatpush1.msra.mxu0 %v2646
      %2950 = vmatprep.subr.mxu0 0.0
      %2951 = vmatpush1.msra.mxu0 0.0
      %2952 = vmatprep.subr.mxu0 0.0
      %2953 = vmatpush1.msra.mxu0 0.0
      %2954 = vmatprep.subr.mxu0 0.0
      %2955 = vmatpush1.msra.mxu0 0.0
      %2956 = vmatprep.subr.mxu0 0.0
      %2957 = vmatpush1.msra.mxu0 0.0
      %2958 = vmatprep.subr.mxu0 0.0
      %2959 = vmatpush1.msra.mxu0 0.0
      %2960 = vmatprep.subr.mxu0 0.0
      %2961 = vmatpush1.msra.mxu0 0.0
      %2962 = vmatprep.subr.mxu0 0.0
      %2963 = vmatpush1.msra.mxu0 0.0
      %2964 = vmatprep.subr.mxu0 0.0
      %2965 = vmatpush1.msra.mxu0 0.0
      %2966 = vmatprep.subr.mxu0 0.0
      %2967 = vmatpush1.msra.mxu0 0.0
      %2968 = vmatprep.subr.mxu0 0.0
      %2969 = vmatpush1.msra.mxu0 0.0
      %2970 = vmatprep.subr.mxu0 0.0
      %2971 = vmatpush1.msra.mxu0 0.0
      %2972 = vmatprep.subr.mxu0 0.0
      %2973 = vmatpush1.msra.mxu0 0.0
      %2974 = vmatprep.subr.mxu0 0.0
      %2975 = vmatpush1.msra.mxu0 0.0
      %2976 = vmatprep.subr.mxu0 0.0
      %2977 = vmatpush1.msra.mxu0 0.0
      %2978 = vmatprep.subr.mxu0 0.0
      %2979 = vmatpush1.msra.mxu0 0.0
      %2980 = vmatprep.subr.mxu0 0.0
      %2981 = vmatpush1.msra.mxu0 0.0
      %2982 = vmatprep.subr.mxu0 0.0
      %2983 = vmatpush1.msra.mxu0 0.0
      %2984 = vmatprep.subr.mxu0 0.0
      %2985 = vmatpush1.msra.mxu0 0.0
      %2986 = vmatprep.subr.mxu0 0.0
      %2987 = vmatpush1.msra.mxu0 0.0
      %2988 = vmatprep.subr.mxu0 0.0
      %2989 = vmatpush1.msra.mxu0 0.0
      %2990 = vmatprep.subr.mxu0 0.0
      %2991 = vmatpush1.msra.mxu0 0.0
      %2992 = vmatprep.subr.mxu0 0.0
      %2993 = vmatpush1.msra.mxu0 0.0
      %2994 = vmatprep.subr.mxu0 0.0
      %2995 = vmatpush1.msra.mxu0 0.0
      %2996 = vmatprep.subr.mxu0 0.0
      %2997 = vmatpush1.msra.mxu0 0.0
      %2998 = vmatprep.subr.mxu0 0.0
      %2999 = vmatpush1.msra.mxu0 0.0
      %3000 = vmatprep.subr.mxu0 0.0
      %3001 = vmatpush1.msra.mxu0 0.0
      %3002 = vmatprep.subr.mxu0 0.0
      %3003 = vmatpush1.msra.mxu0 0.0
      %3004 = vmatprep.subr.mxu0 0.0
      %3005 = vmatpush1.msra.mxu0 0.0
      %3006 = vmatprep.subr.mxu0 0.0
      %3007 = vmatpush1.msra.mxu0 0.0
      %3008 = vmatprep.subr.mxu0 0.0
      %3009 = vmatpush1.msra.mxu0 0.0
      %3010 = vmatprep.subr.mxu0 0.0
      %3011 = vmatpush1.msra.mxu0 0.0
      %3012 = vmatprep.mubr.f32.mxu0 0.0
      %3013 = vmatmul.mubr.f32.gmra.mrb[0].mxu0 %v2946
      %v3014 = vpop.f32.mrb[0].mxu0
      %v3015 = vadd.f32 %v2910, %v3014
      %v3016 = vpop.f32.mrb[0].mxu0
      %3017 = vdwg.mxu0
      %3018 = vrot.lane.b32.xlu0 %v2642, 96
      %v3019 = vpop.permute.xlu0 %3018
      %v3020 = vsel %vm1560, %v3019, 0
      %3022 = vmatprep.subr.mxu0 0.0
      %3023 = vmatpush1.msra.mxu0 %v2643
      %3024 = vmatprep.subr.mxu0 0.0
      %3025 = vmatpush1.msra.mxu0 %v2644
      %3026 = vmatprep.subr.mxu0 0.0
      %3027 = vmatpush1.msra.mxu0 0.0
      %3028 = vmatprep.subr.mxu0 0.0
      %3029 = vmatpush1.msra.mxu0 0.0
      %3030 = vmatprep.subr.mxu0 0.0
      %3031 = vmatpush1.msra.mxu0 0.0
      %3032 = vmatprep.subr.mxu0 0.0
      %3033 = vmatpush1.msra.mxu0 0.0
      %3034 = vmatprep.subr.mxu0 0.0
      %3035 = vmatpush1.msra.mxu0 0.0
      %3036 = vmatprep.subr.mxu0 0.0
      %3037 = vmatpush1.msra.mxu0 0.0
      %3038 = vmatprep.subr.mxu0 0.0
      %3039 = vmatpush1.msra.mxu0 0.0
      %3040 = vmatprep.subr.mxu0 0.0
      %3041 = vmatpush1.msra.mxu0 0.0
      %3042 = vmatprep.subr.mxu0 0.0
      %3043 = vmatpush1.msra.mxu0 0.0
      %3044 = vmatprep.subr.mxu0 0.0
      %3045 = vmatpush1.msra.mxu0 0.0
      %3046 = vmatprep.subr.mxu0 0.0
      %3047 = vmatpush1.msra.mxu0 0.0
      %3048 = vmatprep.subr.mxu0 0.0
      %3049 = vmatpush1.msra.mxu0 0.0
      %3050 = vmatprep.subr.mxu0 0.0
      %3051 = vmatpush1.msra.mxu0 0.0
      %3052 = vmatprep.subr.mxu0 0.0
      %3053 = vmatpush1.msra.mxu0 0.0
      %3054 = vmatprep.subr.mxu0 0.0
      %3055 = vmatpush1.msra.mxu0 0.0
      %3056 = vmatprep.subr.mxu0 0.0
      %3057 = vmatpush1.msra.mxu0 0.0
      %3058 = vmatprep.subr.mxu0 0.0
      %3059 = vmatpush1.msra.mxu0 0.0
      %3060 = vmatprep.subr.mxu0 0.0
      %3061 = vmatpush1.msra.mxu0 0.0
      %3062 = vmatprep.subr.mxu0 0.0
      %3063 = vmatpush1.msra.mxu0 0.0
      %3064 = vmatprep.subr.mxu0 0.0
      %3065 = vmatpush1.msra.mxu0 0.0
      %3066 = vmatprep.subr.mxu0 0.0
      %3067 = vmatpush1.msra.mxu0 0.0
      %3068 = vmatprep.subr.mxu0 0.0
      %3069 = vmatpush1.msra.mxu0 0.0
      %3070 = vmatprep.subr.mxu0 0.0
      %3071 = vmatpush1.msra.mxu0 0.0
      %3072 = vmatprep.subr.mxu0 0.0
      %3073 = vmatpush1.msra.mxu0 0.0
      %3074 = vmatprep.subr.mxu0 0.0
      %3075 = vmatpush1.msra.mxu0 0.0
      %3076 = vmatprep.subr.mxu0 0.0
      %3077 = vmatpush1.msra.mxu0 0.0
      %3078 = vmatprep.subr.mxu0 0.0
      %3079 = vmatpush1.msra.mxu0 0.0
      %3080 = vmatprep.subr.mxu0 0.0
      %3081 = vmatpush1.msra.mxu0 0.0
      %3082 = vmatprep.subr.mxu0 0.0
      %3083 = vmatpush1.msra.mxu0 0.0
      %3084 = vmatprep.subr.mxu0 0.0
      %3085 = vmatpush1.msra.mxu0 0.0
      %3086 = vmatprep.mubr.f32.mxu0 0.0
      %3087 = vmatmul.mubr.f32.gmra.mrb[0].mxu0 %v3020
      %v3088 = vpop.f32.mrb[0].mxu0
      %v3089 = vadd.f32 %v2658, %v3088
      %v3090 = vpop.f32.mrb[0].mxu0
      %3091 = vdwg.mxu0
      %v3092 = vmax.f32 %v3089, 0.0
      %3093 = vxpose.xlu0.b32.start [1/16] %v3092, 128
      %3094 = vxpose.xlu0.b32.cont [2/16] 0.0, 128
      %3095 = vxpose.xlu0.b32.cont [3/16] 0.0, 128
      %3096 = vxpose.xlu0.b32.cont [4/16] 0.0, 128
      %3097 = vxpose.xlu0.b32.cont [5/16] 0.0, 128
      %3098 = vxpose.xlu0.b32.cont [6/16] 0.0, 128
      %3099 = vxpose.xlu0.b32.cont [7/16] 0.0, 128
      %3100 = vxpose.xlu0.b32.cont [8/16] 0.0, 128
      %3101 = vxpose.xlu0.b32.cont [9/16] 0.0, 128
      %3102 = vxpose.xlu0.b32.cont [10/16] 0.0, 128
      %3103 = vxpose.xlu0.b32.cont [11/16] 0.0, 128
      %3104 = vxpose.xlu0.b32.cont [12/16] 0.0, 128
      %3105 = vxpose.xlu0.b32.cont [13/16] 0.0, 128
      %3106 = vxpose.xlu0.b32.cont [14/16] 0.0, 128
      %3107 = vxpose.xlu0.b32.cont [15/16] 0.0, 128
      %3108 = vxpose.xlu0.b32.end [16/16] 0.0, 128
      %v3109 = vpop.trf.xlu0
      %v3110 = vpop.trf.xlu0
      %v3111 = vpop.trf.xlu0
      %v3112 = vpop.trf.xlu0
      %v3113 = vpop.trf.xlu0
      %v3114 = vpop.trf.xlu0
      %v3115 = vpop.trf.xlu0
      %v3116 = vpop.trf.xlu0
      %v3117 = vpop.trf.xlu0
      %v3118 = vpop.trf.xlu0
      %v3119 = vpop.trf.xlu0
      %v3120 = vpop.trf.xlu0
      %v3121 = vpop.trf.xlu0
      %v3122 = vpop.trf.xlu0
      %v3123 = vpop.trf.xlu0
      %v3124 = vpop.trf.xlu0
      %v3126 = vsel %vm334, %v3109, 0
      %3128 = vmatprep.subr.mxu0 0.0
      %3129 = vmatpush1.msra.mxu0 %v2648
      %3130 = vmatprep.subr.mxu0 0.0
      %3131 = vmatpush1.msra.mxu0 0.0
      %3132 = vmatprep.subr.mxu0 0.0
      %3133 = vmatpush1.msra.mxu0 0.0
      %3134 = vmatprep.subr.mxu0 0.0
      %3135 = vmatpush1.msra.mxu0 0.0
      %3136 = vmatprep.subr.mxu0 0.0
      %3137 = vmatpush1.msra.mxu0 0.0
      %3138 = vmatprep.subr.mxu0 0.0
      %3139 = vmatpush1.msra.mxu0 0.0
      %3140 = vmatprep.subr.mxu0 0.0
      %3141 = vmatpush1.msra.mxu0 0.0
      %3142 = vmatprep.subr.mxu0 0.0
      %3143 = vmatpush1.msra.mxu0 0.0
      %3144 = vmatprep.subr.mxu0 0.0
      %3145 = vmatpush1.msra.mxu0 0.0
      %3146 = vmatprep.subr.mxu0 0.0
      %3147 = vmatpush1.msra.mxu0 0.0
      %3148 = vmatprep.subr.mxu0 0.0
      %3149 = vmatpush1.msra.mxu0 0.0
      %3150 = vmatprep.subr.mxu0 0.0
      %3151 = vmatpush1.msra.mxu0 0.0
      %3152 = vmatprep.subr.mxu0 0.0
      %3153 = vmatpush1.msra.mxu0 0.0
      %3154 = vmatprep.subr.mxu0 0.0
      %3155 = vmatpush1.msra.mxu0 0.0
      %3156 = vmatprep.subr.mxu0 0.0
      %3157 = vmatpush1.msra.mxu0 0.0
      %3158 = vmatprep.subr.mxu0 0.0
      %3159 = vmatpush1.msra.mxu0 0.0
      %3160 = vmatprep.subr.mxu0 0.0
      %3161 = vmatpush1.msra.mxu0 0.0
      %3162 = vmatprep.subr.mxu0 0.0
      %3163 = vmatpush1.msra.mxu0 0.0
      %3164 = vmatprep.subr.mxu0 0.0
      %3165 = vmatpush1.msra.mxu0 0.0
      %3166 = vmatprep.subr.mxu0 0.0
      %3167 = vmatpush1.msra.mxu0 0.0
      %3168 = vmatprep.subr.mxu0 0.0
      %3169 = vmatpush1.msra.mxu0 0.0
      %3170 = vmatprep.subr.mxu0 0.0
      %3171 = vmatpush1.msra.mxu0 0.0
      %3172 = vmatprep.subr.mxu0 0.0
      %3173 = vmatpush1.msra.mxu0 0.0
      %3174 = vmatprep.subr.mxu0 0.0
      %3175 = vmatpush1.msra.mxu0 0.0
      %3176 = vmatprep.subr.mxu0 0.0
      %3177 = vmatpush1.msra.mxu0 0.0
      %3178 = vmatprep.subr.mxu0 0.0
      %3179 = vmatpush1.msra.mxu0 0.0
      %3180 = vmatprep.subr.mxu0 0.0
      %3181 = vmatpush1.msra.mxu0 0.0
      %3182 = vmatprep.subr.mxu0 0.0
      %3183 = vmatpush1.msra.mxu0 0.0
      %3184 = vmatprep.subr.mxu0 0.0
      %3185 = vmatpush1.msra.mxu0 0.0
      %3186 = vmatprep.subr.mxu0 0.0
      %3187 = vmatpush1.msra.mxu0 0.0
      %3188 = vmatprep.subr.mxu0 0.0
      %3189 = vmatpush1.msra.mxu0 0.0
      %3190 = vmatprep.subr.mxu0 0.0
      %3191 = vmatpush1.msra.mxu0 0.0
      %3192 = vmatprep.mubr.f32.mxu0 0.0
      %3193 = vmatmul.mubr.f32.gmra.mrb[0].mxu0 %v3126
      %v3194 = vpop.f32.mrb[0].mxu0
      %v3195 = vadd.f32 0.0, %v3194
      %v3196 = vpop.f32.mrb[0].mxu0
      %3197 = vdwg.mxu0
      %v3198 = vadd.f32 %v3015, %v3195
      %3199 = vrot.lane.b32.xlu0 %v2642, 80
      %v3200 = vpop.permute.xlu0 %3199
      %v3201 = vsel %vm1560, %v3200, 0
      %3203 = vmatprep.subr.mxu0 0.0
      %3204 = vmatpush1.msra.mxu0 %v2643
      %3205 = vmatprep.subr.mxu0 0.0
      %3206 = vmatpush1.msra.mxu0 %v2644
      %3207 = vmatprep.subr.mxu0 0.0
      %3208 = vmatpush1.msra.mxu0 0.0
      %3209 = vmatprep.subr.mxu0 0.0
      %3210 = vmatpush1.msra.mxu0 0.0
      %3211 = vmatprep.subr.mxu0 0.0
      %3212 = vmatpush1.msra.mxu0 0.0
      %3213 = vmatprep.subr.mxu0 0.0
      %3214 = vmatpush1.msra.mxu0 0.0
      %3215 = vmatprep.subr.mxu0 0.0
      %3216 = vmatpush1.msra.mxu0 0.0
      %3217 = vmatprep.subr.mxu0 0.0
      %3218 = vmatpush1.msra.mxu0 0.0
      %3219 = vmatprep.subr.mxu0 0.0
      %3220 = vmatpush1.msra.mxu0 0.0
      %3221 = vmatprep.subr.mxu0 0.0
      %3222 = vmatpush1.msra.mxu0 0.0
      %3223 = vmatprep.subr.mxu0 0.0
      %3224 = vmatpush1.msra.mxu0 0.0
      %3225 = vmatprep.subr.mxu0 0.0
      %3226 = vmatpush1.msra.mxu0 0.0
      %3227 = vmatprep.subr.mxu0 0.0
      %3228 = vmatpush1.msra.mxu0 0.0
      %3229 = vmatprep.subr.mxu0 0.0
      %3230 = vmatpush1.msra.mxu0 0.0
      %3231 = vmatprep.subr.mxu0 0.0
      %3232 = vmatpush1.msra.mxu0 0.0
      %3233 = vmatprep.subr.mxu0 0.0
      %3234 = vmatpush1.msra.mxu0 0.0
      %3235 = vmatprep.subr.mxu0 0.0
      %3236 = vmatpush1.msra.mxu0 0.0
      %3237 = vmatprep.subr.mxu0 0.0
      %3238 = vmatpush1.msra.mxu0 0.0
      %3239 = vmatprep.subr.mxu0 0.0
      %3240 = vmatpush1.msra.mxu0 0.0
      %3241 = vmatprep.subr.mxu0 0.0
      %3242 = vmatpush1.msra.mxu0 0.0
      %3243 = vmatprep.subr.mxu0 0.0
      %3244 = vmatpush1.msra.mxu0 0.0
      %3245 = vmatprep.subr.mxu0 0.0
      %3246 = vmatpush1.msra.mxu0 0.0
      %3247 = vmatprep.subr.mxu0 0.0
      %3248 = vmatpush1.msra.mxu0 0.0
      %3249 = vmatprep.subr.mxu0 0.0
      %3250 = vmatpush1.msra.mxu0 0.0
      %3251 = vmatprep.subr.mxu0 0.0
      %3252 = vmatpush1.msra.mxu0 0.0
      %3253 = vmatprep.subr.mxu0 0.0
      %3254 = vmatpush1.msra.mxu0 0.0
      %3255 = vmatprep.subr.mxu0 0.0
      %3256 = vmatpush1.msra.mxu0 0.0
      %3257 = vmatprep.subr.mxu0 0.0
      %3258 = vmatpush1.msra.mxu0 0.0
      %3259 = vmatprep.subr.mxu0 0.0
      %3260 = vmatpush1.msra.mxu0 0.0
      %3261 = vmatprep.subr.mxu0 0.0
      %3262 = vmatpush1.msra.mxu0 0.0
      %3263 = vmatprep.subr.mxu0 0.0
      %3264 = vmatpush1.msra.mxu0 0.0
      %3265 = vmatprep.subr.mxu0 0.0
      %3266 = vmatpush1.msra.mxu0 0.0
      %3267 = vmatprep.mubr.f32.mxu0 0.0
      %3268 = vmatmul.mubr.f32.gmra.mrb[0].mxu0 %v3201
      %v3269 = vpop.f32.mrb[0].mxu0
      %v3270 = vadd.f32 %v2658, %v3269
      %v3271 = vpop.f32.mrb[0].mxu0
      %3272 = vdwg.mxu0
      %v3273 = vmax.f32 %v3270, 0.0
      %3274 = vxpose.xlu0.b32.start [1/16] %v3273, 128
      %3275 = vxpose.xlu0.b32.cont [2/16] 0.0, 128
      %3276 = vxpose.xlu0.b32.cont [3/16] 0.0, 128
      %3277 = vxpose.xlu0.b32.cont [4/16] 0.0, 128
      %3278 = vxpose.xlu0.b32.cont [5/16] 0.0, 128
      %3279 = vxpose.xlu0.b32.cont [6/16] 0.0, 128
      %3280 = vxpose.xlu0.b32.cont [7/16] 0.0, 128
      %3281 = vxpose.xlu0.b32.cont [8/16] 0.0, 128
      %3282 = vxpose.xlu0.b32.cont [9/16] 0.0, 128
      %3283 = vxpose.xlu0.b32.cont [10/16] 0.0, 128
      %3284 = vxpose.xlu0.b32.cont [11/16] 0.0, 128
      %3285 = vxpose.xlu0.b32.cont [12/16] 0.0, 128
      %3286 = vxpose.xlu0.b32.cont [13/16] 0.0, 128
      %3287 = vxpose.xlu0.b32.cont [14/16] 0.0, 128
      %3288 = vxpose.xlu0.b32.cont [15/16] 0.0, 128
      %3289 = vxpose.xlu0.b32.end [16/16] 0.0, 128
      %v3290 = vpop.trf.xlu0
      %v3291 = vpop.trf.xlu0
      %v3292 = vpop.trf.xlu0
      %v3293 = vpop.trf.xlu0
      %v3294 = vpop.trf.xlu0
      %v3295 = vpop.trf.xlu0
      %v3296 = vpop.trf.xlu0
      %v3297 = vpop.trf.xlu0
      %v3298 = vpop.trf.xlu0
      %v3299 = vpop.trf.xlu0
      %v3300 = vpop.trf.xlu0
      %v3301 = vpop.trf.xlu0
      %v3302 = vpop.trf.xlu0
      %v3303 = vpop.trf.xlu0
      %v3304 = vpop.trf.xlu0
      %v3305 = vpop.trf.xlu0
      %v3307 = vsel %vm334, %v3290, 0
      %3309 = vmatprep.subr.mxu0 0.0
      %3310 = vmatpush1.msra.mxu0 %v2649
      %3311 = vmatprep.subr.mxu0 0.0
      %3312 = vmatpush1.msra.mxu0 0.0
      %3313 = vmatprep.subr.mxu0 0.0
      %3314 = vmatpush1.msra.mxu0 0.0
      %3315 = vmatprep.subr.mxu0 0.0
      %3316 = vmatpush1.msra.mxu0 0.0
      %3317 = vmatprep.subr.mxu0 0.0
      %3318 = vmatpush1.msra.mxu0 0.0
      %3319 = vmatprep.subr.mxu0 0.0
      %3320 = vmatpush1.msra.mxu0 0.0
      %3321 = vmatprep.subr.mxu0 0.0
      %3322 = vmatpush1.msra.mxu0 0.0
      %3323 = vmatprep.subr.mxu0 0.0
      %3324 = vmatpush1.msra.mxu0 0.0
      %3325 = vmatprep.subr.mxu0 0.0
      %3326 = vmatpush1.msra.mxu0 0.0
      %3327 = vmatprep.subr.mxu0 0.0
      %3328 = vmatpush1.msra.mxu0 0.0
      %3329 = vmatprep.subr.mxu0 0.0
      %3330 = vmatpush1.msra.mxu0 0.0
      %3331 = vmatprep.subr.mxu0 0.0
      %3332 = vmatpush1.msra.mxu0 0.0
      %3333 = vmatprep.subr.mxu0 0.0
      %3334 = vmatpush1.msra.mxu0 0.0
      %3335 = vmatprep.subr.mxu0 0.0
      %3336 = vmatpush1.msra.mxu0 0.0
      %3337 = vmatprep.subr.mxu0 0.0
      %3338 = vmatpush1.msra.mxu0 0.0
      %3339 = vmatprep.subr.mxu0 0.0
      %3340 = vmatpush1.msra.mxu0 0.0
      %3341 = vmatprep.subr.mxu0 0.0
      %3342 = vmatpush1.msra.mxu0 0.0
      %3343 = vmatprep.subr.mxu0 0.0
      %3344 = vmatpush1.msra.mxu0 0.0
      %3345 = vmatprep.subr.mxu0 0.0
      %3346 = vmatpush1.msra.mxu0 0.0
      %3347 = vmatprep.subr.mxu0 0.0
      %3348 = vmatpush1.msra.mxu0 0.0
      %3349 = vmatprep.subr.mxu0 0.0
      %3350 = vmatpush1.msra.mxu0 0.0
      %3351 = vmatprep.subr.mxu0 0.0
      %3352 = vmatpush1.msra.mxu0 0.0
      %3353 = vmatprep.subr.mxu0 0.0
      %3354 = vmatpush1.msra.mxu0 0.0
      %3355 = vmatprep.subr.mxu0 0.0
      %3356 = vmatpush1.msra.mxu0 0.0
      %3357 = vmatprep.subr.mxu0 0.0
      %3358 = vmatpush1.msra.mxu0 0.0
      %3359 = vmatprep.subr.mxu0 0.0
      %3360 = vmatpush1.msra.mxu0 0.0
      %3361 = vmatprep.subr.mxu0 0.0
      %3362 = vmatpush1.msra.mxu0 0.0
      %3363 = vmatprep.subr.mxu0 0.0
      %3364 = vmatpush1.msra.mxu0 0.0
      %3365 = vmatprep.subr.mxu0 0.0
      %3366 = vmatpush1.msra.mxu0 0.0
      %3367 = vmatprep.subr.mxu0 0.0
      %3368 = vmatpush1.msra.mxu0 0.0
      %3369 = vmatprep.subr.mxu0 0.0
      %3370 = vmatpush1.msra.mxu0 0.0
      %3371 = vmatprep.subr.mxu0 0.0
      %3372 = vmatpush1.msra.mxu0 0.0
      %3373 = vmatprep.mubr.f32.mxu0 0.0
      %3374 = vmatmul.mubr.f32.gmra.mrb[0].mxu0 %v3307
      %v3375 = vpop.f32.mrb[0].mxu0
      %v3376 = vadd.f32 0.0, %v3375
      %v3377 = vpop.f32.mrb[0].mxu0
      %3378 = vdwg.mxu0
      %v3379 = vadd.f32 %v3198, %v3376
      %3380 = vrot.lane.b32.xlu0 %v2642, 64
      %v3381 = vpop.permute.xlu0 %3380
      %v3382 = vsel %vm1560, %v3381, 0
      %3384 = vmatprep.subr.mxu0 0.0
      %3385 = vmatpush1.msra.mxu0 %v2643
      %3386 = vmatprep.subr.mxu0 0.0
      %3387 = vmatpush1.msra.mxu0 %v2644
      %3388 = vmatprep.subr.mxu0 0.0
      %3389 = vmatpush1.msra.mxu0 0.0
      %3390 = vmatprep.subr.mxu0 0.0
      %3391 = vmatpush1.msra.mxu0 0.0
      %3392 = vmatprep.subr.mxu0 0.0
      %3393 = vmatpush1.msra.mxu0 0.0
      %3394 = vmatprep.subr.mxu0 0.0
      %3395 = vmatpush1.msra.mxu0 0.0
      %3396 = vmatprep.subr.mxu0 0.0
      %3397 = vmatpush1.msra.mxu0 0.0
      %3398 = vmatprep.subr.mxu0 0.0
      %3399 = vmatpush1.msra.mxu0 0.0
      %3400 = vmatprep.subr.mxu0 0.0
      %3401 = vmatpush1.msra.mxu0 0.0
      %3402 = vmatprep.subr.mxu0 0.0
      %3403 = vmatpush1.msra.mxu0 0.0
      %3404 = vmatprep.subr.mxu0 0.0
      %3405 = vmatpush1.msra.mxu0 0.0
      %3406 = vmatprep.subr.mxu0 0.0
      %3407 = vmatpush1.msra.mxu0 0.0
      %3408 = vmatprep.subr.mxu0 0.0
      %3409 = vmatpush1.msra.mxu0 0.0
      %3410 = vmatprep.subr.mxu0 0.0
      %3411 = vmatpush1.msra.mxu0 0.0
      %3412 = vmatprep.subr.mxu0 0.0
      %3413 = vmatpush1.msra.mxu0 0.0
      %3414 = vmatprep.subr.mxu0 0.0
      %3415 = vmatpush1.msra.mxu0 0.0
      %3416 = vmatprep.subr.mxu0 0.0
      %3417 = vmatpush1.msra.mxu0 0.0
      %3418 = vmatprep.subr.mxu0 0.0
      %3419 = vmatpush1.msra.mxu0 0.0
      %3420 = vmatprep.subr.mxu0 0.0
      %3421 = vmatpush1.msra.mxu0 0.0
      %3422 = vmatprep.subr.mxu0 0.0
      %3423 = vmatpush1.msra.mxu0 0.0
      %3424 = vmatprep.subr.mxu0 0.0
      %3425 = vmatpush1.msra.mxu0 0.0
      %3426 = vmatprep.subr.mxu0 0.0
      %3427 = vmatpush1.msra.mxu0 0.0
      %3428 = vmatprep.subr.mxu0 0.0
      %3429 = vmatpush1.msra.mxu0 0.0
      %3430 = vmatprep.subr.mxu0 0.0
      %3431 = vmatpush1.msra.mxu0 0.0
      %3432 = vmatprep.subr.mxu0 0.0
      %3433 = vmatpush1.msra.mxu0 0.0
      %3434 = vmatprep.subr.mxu0 0.0
      %3435 = vmatpush1.msra.mxu0 0.0
      %3436 = vmatprep.subr.mxu0 0.0
      %3437 = vmatpush1.msra.mxu0 0.0
      %3438 = vmatprep.subr.mxu0 0.0
      %3439 = vmatpush1.msra.mxu0 0.0
      %3440 = vmatprep.subr.mxu0 0.0
      %3441 = vmatpush1.msra.mxu0 0.0
      %3442 = vmatprep.subr.mxu0 0.0
      %3443 = vmatpush1.msra.mxu0 0.0
      %3444 = vmatprep.subr.mxu0 0.0
      %3445 = vmatpush1.msra.mxu0 0.0
      %3446 = vmatprep.subr.mxu0 0.0
      %3447 = vmatpush1.msra.mxu0 0.0
      %3448 = vmatprep.mubr.f32.mxu0 0.0
      %3449 = vmatmul.mubr.f32.gmra.mrb[0].mxu0 %v3382
      %v3450 = vpop.f32.mrb[0].mxu0
      %v3451 = vadd.f32 %v2658, %v3450
      %v3452 = vpop.f32.mrb[0].mxu0
      %3453 = vdwg.mxu0
      %v3454 = vmax.f32 %v3451, 0.0
      %3455 = vxpose.xlu0.b32.start [1/16] %v3454, 128
      %3456 = vxpose.xlu0.b32.cont [2/16] 0.0, 128
      %3457 = vxpose.xlu0.b32.cont [3/16] 0.0, 128
      %3458 = vxpose.xlu0.b32.cont [4/16] 0.0, 128
      %3459 = vxpose.xlu0.b32.cont [5/16] 0.0, 128
      %3460 = vxpose.xlu0.b32.cont [6/16] 0.0, 128
      %3461 = vxpose.xlu0.b32.cont [7/16] 0.0, 128
      %3462 = vxpose.xlu0.b32.cont [8/16] 0.0, 128
      %3463 = vxpose.xlu0.b32.cont [9/16] 0.0, 128
      %3464 = vxpose.xlu0.b32.cont [10/16] 0.0, 128
      %3465 = vxpose.xlu0.b32.cont [11/16] 0.0, 128
      %3466 = vxpose.xlu0.b32.cont [12/16] 0.0, 128
      %3467 = vxpose.xlu0.b32.cont [13/16] 0.0, 128
      %3468 = vxpose.xlu0.b32.cont [14/16] 0.0, 128
      %3469 = vxpose.xlu0.b32.cont [15/16] 0.0, 128
      %3470 = vxpose.xlu0.b32.end [16/16] 0.0, 128
      %v3471 = vpop.trf.xlu0
      %v3472 = vpop.trf.xlu0
      %v3473 = vpop.trf.xlu0
      %v3474 = vpop.trf.xlu0
      %v3475 = vpop.trf.xlu0
      %v3476 = vpop.trf.xlu0
      %v3477 = vpop.trf.xlu0
      %v3478 = vpop.trf.xlu0
      %v3479 = vpop.trf.xlu0
      %v3480 = vpop.trf.xlu0
      %v3481 = vpop.trf.xlu0
      %v3482 = vpop.trf.xlu0
      %v3483 = vpop.trf.xlu0
      %v3484 = vpop.trf.xlu0
      %v3485 = vpop.trf.xlu0
      %v3486 = vpop.trf.xlu0
      %v3488 = vsel %vm334, %v3471, 0
      %3490 = vmatprep.subr.mxu0 0.0
      %3491 = vmatpush1.msra.mxu0 %v2650
      %3492 = vmatprep.subr.mxu0 0.0
      %3493 = vmatpush1.msra.mxu0 0.0
      %3494 = vmatprep.subr.mxu0 0.0
      %3495 = vmatpush1.msra.mxu0 0.0
      %3496 = vmatprep.subr.mxu0 0.0
      %3497 = vmatpush1.msra.mxu0 0.0
      %3498 = vmatprep.subr.mxu0 0.0
      %3499 = vmatpush1.msra.mxu0 0.0
      %3500 = vmatprep.subr.mxu0 0.0
      %3501 = vmatpush1.msra.mxu0 0.0
      %3502 = vmatprep.subr.mxu0 0.0
      %3503 = vmatpush1.msra.mxu0 0.0
      %3504 = vmatprep.subr.mxu0 0.0
      %3505 = vmatpush1.msra.mxu0 0.0
      %3506 = vmatprep.subr.mxu0 0.0
      %3507 = vmatpush1.msra.mxu0 0.0
      %3508 = vmatprep.subr.mxu0 0.0
      %3509 = vmatpush1.msra.mxu0 0.0
      %3510 = vmatprep.subr.mxu0 0.0
      %3511 = vmatpush1.msra.mxu0 0.0
      %3512 = vmatprep.subr.mxu0 0.0
      %3513 = vmatpush1.msra.mxu0 0.0
      %3514 = vmatprep.subr.mxu0 0.0
      %3515 = vmatpush1.msra.mxu0 0.0
      %3516 = vmatprep.subr.mxu0 0.0
      %3517 = vmatpush1.msra.mxu0 0.0
      %3518 = vmatprep.subr.mxu0 0.0
      %3519 = vmatpush1.msra.mxu0 0.0
      %3520 = vmatprep.subr.mxu0 0.0
      %3521 = vmatpush1.msra.mxu0 0.0
      %3522 = vmatprep.subr.mxu0 0.0
      %3523 = vmatpush1.msra.mxu0 0.0
      %3524 = vmatprep.subr.mxu0 0.0
      %3525 = vmatpush1.msra.mxu0 0.0
      %3526 = vmatprep.subr.mxu0 0.0
      %3527 = vmatpush1.msra.mxu0 0.0
      %3528 = vmatprep.subr.mxu0 0.0
      %3529 = vmatpush1.msra.mxu0 0.0
      %3530 = vmatprep.subr.mxu0 0.0
      %3531 = vmatpush1.msra.mxu0 0.0
      %3532 = vmatprep.subr.mxu0 0.0
      %3533 = vmatpush1.msra.mxu0 0.0
      %3534 = vmatprep.subr.mxu0 0.0
      %3535 = vmatpush1.msra.mxu0 0.0
      %3536 = vmatprep.subr.mxu0 0.0
      %3537 = vmatpush1.msra.mxu0 0.0
      %3538 = vmatprep.subr.mxu0 0.0
      %3539 = vmatpush1.msra.mxu0 0.0
      %3540 = vmatprep.subr.mxu0 0.0
      %3541 = vmatpush1.msra.mxu0 0.0
      %3542 = vmatprep.subr.mxu0 0.0
      %3543 = vmatpush1.msra.mxu0 0.0
      %3544 = vmatprep.subr.mxu0 0.0
      %3545 = vmatpush1.msra.mxu0 0.0
      %3546 = vmatprep.subr.mxu0 0.0
      %3547 = vmatpush1.msra.mxu0 0.0
      %3548 = vmatprep.subr.mxu0 0.0
      %3549 = vmatpush1.msra.mxu0 0.0
      %3550 = vmatprep.subr.mxu0 0.0
      %3551 = vmatpush1.msra.mxu0 0.0
      %3552 = vmatprep.subr.mxu0 0.0
      %3553 = vmatpush1.msra.mxu0 0.0
      %3554 = vmatprep.mubr.f32.mxu0 0.0
      %3555 = vmatmul.mubr.f32.gmra.mrb[0].mxu0 %v3488
      %v3556 = vpop.f32.mrb[0].mxu0
      %v3557 = vadd.f32 0.0, %v3556
      %v3558 = vpop.f32.mrb[0].mxu0
      %3559 = vdwg.mxu0
      %v3560 = vadd.f32 %v3379, %v3557
      %3561 = vrot.lane.b32.xlu0 %v2642, 48
      %v3562 = vpop.permute.xlu0 %3561
      %v3563 = vsel %vm1560, %v3562, 0
      %3565 = vmatprep.subr.mxu0 0.0
      %3566 = vmatpush1.msra.mxu0 %v2643
      %3567 = vmatprep.subr.mxu0 0.0
      %3568 = vmatpush1.msra.mxu0 %v2644
      %3569 = vmatprep.subr.mxu0 0.0
      %3570 = vmatpush1.msra.mxu0 0.0
      %3571 = vmatprep.subr.mxu0 0.0
      %3572 = vmatpush1.msra.mxu0 0.0
      %3573 = vmatprep.subr.mxu0 0.0
      %3574 = vmatpush1.msra.mxu0 0.0
      %3575 = vmatprep.subr.mxu0 0.0
      %3576 = vmatpush1.msra.mxu0 0.0
      %3577 = vmatprep.subr.mxu0 0.0
      %3578 = vmatpush1.msra.mxu0 0.0
      %3579 = vmatprep.subr.mxu0 0.0
      %3580 = vmatpush1.msra.mxu0 0.0
      %3581 = vmatprep.subr.mxu0 0.0
      %3582 = vmatpush1.msra.mxu0 0.0
      %3583 = vmatprep.subr.mxu0 0.0
      %3584 = vmatpush1.msra.mxu0 0.0
      %3585 = vmatprep.subr.mxu0 0.0
      %3586 = vmatpush1.msra.mxu0 0.0
      %3587 = vmatprep.subr.mxu0 0.0
      %3588 = vmatpush1.msra.mxu0 0.0
      %3589 = vmatprep.subr.mxu0 0.0
      %3590 = vmatpush1.msra.mxu0 0.0
      %3591 = vmatprep.subr.mxu0 0.0
      %3592 = vmatpush1.msra.mxu0 0.0
      %3593 = vmatprep.subr.mxu0 0.0
      %3594 = vmatpush1.msra.mxu0 0.0
      %3595 = vmatprep.subr.mxu0 0.0
      %3596 = vmatpush1.msra.mxu0 0.0
      %3597 = vmatprep.subr.mxu0 0.0
      %3598 = vmatpush1.msra.mxu0 0.0
      %3599 = vmatprep.subr.mxu0 0.0
      %3600 = vmatpush1.msra.mxu0 0.0
      %3601 = vmatprep.subr.mxu0 0.0
      %3602 = vmatpush1.msra.mxu0 0.0
      %3603 = vmatprep.subr.mxu0 0.0
      %3604 = vmatpush1.msra.mxu0 0.0
      %3605 = vmatprep.subr.mxu0 0.0
      %3606 = vmatpush1.msra.mxu0 0.0
      %3607 = vmatprep.subr.mxu0 0.0
      %3608 = vmatpush1.msra.mxu0 0.0
      %3609 = vmatprep.subr.mxu0 0.0
      %3610 = vmatpush1.msra.mxu0 0.0
      %3611 = vmatprep.subr.mxu0 0.0
      %3612 = vmatpush1.msra.mxu0 0.0
      %3613 = vmatprep.subr.mxu0 0.0
      %3614 = vmatpush1.msra.mxu0 0.0
      %3615 = vmatprep.subr.mxu0 0.0
      %3616 = vmatpush1.msra.mxu0 0.0
      %3617 = vmatprep.subr.mxu0 0.0
      %3618 = vmatpush1.msra.mxu0 0.0
      %3619 = vmatprep.subr.mxu0 0.0
      %3620 = vmatpush1.msra.mxu0 0.0
      %3621 = vmatprep.subr.mxu0 0.0
      %3622 = vmatpush1.msra.mxu0 0.0
      %3623 = vmatprep.subr.mxu0 0.0
      %3624 = vmatpush1.msra.mxu0 0.0
      %3625 = vmatprep.subr.mxu0 0.0
      %3626 = vmatpush1.msra.mxu0 0.0
      %3627 = vmatprep.subr.mxu0 0.0
      %3628 = vmatpush1.msra.mxu0 0.0
      %3629 = vmatprep.mubr.f32.mxu0 0.0
      %3630 = vmatmul.mubr.f32.gmra.mrb[0].mxu0 %v3563
      %v3631 = vpop.f32.mrb[0].mxu0
      %v3632 = vadd.f32 %v2658, %v3631
      %v3633 = vpop.f32.mrb[0].mxu0
      %3634 = vdwg.mxu0
      %v3635 = vmax.f32 %v3632, 0.0
      %3636 = vxpose.xlu0.b32.start [1/16] %v3635, 128
      %3637 = vxpose.xlu0.b32.cont [2/16] 0.0, 128
      %3638 = vxpose.xlu0.b32.cont [3/16] 0.0, 128
      %3639 = vxpose.xlu0.b32.cont [4/16] 0.0, 128
      %3640 = vxpose.xlu0.b32.cont [5/16] 0.0, 128
      %3641 = vxpose.xlu0.b32.cont [6/16] 0.0, 128
      %3642 = vxpose.xlu0.b32.cont [7/16] 0.0, 128
      %3643 = vxpose.xlu0.b32.cont [8/16] 0.0, 128
      %3644 = vxpose.xlu0.b32.cont [9/16] 0.0, 128
      %3645 = vxpose.xlu0.b32.cont [10/16] 0.0, 128
      %3646 = vxpose.xlu0.b32.cont [11/16] 0.0, 128
      %3647 = vxpose.xlu0.b32.cont [12/16] 0.0, 128
      %3648 = vxpose.xlu0.b32.cont [13/16] 0.0, 128
      %3649 = vxpose.xlu0.b32.cont [14/16] 0.0, 128
      %3650 = vxpose.xlu0.b32.cont [15/16] 0.0, 128
      %3651 = vxpose.xlu0.b32.end [16/16] 0.0, 128
      %v3652 = vpop.trf.xlu0
      %v3653 = vpop.trf.xlu0
      %v3654 = vpop.trf.xlu0
      %v3655 = vpop.trf.xlu0
      %v3656 = vpop.trf.xlu0
      %v3657 = vpop.trf.xlu0
      %v3658 = vpop.trf.xlu0
      %v3659 = vpop.trf.xlu0
      %v3660 = vpop.trf.xlu0
      %v3661 = vpop.trf.xlu0
      %v3662 = vpop.trf.xlu0
      %v3663 = vpop.trf.xlu0
      %v3664 = vpop.trf.xlu0
      %v3665 = vpop.trf.xlu0
      %v3666 = vpop.trf.xlu0
      %v3667 = vpop.trf.xlu0
      %v3669 = vsel %vm334, %v3652, 0
      %3671 = vmatprep.subr.mxu0 0.0
      %3672 = vmatpush1.msra.mxu0 %v2651
      %3673 = vmatprep.subr.mxu0 0.0
      %3674 = vmatpush1.msra.mxu0 0.0
      %3675 = vmatprep.subr.mxu0 0.0
      %3676 = vmatpush1.msra.mxu0 0.0
      %3677 = vmatprep.subr.mxu0 0.0
      %3678 = vmatpush1.msra.mxu0 0.0
      %3679 = vmatprep.subr.mxu0 0.0
      %3680 = vmatpush1.msra.mxu0 0.0
      %3681 = vmatprep.subr.mxu0 0.0
      %3682 = vmatpush1.msra.mxu0 0.0
      %3683 = vmatprep.subr.mxu0 0.0
      %3684 = vmatpush1.msra.mxu0 0.0
      %3685 = vmatprep.subr.mxu0 0.0
      %3686 = vmatpush1.msra.mxu0 0.0
      %3687 = vmatprep.subr.mxu0 0.0
      %3688 = vmatpush1.msra.mxu0 0.0
      %3689 = vmatprep.subr.mxu0 0.0
      %3690 = vmatpush1.msra.mxu0 0.0
      %3691 = vmatprep.subr.mxu0 0.0
      %3692 = vmatpush1.msra.mxu0 0.0
      %3693 = vmatprep.subr.mxu0 0.0
      %3694 = vmatpush1.msra.mxu0 0.0
      %3695 = vmatprep.subr.mxu0 0.0
      %3696 = vmatpush1.msra.mxu0 0.0
      %3697 = vmatprep.subr.mxu0 0.0
      %3698 = vmatpush1.msra.mxu0 0.0
      %3699 = vmatprep.subr.mxu0 0.0
      %3700 = vmatpush1.msra.mxu0 0.0
      %3701 = vmatprep.subr.mxu0 0.0
      %3702 = vmatpush1.msra.mxu0 0.0
      %3703 = vmatprep.subr.mxu0 0.0
      %3704 = vmatpush1.msra.mxu0 0.0
      %3705 = vmatprep.subr.mxu0 0.0
      %3706 = vmatpush1.msra.mxu0 0.0
      %3707 = vmatprep.subr.mxu0 0.0
      %3708 = vmatpush1.msra.mxu0 0.0
      %3709 = vmatprep.subr.mxu0 0.0
      %3710 = vmatpush1.msra.mxu0 0.0
      %3711 = vmatprep.subr.mxu0 0.0
      %3712 = vmatpush1.msra.mxu0 0.0
      %3713 = vmatprep.subr.mxu0 0.0
      %3714 = vmatpush1.msra.mxu0 0.0
      %3715 = vmatprep.subr.mxu0 0.0
      %3716 = vmatpush1.msra.mxu0 0.0
      %3717 = vmatprep.subr.mxu0 0.0
      %3718 = vmatpush1.msra.mxu0 0.0
      %3719 = vmatprep.subr.mxu0 0.0
      %3720 = vmatpush1.msra.mxu0 0.0
      %3721 = vmatprep.subr.mxu0 0.0
      %3722 = vmatpush1.msra.mxu0 0.0
      %3723 = vmatprep.subr.mxu0 0.0
      %3724 = vmatpush1.msra.mxu0 0.0
      %3725 = vmatprep.subr.mxu0 0.0
      %3726 = vmatpush1.msra.mxu0 0.0
      %3727 = vmatprep.subr.mxu0 0.0
      %3728 = vmatpush1.msra.mxu0 0.0
      %3729 = vmatprep.subr.mxu0 0.0
      %3730 = vmatpush1.msra.mxu0 0.0
      %3731 = vmatprep.subr.mxu0 0.0
      %3732 = vmatpush1.msra.mxu0 0.0
      %3733 = vmatprep.subr.mxu0 0.0
      %3734 = vmatpush1.msra.mxu0 0.0
      %3735 = vmatprep.mubr.f32.mxu0 0.0
      %3736 = vmatmul.mubr.f32.gmra.mrb[0].mxu0 %v3669
      %v3737 = vpop.f32.mrb[0].mxu0
      %v3738 = vadd.f32 0.0, %v3737
      %v3739 = vpop.f32.mrb[0].mxu0
      %3740 = vdwg.mxu0
      %v3741 = vadd.f32 %v3560, %v3738
      %3742 = vrot.lane.b32.xlu0 %v2642, 32
      %v3743 = vpop.permute.xlu0 %3742
      %v3744 = vsel %vm1560, %v3743, 0
      %3746 = vmatprep.subr.mxu0 0.0
      %3747 = vmatpush1.msra.mxu0 %v2643
      %3748 = vmatprep.subr.mxu0 0.0
      %3749 = vmatpush1.msra.mxu0 %v2644
      %3750 = vmatprep.subr.mxu0 0.0
      %3751 = vmatpush1.msra.mxu0 0.0
      %3752 = vmatprep.subr.mxu0 0.0
      %3753 = vmatpush1.msra.mxu0 0.0
      %3754 = vmatprep.subr.mxu0 0.0
      %3755 = vmatpush1.msra.mxu0 0.0
      %3756 = vmatprep.subr.mxu0 0.0
      %3757 = vmatpush1.msra.mxu0 0.0
      %3758 = vmatprep.subr.mxu0 0.0
      %3759 = vmatpush1.msra.mxu0 0.0
      %3760 = vmatprep.subr.mxu0 0.0
      %3761 = vmatpush1.msra.mxu0 0.0
      %3762 = vmatprep.subr.mxu0 0.0
      %3763 = vmatpush1.msra.mxu0 0.0
      %3764 = vmatprep.subr.mxu0 0.0
      %3765 = vmatpush1.msra.mxu0 0.0
      %3766 = vmatprep.subr.mxu0 0.0
      %3767 = vmatpush1.msra.mxu0 0.0
      %3768 = vmatprep.subr.mxu0 0.0
      %3769 = vmatpush1.msra.mxu0 0.0
      %3770 = vmatprep.subr.mxu0 0.0
      %3771 = vmatpush1.msra.mxu0 0.0
      %3772 = vmatprep.subr.mxu0 0.0
      %3773 = vmatpush1.msra.mxu0 0.0
      %3774 = vmatprep.subr.mxu0 0.0
      %3775 = vmatpush1.msra.mxu0 0.0
      %3776 = vmatprep.subr.mxu0 0.0
      %3777 = vmatpush1.msra.mxu0 0.0
      %3778 = vmatprep.subr.mxu0 0.0
      %3779 = vmatpush1.msra.mxu0 0.0
      %3780 = vmatprep.subr.mxu0 0.0
      %3781 = vmatpush1.msra.mxu0 0.0
      %3782 = vmatprep.subr.mxu0 0.0
      %3783 = vmatpush1.msra.mxu0 0.0
      %3784 = vmatprep.subr.mxu0 0.0
      %3785 = vmatpush1.msra.mxu0 0.0
      %3786 = vmatprep.subr.mxu0 0.0
      %3787 = vmatpush1.msra.mxu0 0.0
      %3788 = vmatprep.subr.mxu0 0.0
      %3789 = vmatpush1.msra.mxu0 0.0
      %3790 = vmatprep.subr.mxu0 0.0
      %3791 = vmatpush1.msra.mxu0 0.0
      %3792 = vmatprep.subr.mxu0 0.0
      %3793 = vmatpush1.msra.mxu0 0.0
      %3794 = vmatprep.subr.mxu0 0.0
      %3795 = vmatpush1.msra.mxu0 0.0
      %3796 = vmatprep.subr.mxu0 0.0
      %3797 = vmatpush1.msra.mxu0 0.0
      %3798 = vmatprep.subr.mxu0 0.0
      %3799 = vmatpush1.msra.mxu0 0.0
      %3800 = vmatprep.subr.mxu0 0.0
      %3801 = vmatpush1.msra.mxu0 0.0
      %3802 = vmatprep.subr.mxu0 0.0
      %3803 = vmatpush1.msra.mxu0 0.0
      %3804 = vmatprep.subr.mxu0 0.0
      %3805 = vmatpush1.msra.mxu0 0.0
      %3806 = vmatprep.subr.mxu0 0.0
      %3807 = vmatpush1.msra.mxu0 0.0
      %3808 = vmatprep.subr.mxu0 0.0
      %3809 = vmatpush1.msra.mxu0 0.0
      %3810 = vmatprep.mubr.f32.mxu0 0.0
      %3811 = vmatmul.mubr.f32.gmra.mrb[0].mxu0 %v3744
      %v3812 = vpop.f32.mrb[0].mxu0
      %v3813 = vadd.f32 %v2658, %v3812
      %v3814 = vpop.f32.mrb[0].mxu0
      %3815 = vdwg.mxu0
      %v3816 = vmax.f32 %v3813, 0.0
      %3817 = vxpose.xlu0.b32.start [1/16] %v3816, 128
      %3818 = vxpose.xlu0.b32.cont [2/16] 0.0, 128
      %3819 = vxpose.xlu0.b32.cont [3/16] 0.0, 128
      %3820 = vxpose.xlu0.b32.cont [4/16] 0.0, 128
      %3821 = vxpose.xlu0.b32.cont [5/16] 0.0, 128
      %3822 = vxpose.xlu0.b32.cont [6/16] 0.0, 128
      %3823 = vxpose.xlu0.b32.cont [7/16] 0.0, 128
      %3824 = vxpose.xlu0.b32.cont [8/16] 0.0, 128
      %3825 = vxpose.xlu0.b32.cont [9/16] 0.0, 128
      %3826 = vxpose.xlu0.b32.cont [10/16] 0.0, 128
      %3827 = vxpose.xlu0.b32.cont [11/16] 0.0, 128
      %3828 = vxpose.xlu0.b32.cont [12/16] 0.0, 128
      %3829 = vxpose.xlu0.b32.cont [13/16] 0.0, 128
      %3830 = vxpose.xlu0.b32.cont [14/16] 0.0, 128
      %3831 = vxpose.xlu0.b32.cont [15/16] 0.0, 128
      %3832 = vxpose.xlu0.b32.end [16/16] 0.0, 128
      %v3833 = vpop.trf.xlu0
      %v3834 = vpop.trf.xlu0
      %v3835 = vpop.trf.xlu0
      %v3836 = vpop.trf.xlu0
      %v3837 = vpop.trf.xlu0
      %v3838 = vpop.trf.xlu0
      %v3839 = vpop.trf.xlu0
      %v3840 = vpop.trf.xlu0
      %v3841 = vpop.trf.xlu0
      %v3842 = vpop.trf.xlu0
      %v3843 = vpop.trf.xlu0
      %v3844 = vpop.trf.xlu0
      %v3845 = vpop.trf.xlu0
      %v3846 = vpop.trf.xlu0
      %v3847 = vpop.trf.xlu0
      %v3848 = vpop.trf.xlu0
      %v3850 = vsel %vm334, %v3833, 0
      %3852 = vmatprep.subr.mxu0 0.0
      %3853 = vmatpush1.msra.mxu0 %v2652
      %3854 = vmatprep.subr.mxu0 0.0
      %3855 = vmatpush1.msra.mxu0 0.0
      %3856 = vmatprep.subr.mxu0 0.0
      %3857 = vmatpush1.msra.mxu0 0.0
      %3858 = vmatprep.subr.mxu0 0.0
      %3859 = vmatpush1.msra.mxu0 0.0
      %3860 = vmatprep.subr.mxu0 0.0
      %3861 = vmatpush1.msra.mxu0 0.0
      %3862 = vmatprep.subr.mxu0 0.0
      %3863 = vmatpush1.msra.mxu0 0.0
      %3864 = vmatprep.subr.mxu0 0.0
      %3865 = vmatpush1.msra.mxu0 0.0
      %3866 = vmatprep.subr.mxu0 0.0
      %3867 = vmatpush1.msra.mxu0 0.0
      %3868 = vmatprep.subr.mxu0 0.0
      %3869 = vmatpush1.msra.mxu0 0.0
      %3870 = vmatprep.subr.mxu0 0.0
      %3871 = vmatpush1.msra.mxu0 0.0
      %3872 = vmatprep.subr.mxu0 0.0
      %3873 = vmatpush1.msra.mxu0 0.0
      %3874 = vmatprep.subr.mxu0 0.0
      %3875 = vmatpush1.msra.mxu0 0.0
      %3876 = vmatprep.subr.mxu0 0.0
      %3877 = vmatpush1.msra.mxu0 0.0
      %3878 = vmatprep.subr.mxu0 0.0
      %3879 = vmatpush1.msra.mxu0 0.0
      %3880 = vmatprep.subr.mxu0 0.0
      %3881 = vmatpush1.msra.mxu0 0.0
      %3882 = vmatprep.subr.mxu0 0.0
      %3883 = vmatpush1.msra.mxu0 0.0
      %3884 = vmatprep.subr.mxu0 0.0
      %3885 = vmatpush1.msra.mxu0 0.0
      %3886 = vmatprep.subr.mxu0 0.0
      %3887 = vmatpush1.msra.mxu0 0.0
      %3888 = vmatprep.subr.mxu0 0.0
      %3889 = vmatpush1.msra.mxu0 0.0
      %3890 = vmatprep.subr.mxu0 0.0
      %3891 = vmatpush1.msra.mxu0 0.0
      %3892 = vmatprep.subr.mxu0 0.0
      %3893 = vmatpush1.msra.mxu0 0.0
      %3894 = vmatprep.subr.mxu0 0.0
      %3895 = vmatpush1.msra.mxu0 0.0
      %3896 = vmatprep.subr.mxu0 0.0
      %3897 = vmatpush1.msra.mxu0 0.0
      %3898 = vmatprep.subr.mxu0 0.0
      %3899 = vmatpush1.msra.mxu0 0.0
      %3900 = vmatprep.subr.mxu0 0.0
      %3901 = vmatpush1.msra.mxu0 0.0
      %3902 = vmatprep.subr.mxu0 0.0
      %3903 = vmatpush1.msra.mxu0 0.0
      %3904 = vmatprep.subr.mxu0 0.0
      %3905 = vmatpush1.msra.mxu0 0.0
      %3906 = vmatprep.subr.mxu0 0.0
      %3907 = vmatpush1.msra.mxu0 0.0
      %3908 = vmatprep.subr.mxu0 0.0
      %3909 = vmatpush1.msra.mxu0 0.0
      %3910 = vmatprep.subr.mxu0 0.0
      %3911 = vmatpush1.msra.mxu0 0.0
      %3912 = vmatprep.subr.mxu0 0.0
      %3913 = vmatpush1.msra.mxu0 0.0
      %3914 = vmatprep.subr.mxu0 0.0
      %3915 = vmatpush1.msra.mxu0 0.0
      %3916 = vmatprep.mubr.f32.mxu0 0.0
      %3917 = vmatmul.mubr.f32.gmra.mrb[0].mxu0 %v3850
      %v3918 = vpop.f32.mrb[0].mxu0
      %v3919 = vadd.f32 0.0, %v3918
      %v3920 = vpop.f32.mrb[0].mxu0
      %3921 = vdwg.mxu0
      %v3922 = vadd.f32 %v3741, %v3919
      %3923 = vrot.lane.b32.xlu0 %v2642, 16
      %v3924 = vpop.permute.xlu0 %3923
      %v3925 = vsel %vm1560, %v3924, 0
      %3927 = vmatprep.subr.mxu0 0.0
      %3928 = vmatpush1.msra.mxu0 %v2643
      %3929 = vmatprep.subr.mxu0 0.0
      %3930 = vmatpush1.msra.mxu0 %v2644
      %3931 = vmatprep.subr.mxu0 0.0
      %3932 = vmatpush1.msra.mxu0 0.0
      %3933 = vmatprep.subr.mxu0 0.0
      %3934 = vmatpush1.msra.mxu0 0.0
      %3935 = vmatprep.subr.mxu0 0.0
      %3936 = vmatpush1.msra.mxu0 0.0
      %3937 = vmatprep.subr.mxu0 0.0
      %3938 = vmatpush1.msra.mxu0 0.0
      %3939 = vmatprep.subr.mxu0 0.0
      %3940 = vmatpush1.msra.mxu0 0.0
      %3941 = vmatprep.subr.mxu0 0.0
      %3942 = vmatpush1.msra.mxu0 0.0
      %3943 = vmatprep.subr.mxu0 0.0
      %3944 = vmatpush1.msra.mxu0 0.0
      %3945 = vmatprep.subr.mxu0 0.0
      %3946 = vmatpush1.msra.mxu0 0.0
      %3947 = vmatprep.subr.mxu0 0.0
      %3948 = vmatpush1.msra.mxu0 0.0
      %3949 = vmatprep.subr.mxu0 0.0
      %3950 = vmatpush1.msra.mxu0 0.0
      %3951 = vmatprep.subr.mxu0 0.0
      %3952 = vmatpush1.msra.mxu0 0.0
      %3953 = vmatprep.subr.mxu0 0.0
      %3954 = vmatpush1.msra.mxu0 0.0
      %3955 = vmatprep.subr.mxu0 0.0
      %3956 = vmatpush1.msra.mxu0 0.0
      %3957 = vmatprep.subr.mxu0 0.0
      %3958 = vmatpush1.msra.mxu0 0.0
      %3959 = vmatprep.subr.mxu0 0.0
      %3960 = vmatpush1.msra.mxu0 0.0
      %3961 = vmatprep.subr.mxu0 0.0
      %3962 = vmatpush1.msra.mxu0 0.0
      %3963 = vmatprep.subr.mxu0 0.0
      %3964 = vmatpush1.msra.mxu0 0.0
      %3965 = vmatprep.subr.mxu0 0.0
      %3966 = vmatpush1.msra.mxu0 0.0
      %3967 = vmatprep.subr.mxu0 0.0
      %3968 = vmatpush1.msra.mxu0 0.0
      %3969 = vmatprep.subr.mxu0 0.0
      %3970 = vmatpush1.msra.mxu0 0.0
      %3971 = vmatprep.subr.mxu0 0.0
      %3972 = vmatpush1.msra.mxu0 0.0
      %3973 = vmatprep.subr.mxu0 0.0
      %3974 = vmatpush1.msra.mxu0 0.0
      %3975 = vmatprep.subr.mxu0 0.0
      %3976 = vmatpush1.msra.mxu0 0.0
      %3977 = vmatprep.subr.mxu0 0.0
      %3978 = vmatpush1.msra.mxu0 0.0
      %3979 = vmatprep.subr.mxu0 0.0
      %3980 = vmatpush1.msra.mxu0 0.0
      %3981 = vmatprep.subr.mxu0 0.0
      %3982 = vmatpush1.msra.mxu0 0.0
      %3983 = vmatprep.subr.mxu0 0.0
      %3984 = vmatpush1.msra.mxu0 0.0
      %3985 = vmatprep.subr.mxu0 0.0
      %3986 = vmatpush1.msra.mxu0 0.0
      %3987 = vmatprep.subr.mxu0 0.0
      %3988 = vmatpush1.msra.mxu0 0.0
      %3989 = vmatprep.subr.mxu0 0.0
      %3990 = vmatpush1.msra.mxu0 0.0
      %3991 = vmatprep.mubr.f32.mxu0 0.0
      %3992 = vmatmul.mubr.f32.gmra.mrb[0].mxu0 %v3925
      %v3993 = vpop.f32.mrb[0].mxu0
      %v3994 = vadd.f32 %v2658, %v3993
      %v3995 = vpop.f32.mrb[0].mxu0
      %3996 = vdwg.mxu0
      %v3997 = vmax.f32 %v3994, 0.0
      %3998 = vxpose.xlu0.b32.start [1/16] %v3997, 128
      %3999 = vxpose.xlu0.b32.cont [2/16] 0.0, 128
      %4000 = vxpose.xlu0.b32.cont [3/16] 0.0, 128
      %4001 = vxpose.xlu0.b32.cont [4/16] 0.0, 128
      %4002 = vxpose.xlu0.b32.cont [5/16] 0.0, 128
      %4003 = vxpose.xlu0.b32.cont [6/16] 0.0, 128
      %4004 = vxpose.xlu0.b32.cont [7/16] 0.0, 128
      %4005 = vxpose.xlu0.b32.cont [8/16] 0.0, 128
      %4006 = vxpose.xlu0.b32.cont [9/16] 0.0, 128
      %4007 = vxpose.xlu0.b32.cont [10/16] 0.0, 128
      %4008 = vxpose.xlu0.b32.cont [11/16] 0.0, 128
      %4009 = vxpose.xlu0.b32.cont [12/16] 0.0, 128
      %4010 = vxpose.xlu0.b32.cont [13/16] 0.0, 128
      %4011 = vxpose.xlu0.b32.cont [14/16] 0.0, 128
      %4012 = vxpose.xlu0.b32.cont [15/16] 0.0, 128
      %4013 = vxpose.xlu0.b32.end [16/16] 0.0, 128
      %v4014 = vpop.trf.xlu0
      %v4015 = vpop.trf.xlu0
      %v4016 = vpop.trf.xlu0
      %v4017 = vpop.trf.xlu0
      %v4018 = vpop.trf.xlu0
      %v4019 = vpop.trf.xlu0
      %v4020 = vpop.trf.xlu0
      %v4021 = vpop.trf.xlu0
      %v4022 = vpop.trf.xlu0
      %v4023 = vpop.trf.xlu0
      %v4024 = vpop.trf.xlu0
      %v4025 = vpop.trf.xlu0
      %v4026 = vpop.trf.xlu0
      %v4027 = vpop.trf.xlu0
      %v4028 = vpop.trf.xlu0
      %v4029 = vpop.trf.xlu0
      %v4031 = vsel %vm334, %v4014, 0
      %4033 = vmatprep.subr.mxu0 0.0
      %4034 = vmatpush1.msra.mxu0 %v2653
      %4035 = vmatprep.subr.mxu0 0.0
      %4036 = vmatpush1.msra.mxu0 0.0
      %4037 = vmatprep.subr.mxu0 0.0
      %4038 = vmatpush1.msra.mxu0 0.0
      %4039 = vmatprep.subr.mxu0 0.0
      %4040 = vmatpush1.msra.mxu0 0.0
      %4041 = vmatprep.subr.mxu0 0.0
      %4042 = vmatpush1.msra.mxu0 0.0
      %4043 = vmatprep.subr.mxu0 0.0
      %4044 = vmatpush1.msra.mxu0 0.0
      %4045 = vmatprep.subr.mxu0 0.0
      %4046 = vmatpush1.msra.mxu0 0.0
      %4047 = vmatprep.subr.mxu0 0.0
      %4048 = vmatpush1.msra.mxu0 0.0
      %4049 = vmatprep.subr.mxu0 0.0
      %4050 = vmatpush1.msra.mxu0 0.0
      %4051 = vmatprep.subr.mxu0 0.0
      %4052 = vmatpush1.msra.mxu0 0.0
      %4053 = vmatprep.subr.mxu0 0.0
      %4054 = vmatpush1.msra.mxu0 0.0
      %4055 = vmatprep.subr.mxu0 0.0
      %4056 = vmatpush1.msra.mxu0 0.0
      %4057 = vmatprep.subr.mxu0 0.0
      %4058 = vmatpush1.msra.mxu0 0.0
      %4059 = vmatprep.subr.mxu0 0.0
      %4060 = vmatpush1.msra.mxu0 0.0
      %4061 = vmatprep.subr.mxu0 0.0
      %4062 = vmatpush1.msra.mxu0 0.0
      %4063 = vmatprep.subr.mxu0 0.0
      %4064 = vmatpush1.msra.mxu0 0.0
      %4065 = vmatprep.subr.mxu0 0.0
      %4066 = vmatpush1.msra.mxu0 0.0
      %4067 = vmatprep.subr.mxu0 0.0
      %4068 = vmatpush1.msra.mxu0 0.0
      %4069 = vmatprep.subr.mxu0 0.0
      %4070 = vmatpush1.msra.mxu0 0.0
      %4071 = vmatprep.subr.mxu0 0.0
      %4072 = vmatpush1.msra.mxu0 0.0
      %4073 = vmatprep.subr.mxu0 0.0
      %4074 = vmatpush1.msra.mxu0 0.0
      %4075 = vmatprep.subr.mxu0 0.0
      %4076 = vmatpush1.msra.mxu0 0.0
      %4077 = vmatprep.subr.mxu0 0.0
      %4078 = vmatpush1.msra.mxu0 0.0
      %4079 = vmatprep.subr.mxu0 0.0
      %4080 = vmatpush1.msra.mxu0 0.0
      %4081 = vmatprep.subr.mxu0 0.0
      %4082 = vmatpush1.msra.mxu0 0.0
      %4083 = vmatprep.subr.mxu0 0.0
      %4084 = vmatpush1.msra.mxu0 0.0
      %4085 = vmatprep.subr.mxu0 0.0
      %4086 = vmatpush1.msra.mxu0 0.0
      %4087 = vmatprep.subr.mxu0 0.0
      %4088 = vmatpush1.msra.mxu0 0.0
      %4089 = vmatprep.subr.mxu0 0.0
      %4090 = vmatpush1.msra.mxu0 0.0
      %4091 = vmatprep.subr.mxu0 0.0
      %4092 = vmatpush1.msra.mxu0 0.0
      %4093 = vmatprep.subr.mxu0 0.0
      %4094 = vmatpush1.msra.mxu0 0.0
      %4095 = vmatprep.subr.mxu0 0.0
      %4096 = vmatpush1.msra.mxu0 0.0
      %4097 = vmatprep.mubr.f32.mxu0 0.0
      %4098 = vmatmul.mubr.f32.gmra.mrb[0].mxu0 %v4031
      %v4099 = vpop.f32.mrb[0].mxu0
      %v4100 = vadd.f32 0.0, %v4099
      %v4101 = vpop.f32.mrb[0].mxu0
      %4102 = vdwg.mxu0
      %v4103 = vadd.f32 %v3922, %v4100
      %v4104 = vlaneseq
      %v4105 = vshrl.u32 %v4104, 7
      %v4106 = vsub.s32 0, %v4105
      %v4107 = vrot.slane %v2654, %v4106
      %v4108 = vadd.f32 %v4103, %v4107
      %v4109 = vmax.f32 %v4108, 0.0
      %vm4110 = vcmask 324608
      %4111 = vst.msk [vmem:[%s168] sm:$0x3f] %vm4110, %v4109
      %p4112 = scmp.lt.s32.totalorder %s14, 1
      %s4113 = scalar_select %p4112, %s14, 1
      %s4114 = smul.addr %s4113, 8
      %s4115 = scalar_lea.vmem %s3, %s4114
      // Predicated region
      $region33: #{forward.1} parent=31 // pred_check
        %p4116 = pneg %p100
      $region34: #{forward.1} parent=31 // pred_check_branch
        %4118 = sbr.rel (%p4116) target = $region36
      $region35: #{forward.1} parent=31 // pred_region
        _
      $region36: #{forward.1} parent=31 // pred_fallthru
        _
    $region32: #{forward.1} parent=5 // pred_fallthru
      _
    %p4119 = scmp.le.s32.totalorder 2, %s9
    // Predicated region
    $region37: #{forward.1} parent=5 // pred_check
      %p4120 = pneg %p4119
    $region38: #{forward.1} parent=5 // pred_check_branch
      %4122 = sbr.rel (%p4120) target = $region40
    $region39: #{forward.1} parent=5 // pred_region
      %s4123 = ssub.s32 %s9, 2
      // Predicated region
      $region41: #{forward.1} parent=39 // pred_check
        %p4124 = pneg %p106
      $region42: #{forward.1} parent=39 // pred_check_branch
        %4126 = sbr.rel (%p4124) target = $region44
      $region43: #{forward.1} parent=39 // pred_region
        %p4127 = scmp.lt.s32.totalorder %s15, 1
        %s4128 = scalar_select %p4127, %s15, 1
        %s4129 = smul.addr %s4128, 8
        %s4130 = scalar_lea.vmem %s3, %s4129
      $region44: #{forward.1} parent=39 // pred_fallthru
        _
    $region40: #{forward.1} parent=5 // pred_fallthru
      _
  $region6: #{forward.1} parent=0 // loop_footer
    %s13 = sadd.s32 1, %s9
  $region7: #{forward.1} parent=0 // loop_footer_branch
    %8 = sbr.rel target = $region3
  $region8: #{forward.1} parent=0 // loop_exit
    _

</llo_original>
